<compile_context>
chip_gen: v6e
topology: v6e:2x2x1
jax: 0.10.0
libtpu: 0.0.40
codegen_flags: <defaults>
</compile_context>

<pallas_src>
import functools

import numpy as np
import jax
import jax.numpy as jnp
from jax.experimental import pallas as pl
from jax.experimental.pallas import tpu as pltpu

NUM_AMINO_ACIDS = 20


# ----------------------------- Pallas kernels -----------------------------

def _embed_kernel(xp_ref, xl_ref, ea_ref,
                  wp_ref, bp_ref, wl_ref, bl_ref, we_ref, be_ref,
                  hp_ref, hl_ref, he_ref):
    """Fused protein / ligand / edge embedding linears (single pallas_call)."""
    hp_ref[...] = (jnp.dot(xp_ref[...], wp_ref[...],
                           preferred_element_type=jnp.float32) + bp_ref[...])
    hl_ref[...] = (jnp.dot(xl_ref[...], wl_ref[...],
                           preferred_element_type=jnp.float32) + bl_ref[...])
    he_ref[...] = (jnp.dot(ea_ref[...], we_ref[...],
                           preferred_element_type=jnp.float32) + be_ref[...])


def pallas_embeddings(params, x, ligand_x, edge_attr):
    n_p, n_l, n_e = x.shape[0], ligand_x.shape[0], edge_attr.shape[0]
    dh = params["prot_w"].shape[1]
    vmem = pl.BlockSpec(memory_space=pltpu.MemorySpace.VMEM)
    return pl.pallas_call(
        _embed_kernel,
        out_shape=(jax.ShapeDtypeStruct((n_p, dh), jnp.float32),
                   jax.ShapeDtypeStruct((n_l, dh), jnp.float32),
                   jax.ShapeDtypeStruct((n_e, dh), jnp.float32)),
        in_specs=[vmem] * 9,
        out_specs=(vmem, vmem, vmem),
    )(x.astype(jnp.float32), ligand_x.astype(jnp.float32),
      edge_attr.astype(jnp.float32),
      params["prot_w"], params["prot_b"].reshape(1, -1),
      params["lig_w"], params["lig_b"].reshape(1, -1),
      params["edge_w"], params["edge_b"].reshape(1, -1))


def _out_linear_kernel(f_ref, w_ref, b_ref, o_ref):
    o_ref[...] = (jnp.dot(f_ref[...], w_ref[...],
                          preferred_element_type=jnp.float32) + b_ref[...])


def pallas_output_linear(feat, w, b):
    """Final linear with the output lane-dim padded to a multiple of 128
    (lane-dense stores); real columns sliced out afterwards."""
    n_rows, d_in = feat.shape
    d_out = w.shape[1]
    opad = max(128, -(-d_out // 128) * 128)
    w_pad = jnp.zeros((d_in, opad), jnp.float32).at[:, :d_out].set(w)
    b_pad = jnp.zeros((1, opad), jnp.float32).at[:, :d_out].set(b.reshape(1, -1))
    vmem = pl.BlockSpec(memory_space=pltpu.MemorySpace.VMEM)
    out = pl.pallas_call(
        _out_linear_kernel,
        out_shape=jax.ShapeDtypeStruct((n_rows, opad), jnp.float32),
        in_specs=[vmem] * 3,
        out_specs=vmem,
    )(feat.astype(jnp.float32), w_pad, b_pad)
    return out[:, :d_out]


def _gat_layer_kernel(xt_ref, xf_ref, adj_ref, e_ref,
                      wlr_ref, blr_ref, we_ref, att_ref,
                      bias_ref, gamma_ref, beta_ref,
                      o_ref, xlr_scr):
    """One GATv2Conv(heads, concat=False, edge_dim=Dh) + residual + LayerNorm
    + ReLU for a tile of target nodes (grid axis 0), all sources resident."""
    i = pl.program_id(0)
    tn, dh = xt_ref.shape
    npad = xf_ref.shape[0]
    heads, ch = att_ref.shape
    hc = heads * ch

    # Fused 256-wide projection of every node: [W_l | W_r], bf16 MXU, f32 acc.
    xlr_scr[...] = (
        jnp.dot(xf_ref[...], wlr_ref[...], preferred_element_type=jnp.float32)
        + blr_ref[...]
    )
    xl = xlr_scr[:, :hc]                               # [npad, H*C] sources
    row0 = pl.multiple_of(i * tn, tn)
    xr = xlr_scr[pl.ds(row0, tn), :][:, hc:]           # [tn,   H*C] targets

    # Edge projection for the streamed E-slab tile: one 128-wide matmul.
    eh = jnp.dot(e_ref[...], we_ref[...], preferred_element_type=jnp.float32)
    eh = eh.reshape(tn, npad, hc)

    # Lane-dense GATv2 scores (all heads fused in the 128-wide last dim).
    s = xl[None, :, :] + xr[:, None, :] + eh           # [tn, npad, H*C]
    s = jnp.where(s >= 0, s, 0.2 * s)                  # LeakyReLU(0.2)

    adj = adj_ref[...]                                 # [tn, npad]
    maskb = adj > 0.0
    att = att_ref[...]                                 # [heads, C]

    # Per-head masked softmax over sources (2-D, sources on lanes).
    alphas = []
    for h in range(heads):                             # static unroll
        sh = s[:, :, h * ch:(h + 1) * ch]              # [tn, npad, C]
        logits = jnp.sum(sh * att[h][None, None, :], axis=-1)   # [tn, npad]
        masked = jnp.where(maskb, logits, -1e30)
        m = jnp.max(masked, axis=1, keepdims=True)
        ex = jnp.exp(masked - m)                       # masked slots -> 0
        denom = jnp.sum(ex, axis=1, keepdims=True)
        alphas.append(ex / denom)

    # Single stacked aggregation matmul: [tn, H*npad] @ [H*npad, C].
    alpha_cat = jnp.concatenate(alphas, axis=1).astype(jnp.bfloat16)
    xl_stack = jnp.concatenate(
        [xl[:, h * ch:(h + 1) * ch] for h in range(heads)], axis=0
    ).astype(jnp.bfloat16)
    acc = jnp.dot(alpha_cat, xl_stack, preferred_element_type=jnp.float32)

    out = acc * (1.0 / heads) + bias_ref[...]          # head mean + conv bias
    y = out + xt_ref[...]                              # residual (f32)
    mu = jnp.mean(y, axis=-1, keepdims=True)
    var = jnp.mean((y - mu) ** 2, axis=-1, keepdims=True)
    yn = (y - mu) * jax.lax.rsqrt(var + 1e-5)
    yn = yn * gamma_ref[...] + beta_ref[...]
    o_ref[...] = jnp.maximum(yn, 0.0)                  # ReLU


def pallas_gat_layer(h_f32, adj, eflat_bf, packed, *, tile_n):
    npad, dh = h_f32.shape
    heads, ch = packed["att"].shape
    hc = heads * ch
    assert tile_n % 8 == 0 and npad % tile_n == 0
    grid = (npad // tile_n,)

    # VMEM budget for the chosen tiles: double-buffered streamed inputs +
    # resident weights + scratch + f32 temporaries; floor 16 MiB, cap 48 MiB.
    est = (2 * (tile_n * dh * 4 + npad * dh * 2 + tile_n * npad * 4
                + tile_n * npad * dh * 2 + tile_n * dh * 4)
           + (dh * 2 * hc * 2 + 2 * hc * 4 + dh * hc * 2
              + heads * ch * 4 + 3 * dh * 4)
           + npad * 2 * hc * 4
           + 4 * tile_n * npad * hc * 4)
    vmem_limit = int(min(max(2 * est, 16 * 1024 * 1024), 48 * 1024 * 1024))

    return pl.pallas_call(
        _gat_layer_kernel,
        out_shape=jax.ShapeDtypeStruct((npad, dh), jnp.float32),
        grid_spec=pltpu.PrefetchScalarGridSpec(
            num_scalar_prefetch=0,
            grid=grid,
            in_specs=[
                pl.BlockSpec((tile_n, dh), lambda i: (i, 0)),          # residual tile
                pl.BlockSpec((npad, dh), lambda i: (0, 0)),            # all nodes (bf16)
                pl.BlockSpec((tile_n, npad), lambda i: (i, 0)),        # adjacency rows
                pl.BlockSpec((tile_n * npad, dh), lambda i: (i, 0)),   # E-slab tile (bf16)
                pl.BlockSpec((dh, 2 * hc), lambda i: (0, 0)),          # [W_l|W_r] bf16
                pl.BlockSpec((1, 2 * hc), lambda i: (0, 0)),           # [b_l|b_r]
                pl.BlockSpec((dh, hc), lambda i: (0, 0)),              # W_e bf16
                pl.BlockSpec((heads, ch), lambda i: (0, 0)),           # att
                pl.BlockSpec((1, dh), lambda i: (0, 0)),               # conv bias
                pl.BlockSpec((1, dh), lambda i: (0, 0)),               # LN gamma
                pl.BlockSpec((1, dh), lambda i: (0, 0)),               # LN beta
            ],
            out_specs=pl.BlockSpec((tile_n, dh), lambda i: (i, 0)),
            scratch_shapes=[pltpu.VMEM((npad, 2 * hc), jnp.float32)],
        ),
        compiler_params=pltpu.CompilerParams(
            dimension_semantics=("parallel",),
            vmem_limit_bytes=vmem_limit,
        ),
    )(h_f32, h_f32.astype(jnp.bfloat16), adj, eflat_bf,
      packed["w_lr"], packed["b_lr"], packed["w_e"], packed["att"],
      packed["bias"], packed["ln_g"], packed["ln_b"])


# ----------------------------- glue (plain JAX) -----------------------------

def pack_layer_params(lp):
    return dict(
        w_lr=jnp.concatenate([lp["w_l"], lp["w_r"]], axis=1).astype(jnp.bfloat16),
        b_lr=jnp.concatenate([lp["b_l"], lp["b_r"]]).reshape(1, -1).astype(jnp.float32),
        w_e=lp["w_e"].astype(jnp.bfloat16),
        att=lp["att"].astype(jnp.float32),
        bias=lp["bias"].reshape(1, -1).astype(jnp.float32),
        ln_g=lp["ln_g"].reshape(1, -1).astype(jnp.float32),
        ln_b=lp["ln_b"].reshape(1, -1).astype(jnp.float32),
    )


def densify_graph(src, dst, e_emb, n_real, npad):
    """Dense adjacency mask A[target, source] + dense edge-feature slab,
    including GATv2 add_self_loops with fill_value='mean' (self-loop attr =
    mean of incoming edge attrs).  Padded nodes get no edges at all."""
    # TODO(synk): for truly sparse graphs, replace this O(N^2*Dh) densification
    # with a scalar-prefetch (PrefetchScalarGridSpec) gather over real edges.
    dh = e_emb.shape[1]
    adj = jnp.zeros((npad, npad), jnp.float32).at[dst, src].set(1.0)
    edense = jnp.zeros((npad, npad, dh), jnp.float32).at[dst, src].set(e_emb)
    deg = jnp.zeros((npad,), jnp.float32).at[dst].add(1.0)
    loop_attr = (jnp.zeros((npad, dh), jnp.float32).at[dst].add(e_emb)
                 / jnp.maximum(deg, 1.0)[:, None])
    idx = jnp.arange(n_real)
    adj = adj.at[idx, idx].set(1.0)
    edense = edense.at[idx, idx, :].set(loop_attr[:n_real])
    return adj, edense.reshape(npad * npad, dh)


def protein_ligand_gnn_forward(params, x, edge_index, edge_attr, batch,
                               ligand_x, ligand_batch, *, num_graphs, tile_n=8):
    protein_h, ligand_h, e_emb = pallas_embeddings(params, x, ligand_x, edge_attr)

    h = jnp.concatenate([protein_h, ligand_h], axis=0)
    n_real, dh = h.shape
    npad = -(-n_real // tile_n) * tile_n
    h = jnp.pad(h, ((0, npad - n_real), (0, 0)))

    adj, eflat = densify_graph(edge_index[0], edge_index[1], e_emb, n_real, npad)
    eflat_bf = eflat.astype(jnp.bfloat16)

    for lp in params["layers"]:
        h = pallas_gat_layer(h, adj, eflat_bf, pack_layer_params(lp),
                             tile_n=tile_n)

    # global_add_pool of the *embedded* ligand features + gather (plain JAX).
    pooled = jnp.zeros((num_graphs, dh), jnp.float32).at[ligand_batch].add(ligand_h)
    gathered = pooled[batch]                                         # [Np, Dh]

    protein_out = h[: x.shape[0]]
    feat = jnp.concatenate([protein_out, gathered], axis=1)          # [Np, 2*Dh]
    return pallas_output_linear(feat, params["out_w"], params["out_b"])


# ----------------------- pure-JAX (edge-centric) reference -----------------------

def reference_forward(params, x, edge_index, edge_attr, batch,
                      ligand_x, ligand_batch, num_graphs):
    ph = x @ params["prot_w"] + params["prot_b"]
    lh = ligand_x @ params["lig_w"] + params["lig_b"]
    ea = edge_attr @ params["edge_w"] + params["edge_b"]
    h = jnp.concatenate([ph, lh], axis=0)
    n, dh = h.shape
    src, dst = edge_index[0], edge_index[1]
    deg = jnp.zeros((n,)).at[dst].add(1.0)
    loop_attr = jnp.zeros((n, dh)).at[dst].add(ea) / jnp.maximum(deg, 1.0)[:, None]
    src_f = jnp.concatenate([src, jnp.arange(n)])
    dst_f = jnp.concatenate([dst, jnp.arange(n)])
    ea_f = jnp.concatenate([ea, loop_attr], axis=0)
    for lp in params["layers"]:
        H, C = lp["att"].shape
        xl = (h @ lp["w_l"] + lp["b_l"]).reshape(n, H, C)
        xr = (h @ lp["w_r"] + lp["b_r"]).reshape(n, H, C)
        ee = (ea_f @ lp["w_e"]).reshape(-1, H, C)
        s = xl[src_f] + xr[dst_f] + ee
        s = jnp.where(s >= 0, s, 0.2 * s)
        logit = jnp.sum(s * lp["att"][None], axis=-1)
        m = jnp.full((n, H), -1e30).at[dst_f].max(logit)
        ex = jnp.exp(logit - m[dst_f])
        den = jnp.zeros((n, H)).at[dst_f].add(ex)
        alpha = ex / den[dst_f]
        out = jnp.zeros((n, H, C)).at[dst_f].add(xl[src_f] * alpha[..., None])
        out = out.mean(axis=1) + lp["bias"]
        y = out + h
        mu = y.mean(-1, keepdims=True)
        var = ((y - mu) ** 2).mean(-1, keepdims=True)
        y = (y - mu) / jnp.sqrt(var + 1e-5) * lp["ln_g"] + lp["ln_b"]
        h = jnp.maximum(y, 0.0)
    pooled = jnp.zeros((num_graphs, dh)).at[ligand_batch].add(lh)
    feat = jnp.concatenate([h[: x.shape[0]], pooled[batch]], axis=1)
    return feat @ params["out_w"] + params["out_b"]


# ----------------------------- parameters & data -----------------------------

def init_params(key, pf, lf, ef, hd, num_layers, heads=4):
    keys = iter(jax.random.split(key, 16 + num_layers * 8))

    def w(shape, scale=0.1):
        return (scale * jax.random.normal(next(keys), shape)).astype(jnp.float32)

    params = dict(
        prot_w=w((pf, hd)), prot_b=w((hd,)),
        lig_w=w((lf, hd)), lig_b=w((hd,)),
        edge_w=w((ef, hd)), edge_b=w((hd,)),
        out_w=w((2 * hd, NUM_AMINO_ACIDS)), out_b=w((NUM_AMINO_ACIDS,)),
        layers=[],
    )
    for _ in range(num_layers):
        params["layers"].append(dict(
            w_l=w((hd, heads * hd)), b_l=w((heads * hd,)),
            w_r=w((hd, heads * hd)), b_r=w((heads * hd,)),
            w_e=w((hd, heads * hd)),          # lin_edge has no bias
            att=w((heads, hd)),
            bias=w((hd,)),
            ln_g=jnp.ones((hd,), jnp.float32),
            ln_b=jnp.zeros((hd,), jnp.float32),
        ))
    return params


if __name__ == "__main__":
    protein_features, ligand_features, edge_features = 16, 8, 4
    hidden_dim, num_layers, heads = 32, 2, 4
    n_protein, n_ligand, num_graphs = 16, 8, 2

    key = jax.random.PRNGKey(0)
    kx, kl, ke, kp = jax.random.split(key, 4)

    x = jax.random.normal(kx, (n_protein, protein_features), jnp.float32)
    ligand_x = jax.random.normal(kl, (n_ligand, ligand_features), jnp.float32)
    batch = jnp.array([0] * 8 + [1] * 8, jnp.int32)
    ligand_batch = jnp.array([0] * 4 + [1] * 4, jnp.int32)

    # deterministic duplicate-free, self-loop-free edge set (COO: row=src, col=dst)
    src_list, dst_list = [], []
    for i in range(n_protein):
        src_list += [(i + 1) % n_protein, (i + 5) % n_protein]
        dst_list += [i, i]
    for l in range(n_ligand):
        src_list += [2 * l, n_protein + l]
        dst_list += [n_protein + l, 2 * l]
    edge_index = jnp.array(np.stack([src_list, dst_list]), jnp.int32)   # [2, E]
    edge_attr = jax.random.normal(ke, (edge_index.shape[1], edge_features), jnp.float32)

    params = init_params(kp, protein_features, ligand_features, edge_features,
                         hidden_dim, num_layers, heads)

    forward = jax.jit(functools.partial(protein_ligand_gnn_forward,
                                        num_graphs=num_graphs, tile_n=8))
    out = forward(params, x, edge_index, edge_attr, batch, ligand_x, ligand_batch)
    out = jax.block_until_ready(out)

    ref = jax.block_until_ready(
        reference_forward(params, x, edge_index, edge_attr, batch,
                          ligand_x, ligand_batch, num_graphs))

    assert out.shape == (n_protein, NUM_AMINO_ACIDS)
    assert np.all(np.isfinite(np.asarray(out)))
    # GAT-layer matmuls run with bf16 operands (f32 accumulation); allow for
    # the corresponding rounding vs. the pure-f32 reference.
    max_err = float(np.max(np.abs(np.asarray(out) - np.asarray(ref))))
    assert max_err < 5e-2, f"mismatch vs reference: {max_err}"
    print("KERNEL_OK")
</pallas_src>

<mosaic_0001>
module attributes {stable_mosaic.version = 11 : i64} {
  func.func private @main(%arg0: i32) attributes {dimension_semantics = [#tpu.dimension_semantics<core_parallel>], iteration_bounds = array<i64: 2>, tpu.core_type = #tpu.core_type<sc_scalar_subcore>, window_params = []} {
    return
  }
}

module attributes {stable_mosaic.version = 11 : i64} {
  func.func private @main(%arg0: i32) attributes {dimension_semantics = [#tpu.dimension_semantics<core_parallel>], iteration_bounds = array<i64: 2>, tpu.core_type = #tpu.core_type<sc_scalar_subcore>, window_params = []} {
    return
  }
}

module attributes {stable_mosaic.version = 11 : i64} {
  func.func @_embed_kernel(%arg0: memref<16x16xf32, #tpu.memory_space<vmem>>, %arg1: memref<8x8xf32, #tpu.memory_space<vmem>>, %arg2: memref<48x4xf32, #tpu.memory_space<vmem>>, %arg3: memref<16x32xf32, #tpu.memory_space<vmem>>, %arg4: memref<1x32xf32, #tpu.memory_space<vmem>>, %arg5: memref<8x32xf32, #tpu.memory_space<vmem>>, %arg6: memref<1x32xf32, #tpu.memory_space<vmem>>, %arg7: memref<4x32xf32, #tpu.memory_space<vmem>>, %arg8: memref<1x32xf32, #tpu.memory_space<vmem>>, %arg9: memref<16x32xf32, #tpu.memory_space<vmem>>, %arg10: memref<8x32xf32, #tpu.memory_space<vmem>>, %arg11: memref<48x32xf32, #tpu.memory_space<vmem>>) attributes {dimension_semantics = [], scalar_prefetch = 0 : i64, scratch_operands = 0 : i64, tpu.core_type = #tpu.core_type<tc>} {
    %c0 = arith.constant 0 : index
    %c0_0 = arith.constant 0 : index
    %0 = vector.load %arg0[%c0, %c0_0] : memref<16x16xf32, #tpu.memory_space<vmem>>, vector<16x16xf32>
    %c0_1 = arith.constant 0 : index
    %c0_2 = arith.constant 0 : index
    %1 = vector.load %arg3[%c0_1, %c0_2] : memref<16x32xf32, #tpu.memory_space<vmem>>, vector<16x32xf32>
    %cst = arith.constant dense<0.000000e+00> : vector<16x32xf32>
    %2 = tpu.matmul %0, %1, %cst {dimension_numbers = #tpu.dot_dimension_numbers<[1], [0], [0], [1], [0, 0, 1, 1], [], []>} : vector<16x16xf32>, vector<16x32xf32>, vector<16x32xf32> -> vector<16x32xf32>
    %c0_3 = arith.constant 0 : index
    %c0_4 = arith.constant 0 : index
    %3 = vector.load %arg4[%c0_3, %c0_4] : memref<1x32xf32, #tpu.memory_space<vmem>>, vector<1x32xf32>
    %4 = vector.broadcast %3 : vector<1x32xf32> to vector<16x32xf32>
    %5 = arith.addf %2, %4 : vector<16x32xf32>
    %c0_5 = arith.constant 0 : index
    %c0_6 = arith.constant 0 : index
    %6 = vector.load %arg9[%c0_5, %c0_6] : memref<16x32xf32, #tpu.memory_space<vmem>>, vector<16x32xf32>
    tpu.vector_store %arg9[%c0_5, %c0_6], %5 {strides = array<i32>} : memref<16x32xf32, #tpu.memory_space<vmem>>, vector<16x32xf32>,
    %c0_7 = arith.constant 0 : index
    %c0_8 = arith.constant 0 : index
    %7 = vector.load %arg1[%c0_7, %c0_8] : memref<8x8xf32, #tpu.memory_space<vmem>>, vector<8x8xf32>
    %c0_9 = arith.constant 0 : index
    %c0_10 = arith.constant 0 : index
    %8 = vector.load %arg5[%c0_9, %c0_10] : memref<8x32xf32, #tpu.memory_space<vmem>>, vector<8x32xf32>
    %cst_11 = arith.constant dense<0.000000e+00> : vector<8x32xf32>
    %9 = tpu.matmul %7, %8, %cst_11 {dimension_numbers = #tpu.dot_dimension_numbers<[1], [0], [0], [1], [0, 0, 1, 1], [], []>} : vector<8x8xf32>, vector<8x32xf32>, vector<8x32xf32> -> vector<8x32xf32>
    %c0_12 = arith.constant 0 : index
    %c0_13 = arith.constant 0 : index
    %10 = vector.load %arg6[%c0_12, %c0_13] : memref<1x32xf32, #tpu.memory_space<vmem>>, vector<1x32xf32>
    %11 = vector.broadcast %10 : vector<1x32xf32> to vector<8x32xf32>
    %12 = arith.addf %9, %11 : vector<8x32xf32>
    %c0_14 = arith.constant 0 : index
    %c0_15 = arith.constant 0 : index
    %13 = vector.load %arg10[%c0_14, %c0_15] : memref<8x32xf32, #tpu.memory_space<vmem>>, vector<8x32xf32>
    tpu.vector_store %arg10[%c0_14, %c0_15], %12 {strides = array<i32>} : memref<8x32xf32, #tpu.memory_space<vmem>>, vector<8x32xf32>,
    %c0_16 = arith.constant 0 : index
    %c0_17 = arith.constant 0 : index
    %14 = vector.load %arg2[%c0_16, %c0_17] : memref<48x4xf32, #tpu.memory_space<vmem>>, vector<48x4xf32>
    %c0_18 = arith.constant 0 : index
    %c0_19 = arith.constant 0 : index
    %15 = vector.load %arg7[%c0_18, %c0_19] : memref<4x32xf32, #tpu.memory_space<vmem>>, vector<4x32xf32>
    %cst_20 = arith.constant dense<0.000000e+00> : vector<48x32xf32>
    %16 = tpu.matmul %14, %15, %cst_20 {dimension_numbers = #tpu.dot_dimension_numbers<[1], [0], [0], [1], [0, 0, 1, 1], [], []>} : vector<48x4xf32>, vector<4x32xf32>, vector<48x32xf32> -> vector<48x32xf32>
    %c0_21 = arith.constant 0 : index
    %c0_22 = arith.constant 0 : index
    %17 = vector.load %arg8[%c0_21, %c0_22] : memref<1x32xf32, #tpu.memory_space<vmem>>, vector<1x32xf32>
    %18 = vector.broadcast %17 : vector<1x32xf32> to vector<48x32xf32>
    %19 = arith.addf %16, %18 : vector<48x32xf32>
    %c0_23 = arith.constant 0 : index
    %c0_24 = arith.constant 0 : index
    %20 = vector.load %arg11[%c0_23, %c0_24] : memref<48x32xf32, #tpu.memory_space<vmem>>, vector<48x32xf32>
    tpu.vector_store %arg11[%c0_23, %c0_24], %19 {strides = array<i32>} : memref<48x32xf32, #tpu.memory_space<vmem>>, vector<48x32xf32>,
    return
  }
}

module attributes {stable_mosaic.version = 11 : i64} {
  func.func @_gat_layer_kernel(%arg0: i32, %arg1: memref<8x32xf32, #tpu.memory_space<vmem>>, %arg2: memref<24x32xbf16, #tpu.memory_space<vmem>>, %arg3: memref<8x24xf32, #tpu.memory_space<vmem>>, %arg4: memref<192x32xbf16, #tpu.memory_space<vmem>>, %arg5: memref<32x256xbf16, #tpu.memory_space<vmem>>, %arg6: memref<1x256xf32, #tpu.memory_space<vmem>>, %arg7: memref<32x128xbf16, #tpu.memory_space<vmem>>, %arg8: memref<4x32xf32, #tpu.memory_space<vmem>>, %arg9: memref<1x32xf32, #tpu.memory_space<vmem>>, %arg10: memref<1x32xf32, #tpu.memory_space<vmem>>, %arg11: memref<1x32xf32, #tpu.memory_space<vmem>>, %arg12: memref<8x32xf32, #tpu.memory_space<vmem>>, %arg13: memref<24x256xf32, #tpu.memory_space<vmem>>) attributes {dimension_semantics = [#tpu.dimension_semantics<parallel>], iteration_bounds = array<i64: 3>, scalar_prefetch = 0 : i64, scratch_operands = 1 : i64, tpu.core_type = #tpu.core_type<tc>, window_params = [{transform_indices = @transform_0, window_bounds = array<i64: 8, 32>}, {pipeline_mode = #tpu.pipeline_mode<synchronous>, transform_indices = @transform_1, window_bounds = array<i64: 24, 32>}, {transform_indices = @transform_2, window_bounds = array<i64: 8, 24>}, {transform_indices = @transform_3, window_bounds = array<i64: 192, 32>}, {pipeline_mode = #tpu.pipeline_mode<synchronous>, transform_indices = @transform_4, window_bounds = array<i64: 32, 256>}, {pipeline_mode = #tpu.pipeline_mode<synchronous>, transform_indices = @transform_5, window_bounds = array<i64: 1, 256>}, {pipeline_mode = #tpu.pipeline_mode<synchronous>, transform_indices = @transform_6, window_bounds = array<i64: 32, 128>}, {pipeline_mode = #tpu.pipeline_mode<synchronous>, transform_indices = @transform_7, window_bounds = array<i64: 4, 32>}, {pipeline_mode = #tpu.pipeline_mode<synchronous>, transform_indices = @transform_8, window_bounds = array<i64: 1, 32>}, {pipeline_mode = #tpu.pipeline_mode<synchronous>, transform_indices = @transform_9, window_bounds = array<i64: 1, 32>}, {pipeline_mode = #tpu.pipeline_mode<synchronous>, transform_indices = @transform_10, window_bounds = array<i64: 1, 32>}, {transform_indices = @transform_11, window_bounds = array<i64: 8, 32>}]} {
    %c0 = arith.constant 0 : index
    %c0_0 = arith.constant 0 : index
    %0 = vector.load %arg2[%c0, %c0_0] : memref<24x32xbf16, #tpu.memory_space<vmem>>, vector<24x32xbf16>
    %c0_1 = arith.constant 0 : index
    %c0_2 = arith.constant 0 : index
    %1 = vector.load %arg5[%c0_1, %c0_2] : memref<32x256xbf16, #tpu.memory_space<vmem>>, vector<32x256xbf16>
    %cst = arith.constant dense<0.000000e+00> : vector<24x256xf32>
    %2 = tpu.matmul %0, %1, %cst {dimension_numbers = #tpu.dot_dimension_numbers<[1], [0], [0], [1], [0, 0, 1, 1], [], []>} : vector<24x32xbf16>, vector<32x256xbf16>, vector<24x256xf32> -> vector<24x256xf32>
    %c0_3 = arith.constant 0 : index
    %c0_4 = arith.constant 0 : index
    %3 = vector.load %arg6[%c0_3, %c0_4] : memref<1x256xf32, #tpu.memory_space<vmem>>, vector<1x256xf32>
    %4 = vector.broadcast %3 : vector<1x256xf32> to vector<24x256xf32>
    %5 = arith.addf %2, %4 : vector<24x256xf32>
    %c0_5 = arith.constant 0 : index
    %c0_6 = arith.constant 0 : index
    %6 = vector.load %arg13[%c0_5, %c0_6] : memref<24x256xf32, #tpu.memory_space<vmem>>, vector<24x256xf32>
    tpu.vector_store %arg13[%c0_5, %c0_6], %5 {strides = array<i32>} : memref<24x256xf32, #tpu.memory_space<vmem>>, vector<24x256xf32>,
    %c0_7 = arith.constant 0 : index
    %c0_8 = arith.constant 0 : index
    %7 = vector.load %arg13[%c0_7, %c0_8] : memref<24x256xf32, #tpu.memory_space<vmem>>, vector<24x128xf32>
    %c8_i32 = arith.constant 8 : i32
    %8 = arith.muli %arg0, %c8_i32 : i32
    %9 = tpu.assume_multiple %8, 8 : i32
    %10 = arith.index_cast %9 : i32 to index
    %c0_9 = arith.constant 0 : index
    %11 = vector.load %arg13[%10, %c0_9] : memref<24x256xf32, #tpu.memory_space<vmem>>, vector<8x256xf32>
    %12 = vector.extract_strided_slice %11 {offsets = [0, 128], sizes = [8, 128], strides = [1, 1]} : vector<8x256xf32> to vector<8x128xf32>
    %c0_10 = arith.constant 0 : index
    %c0_11 = arith.constant 0 : index
    %13 = vector.load %arg4[%c0_10, %c0_11] : memref<192x32xbf16, #tpu.memory_space<vmem>>, vector<192x32xbf16>
    %c0_12 = arith.constant 0 : index
    %c0_13 = arith.constant 0 : index
    %14 = vector.load %arg7[%c0_12, %c0_13] : memref<32x128xbf16, #tpu.memory_space<vmem>>, vector<32x128xbf16>
    %cst_14 = arith.constant dense<0.000000e+00> : vector<192x128xf32>
    %15 = tpu.matmul %13, %14, %cst_14 {dimension_numbers = #tpu.dot_dimension_numbers<[1], [0], [0], [1], [0, 0, 1, 1], [], []>} : vector<192x32xbf16>, vector<32x128xbf16>, vector<192x128xf32> -> vector<192x128xf32>
    %16 = vector.shape_cast %15 : vector<192x128xf32> to vector<8x24x128xf32>
    %17 = vector.shape_cast %7 : vector<24x128xf32> to vector<1x24x128xf32>
    %18 = vector.shape_cast %12 : vector<8x128xf32> to vector<8x1x128xf32>
    %19 = vector.broadcast %17 : vector<1x24x128xf32> to vector<8x24x128xf32>
    %20 = vector.broadcast %18 : vector<8x1x128xf32> to vector<8x24x128xf32>
    %21 = arith.addf %19, %20 : vector<8x24x128xf32>
    %22 = arith.addf %21, %16 : vector<8x24x128xf32>
    %cst_15 = arith.constant 0.000000e+00 : f32
    %23 = vector.broadcast %cst_15 : f32 to vector<8x24x128xf32>
    %24 = arith.cmpf oge, %22, %23 : vector<8x24x128xf32>
    %cst_16 = arith.constant 2.000000e-01 : f32
    %25 = vector.broadcast %cst_16 : f32 to vector<8x24x128xf32>
    %26 = arith.mulf %25, %22 : vector<8x24x128xf32>
    %27 = arith.select %24, %22, %26 : vector<8x24x128xi1>, vector<8x24x128xf32>
    %c0_17 = arith.constant 0 : index
    %c0_18 = arith.constant 0 : index
    %28 = vector.load %arg3[%c0_17, %c0_18] : memref<8x24xf32, #tpu.memory_space<vmem>>, vector<8x24xf32>
    %cst_19 = arith.constant 0.000000e+00 : f32
    %29 = vector.broadcast %cst_19 : f32 to vector<8x24xf32>
    %30 = arith.cmpf ogt, %28, %29 : vector<8x24xf32>
    %c0_20 = arith.constant 0 : index
    %c0_21 = arith.constant 0 : index
    %31 = vector.load %arg8[%c0_20, %c0_21] : memref<4x32xf32, #tpu.memory_space<vmem>>, vector<4x32xf32>
    %32 = vector.extract_strided_slice %27 {offsets = [0, 0, 0], sizes = [8, 24, 32], strides = [1, 1, 1]} : vector<8x24x128xf32> to vector<8x24x32xf32>
    %33 = vector.extract_strided_slice %31 {offsets = [0, 0], sizes = [1, 32], strides = [1, 1]} : vector<4x32xf32> to vector<1x32xf32>
    %34 = vector.shape_cast %33 : vector<1x32xf32> to vector<32xf32>
    %35 = vector.shape_cast %34 : vector<32xf32> to vector<1x1x32xf32>
    %36 = vector.broadcast %35 : vector<1x1x32xf32> to vector<8x24x32xf32>
    %37 = arith.mulf %32, %36 : vector<8x24x32xf32>
    %cst_22 = arith.constant dense<0.000000e+00> : vector<8x24xf32>
    %38 = vector.multi_reduction <add>, %37, %cst_22 [2] : vector<8x24x32xf32> to vector<8x24xf32>
    %cst_23 = arith.constant -1.000000e+30 : f32
    %39 = vector.broadcast %cst_23 : f32 to vector<8x24xf32>
    %40 = arith.select %30, %38, %39 : vector<8x24xi1>, vector<8x24xf32>
    %cst_24 = arith.constant dense<0xFF800000> : vector<8xf32>
    %41 = vector.multi_reduction <maximumf>, %40, %cst_24 [1] : vector<8x24xf32> to vector<8xf32>
    %42 = vector.shape_cast %41 : vector<8xf32> to vector<8x1xf32>
    %43 = vector.broadcast %42 : vector<8x1xf32> to vector<8x24xf32>
    %44 = arith.subf %40, %43 : vector<8x24xf32>
    %45 = math.exp %44 : vector<8x24xf32>
    %cst_25 = arith.constant dense<0.000000e+00> : vector<8xf32>
    %46 = vector.multi_reduction <add>, %45, %cst_25 [1] : vector<8x24xf32> to vector<8xf32>
    %47 = vector.shape_cast %46 : vector<8xf32> to vector<8x1xf32>
    %48 = vector.broadcast %47 : vector<8x1xf32> to vector<8x24xf32>
    %49 = arith.divf %45, %48 : vector<8x24xf32>
    %50 = vector.extract_strided_slice %27 {offsets = [0, 0, 32], sizes = [8, 24, 32], strides = [1, 1, 1]} : vector<8x24x128xf32> to vector<8x24x32xf32>
    %51 = vector.extract_strided_slice %31 {offsets = [1, 0], sizes = [1, 32], strides = [1, 1]} : vector<4x32xf32> to vector<1x32xf32>
    %52 = vector.shape_cast %51 : vector<1x32xf32> to vector<32xf32>
    %53 = vector.shape_cast %52 : vector<32xf32> to vector<1x1x32xf32>
    %54 = vector.broadcast %53 : vector<1x1x32xf32> to vector<8x24x32xf32>
    %55 = arith.mulf %50, %54 : vector<8x24x32xf32>
    %cst_26 = arith.constant dense<0.000000e+00> : vector<8x24xf32>
    %56 = vector.multi_reduction <add>, %55, %cst_26 [2] : vector<8x24x32xf32> to vector<8x24xf32>
    %cst_27 = arith.constant -1.000000e+30 : f32
    %57 = vector.broadcast %cst_27 : f32 to vector<8x24xf32>
    %58 = arith.select %30, %56, %57 : vector<8x24xi1>, vector<8x24xf32>
    %cst_28 = arith.constant dense<0xFF800000> : vector<8xf32>
    %59 = vector.multi_reduction <maximumf>, %58, %cst_28 [1] : vector<8x24xf32> to vector<8xf32>
    %60 = vector.shape_cast %59 : vector<8xf32> to vector<8x1xf32>
    %61 = vector.broadcast %60 : vector<8x1xf32> to vector<8x24xf32>
    %62 = arith.subf %58, %61 : vector<8x24xf32>
    %63 = math.exp %62 : vector<8x24xf32>
    %cst_29 = arith.constant dense<0.000000e+00> : vector<8xf32>
    %64 = vector.multi_reduction <add>, %63, %cst_29 [1] : vector<8x24xf32> to vector<8xf32>
    %65 = vector.shape_cast %64 : vector<8xf32> to vector<8x1xf32>
    %66 = vector.broadcast %65 : vector<8x1xf32> to vector<8x24xf32>
    %67 = arith.divf %63, %66 : vector<8x24xf32>
    %68 = vector.extract_strided_slice %27 {offsets = [0, 0, 64], sizes = [8, 24, 32], strides = [1, 1, 1]} : vector<8x24x128xf32> to vector<8x24x32xf32>
    %69 = vector.extract_strided_slice %31 {offsets = [2, 0], sizes = [1, 32], strides = [1, 1]} : vector<4x32xf32> to vector<1x32xf32>
    %70 = vector.shape_cast %69 : vector<1x32xf32> to vector<32xf32>
    %71 = vector.shape_cast %70 : vector<32xf32> to vector<1x1x32xf32>
    %72 = vector.broadcast %71 : vector<1x1x32xf32> to vector<8x24x32xf32>
    %73 = arith.mulf %68, %72 : vector<8x24x32xf32>
    %cst_30 = arith.constant dense<0.000000e+00> : vector<8x24xf32>
    %74 = vector.multi_reduction <add>, %73, %cst_30 [2] : vector<8x24x32xf32> to vector<8x24xf32>
    %cst_31 = arith.constant -1.000000e+30 : f32
    %75 = vector.broadcast %cst_31 : f32 to vector<8x24xf32>
    %76 = arith.select %30, %74, %75 : vector<8x24xi1>, vector<8x24xf32>
    %cst_32 = arith.constant dense<0xFF800000> : vector<8xf32>
    %77 = vector.multi_reduction <maximumf>, %76, %cst_32 [1] : vector<8x24xf32> to vector<8xf32>
    %78 = vector.shape_cast %77 : vector<8xf32> to vector<8x1xf32>
    %79 = vector.broadcast %78 : vector<8x1xf32> to vector<8x24xf32>
    %80 = arith.subf %76, %79 : vector<8x24xf32>
    %81 = math.exp %80 : vector<8x24xf32>
    %cst_33 = arith.constant dense<0.000000e+00> : vector<8xf32>
    %82 = vector.multi_reduction <add>, %81, %cst_33 [1] : vector<8x24xf32> to vector<8xf32>
    %83 = vector.shape_cast %82 : vector<8xf32> to vector<8x1xf32>
    %84 = vector.broadcast %83 : vector<8x1xf32> to vector<8x24xf32>
    %85 = arith.divf %81, %84 : vector<8x24xf32>
    %86 = vector.extract_strided_slice %27 {offsets = [0, 0, 96], sizes = [8, 24, 32], strides = [1, 1, 1]} : vector<8x24x128xf32> to vector<8x24x32xf32>
    %87 = vector.extract_strided_slice %31 {offsets = [3, 0], sizes = [1, 32], strides = [1, 1]} : vector<4x32xf32> to vector<1x32xf32>
    %88 = vector.shape_cast %87 : vector<1x32xf32> to vector<32xf32>
    %89 = vector.shape_cast %88 : vector<32xf32> to vector<1x1x32xf32>
    %90 = vector.broadcast %89 : vector<1x1x32xf32> to vector<8x24x32xf32>
    %91 = arith.mulf %86, %90 : vector<8x24x32xf32>
    %cst_34 = arith.constant dense<0.000000e+00> : vector<8x24xf32>
    %92 = vector.multi_reduction <add>, %91, %cst_34 [2] : vector<8x24x32xf32> to vector<8x24xf32>
    %cst_35 = arith.constant -1.000000e+30 : f32
    %93 = vector.broadcast %cst_35 : f32 to vector<8x24xf32>
    %94 = arith.select %30, %92, %93 : vector<8x24xi1>, vector<8x24xf32>
    %cst_36 = arith.constant dense<0xFF800000> : vector<8xf32>
    %95 = vector.multi_reduction <maximumf>, %94, %cst_36 [1] : vector<8x24xf32> to vector<8xf32>
    %96 = vector.shape_cast %95 : vector<8xf32> to vector<8x1xf32>
    %97 = vector.broadcast %96 : vector<8x1xf32> to vector<8x24xf32>
    %98 = arith.subf %94, %97 : vector<8x24xf32>
    %99 = math.exp %98 : vector<8x24xf32>
    %cst_37 = arith.constant dense<0.000000e+00> : vector<8xf32>
    %100 = vector.multi_reduction <add>, %99, %cst_37 [1] : vector<8x24xf32> to vector<8xf32>
    %101 = vector.shape_cast %100 : vector<8xf32> to vector<8x1xf32>
    %102 = vector.broadcast %101 : vector<8x1xf32> to vector<8x24xf32>
    %103 = arith.divf %99, %102 : vector<8x24xf32>
    %104 = tpu.concatenate %49, %67, %85, %103 in 1 : vector<8x24xf32>, vector<8x24xf32>, vector<8x24xf32>, vector<8x24xf32> -> vector<8x96xf32>
    %105 = arith.truncf %104 : vector<8x96xf32> to vector<8x96xbf16>
    %106 = vector.extract_strided_slice %7 {offsets = [0, 0], sizes = [24, 32], strides = [1, 1]} : vector<24x128xf32> to vector<24x32xf32>
    %107 = vector.extract_strided_slice %7 {offsets = [0, 32], sizes = [24, 32], strides = [1, 1]} : vector<24x128xf32> to vector<24x32xf32>
    %108 = vector.extract_strided_slice %7 {offsets = [0, 64], sizes = [24, 32], strides = [1, 1]} : vector<24x128xf32> to vector<24x32xf32>
    %109 = vector.extract_strided_slice %7 {offsets = [0, 96], sizes = [24, 32], strides = [1, 1]} : vector<24x128xf32> to vector<24x32xf32>
    %110 = tpu.concatenate %106, %107, %108, %109 in 0 : vector<24x32xf32>, vector<24x32xf32>, vector<24x32xf32>, vector<24x32xf32> -> vector<96x32xf32>
    %111 = arith.truncf %110 : vector<96x32xf32> to vector<96x32xbf16>
    %cst_38 = arith.constant dense<0.000000e+00> : vector<8x32xf32>
    %112 = tpu.matmul %105, %111, %cst_38 {dimension_numbers = #tpu.dot_dimension_numbers<[1], [0], [0], [1], [0, 0, 1, 1], [], []>} : vector<8x96xbf16>, vector<96x32xbf16>, vector<8x32xf32> -> vector<8x32xf32>
    %cst_39 = arith.constant 2.500000e-01 : f32
    %113 = vector.broadcast %cst_39 : f32 to vector<8x32xf32>
    %114 = arith.mulf %112, %113 : vector<8x32xf32>
    %c0_40 = arith.constant 0 : index
    %c0_41 = arith.constant 0 : index
    %115 = vector.load %arg9[%c0_40, %c0_41] : memref<1x32xf32, #tpu.memory_space<vmem>>, vector<1x32xf32>
    %116 = vector.broadcast %115 : vector<1x32xf32> to vector<8x32xf32>
    %117 = arith.addf %114, %116 : vector<8x32xf32>
    %c0_42 = arith.constant 0 : index
    %c0_43 = arith.constant 0 : index
    %118 = vector.load %arg1[%c0_42, %c0_43] : memref<8x32xf32, #tpu.memory_space<vmem>>, vector<8x32xf32>
    %119 = arith.addf %117, %118 : vector<8x32xf32>
    %cst_44 = arith.constant dense<0.000000e+00> : vector<8xf32>
    %120 = vector.multi_reduction <add>, %119, %cst_44 [1] : vector<8x32xf32> to vector<8xf32>
    %121 = vector.shape_cast %120 : vector<8xf32> to vector<8x1xf32>
    %cst_45 = arith.constant 3.200000e+01 : f32
    %122 = vector.broadcast %cst_45 : f32 to vector<8x1xf32>
    %123 = arith.divf %121, %122 : vector<8x1xf32>
    %124 = vector.broadcast %123 : vector<8x1xf32> to vector<8x32xf32>
    %125 = arith.subf %119, %124 : vector<8x32xf32>
    %126 = arith.mulf %125, %125 : vector<8x32xf32>
    %cst_46 = arith.constant dense<0.000000e+00> : vector<8xf32>
    %127 = vector.multi_reduction <add>, %126, %cst_46 [1] : vector<8x32xf32> to vector<8xf32>
    %128 = vector.shape_cast %127 : vector<8xf32> to vector<8x1xf32>
    %cst_47 = arith.constant 3.200000e+01 : f32
    %129 = vector.broadcast %cst_47 : f32 to vector<8x1xf32>
    %130 = arith.divf %128, %129 : vector<8x1xf32>
    %131 = vector.broadcast %123 : vector<8x1xf32> to vector<8x32xf32>
    %132 = arith.subf %119, %131 : vector<8x32xf32>
    %cst_48 = arith.constant 9.99999974E-6 : f32
    %133 = vector.broadcast %cst_48 : f32 to vector<8x1xf32>
    %134 = arith.addf %130, %133 : vector<8x1xf32>
    %135 = math.rsqrt %134 : vector<8x1xf32>
    %136 = vector.broadcast %135 : vector<8x1xf32> to vector<8x32xf32>
    %137 = arith.mulf %132, %136 : vector<8x32xf32>
    %c0_49 = arith.constant 0 : index
    %c0_50 = arith.constant 0 : index
    %138 = vector.load %arg10[%c0_49, %c0_50] : memref<1x32xf32, #tpu.memory_space<vmem>>, vector<1x32xf32>
    %139 = vector.broadcast %138 : vector<1x32xf32> to vector<8x32xf32>
    %140 = arith.mulf %137, %139 : vector<8x32xf32>
    %c0_51 = arith.constant 0 : index
    %c0_52 = arith.constant 0 : index
    %141 = vector.load %arg11[%c0_51, %c0_52] : memref<1x32xf32, #tpu.memory_space<vmem>>, vector<1x32xf32>
    %142 = vector.broadcast %141 : vector<1x32xf32> to vector<8x32xf32>
    %143 = arith.addf %140, %142 : vector<8x32xf32>
    %cst_53 = arith.constant 0.000000e+00 : f32
    %144 = vector.broadcast %cst_53 : f32 to vector<8x32xf32>
    %145 = arith.maximumf %143, %144 : vector<8x32xf32>
    %c0_54 = arith.constant 0 : index
    %c0_55 = arith.constant 0 : index
    %146 = vector.load %arg12[%c0_54, %c0_55] : memref<8x32xf32, #tpu.memory_space<vmem>>, vector<8x32xf32>
    tpu.vector_store %arg12[%c0_54, %c0_55], %145 {strides = array<i32>} : memref<8x32xf32, #tpu.memory_space<vmem>>, vector<8x32xf32>,
    return
  }
  func.func @transform_0(%arg0: i32) -> (i32, i32) {
    %c0_i32 = arith.constant 0 : i32
    %c0_i32_0 = arith.constant 0 : i32
    return %arg0, %c0_i32 : i32, i32
  }
  func.func @transform_1(%arg0: i32) -> (i32, i32) {
    %c0_i32 = arith.constant 0 : i32
    %c0_i32_0 = arith.constant 0 : i32
    %c0_i32_1 = arith.constant 0 : i32
    return %c0_i32, %c0_i32_0 : i32, i32
  }
  func.func @transform_2(%arg0: i32) -> (i32, i32) {
    %c0_i32 = arith.constant 0 : i32
    %c0_i32_0 = arith.constant 0 : i32
    return %arg0, %c0_i32 : i32, i32
  }
  func.func @transform_3(%arg0: i32) -> (i32, i32) {
    %c0_i32 = arith.constant 0 : i32
    %c0_i32_0 = arith.constant 0 : i32
    return %arg0, %c0_i32 : i32, i32
  }
  func.func @transform_4(%arg0: i32) -> (i32, i32) {
    %c0_i32 = arith.constant 0 : i32
    %c0_i32_0 = arith.constant 0 : i32
    %c0_i32_1 = arith.constant 0 : i32
    return %c0_i32, %c0_i32_0 : i32, i32
  }
  func.func @transform_5(%arg0: i32) -> (i32, i32) {
    %c0_i32 = arith.constant 0 : i32
    %c0_i32_0 = arith.constant 0 : i32
    %c0_i32_1 = arith.constant 0 : i32
    return %c0_i32, %c0_i32_0 : i32, i32
  }
  func.func @transform_6(%arg0: i32) -> (i32, i32) {
    %c0_i32 = arith.constant 0 : i32
    %c0_i32_0 = arith.constant 0 : i32
    %c0_i32_1 = arith.constant 0 : i32
    return %c0_i32, %c0_i32_0 : i32, i32
  }
  func.func @transform_7(%arg0: i32) -> (i32, i32) {
    %c0_i32 = arith.constant 0 : i32
    %c0_i32_0 = arith.constant 0 : i32
    %c0_i32_1 = arith.constant 0 : i32
    return %c0_i32, %c0_i32_0 : i32, i32
  }
  func.func @transform_8(%arg0: i32) -> (i32, i32) {
    %c0_i32 = arith.constant 0 : i32
    %c0_i32_0 = arith.constant 0 : i32
    %c0_i32_1 = arith.constant 0 : i32
    return %c0_i32, %c0_i32_0 : i32, i32
  }
  func.func @transform_9(%arg0: i32) -> (i32, i32) {
    %c0_i32 = arith.constant 0 : i32
    %c0_i32_0 = arith.constant 0 : i32
    %c0_i32_1 = arith.constant 0 : i32
    return %c0_i32, %c0_i32_0 : i32, i32
  }
  func.func @transform_10(%arg0: i32) -> (i32, i32) {
    %c0_i32 = arith.constant 0 : i32
    %c0_i32_0 = arith.constant 0 : i32
    %c0_i32_1 = arith.constant 0 : i32
    return %c0_i32, %c0_i32_0 : i32, i32
  }
  func.func @transform_11(%arg0: i32) -> (i32, i32) {
    %c0_i32 = arith.constant 0 : i32
    %c0_i32_0 = arith.constant 0 : i32
    return %arg0, %c0_i32 : i32, i32
  }
}

module attributes {stable_mosaic.version = 11 : i64} {
  func.func @_out_linear_kernel(%arg0: memref<16x64xf32, #tpu.memory_space<vmem>>, %arg1: memref<64x128xf32, #tpu.memory_space<vmem>>, %arg2: memref<1x128xf32, #tpu.memory_space<vmem>>, %arg3: memref<16x128xf32, #tpu.memory_space<vmem>>) attributes {dimension_semantics = [], scalar_prefetch = 0 : i64, scratch_operands = 0 : i64, tpu.core_type = #tpu.core_type<tc>} {
    %c0 = arith.constant 0 : index
    %c0_0 = arith.constant 0 : index
    %0 = vector.load %arg0[%c0, %c0_0] : memref<16x64xf32, #tpu.memory_space<vmem>>, vector<16x64xf32>
    %c0_1 = arith.constant 0 : index
    %c0_2 = arith.constant 0 : index
    %1 = vector.load %arg1[%c0_1, %c0_2] : memref<64x128xf32, #tpu.memory_space<vmem>>, vector<64x128xf32>
    %cst = arith.constant dense<0.000000e+00> : vector<16x128xf32>
    %2 = tpu.matmul %0, %1, %cst {dimension_numbers = #tpu.dot_dimension_numbers<[1], [0], [0], [1], [0, 0, 1, 1], [], []>} : vector<16x64xf32>, vector<64x128xf32>, vector<16x128xf32> -> vector<16x128xf32>
    %c0_3 = arith.constant 0 : index
    %c0_4 = arith.constant 0 : index
    %3 = vector.load %arg2[%c0_3, %c0_4] : memref<1x128xf32, #tpu.memory_space<vmem>>, vector<1x128xf32>
    %4 = vector.broadcast %3 : vector<1x128xf32> to vector<16x128xf32>
    %5 = arith.addf %2, %4 : vector<16x128xf32>
    %c0_5 = arith.constant 0 : index
    %c0_6 = arith.constant 0 : index
    %6 = vector.load %arg3[%c0_5, %c0_6] : memref<16x128xf32, #tpu.memory_space<vmem>>, vector<16x128xf32>
    tpu.vector_store %arg3[%c0_5, %c0_6], %5 {strides = array<i32>} : memref<16x128xf32, #tpu.memory_space<vmem>>, vector<16x128xf32>,
    return
  }
}

</mosaic_0001>

<llo_original>
// kernel: protein_ligand_gnn_forward.4
$region0: #{protein_ligand_gnn_forward.4}
  #allocation0 [shape = 'u32[]', space=smem, size = 0x4, offset = 0x4, fixed_abs, tag = 'smem constant byte address 0x4 - core index']
  #allocation1 [shape = 'u32[144,128]{1,0:T(1,128)}', space=vmem, size = 0x12000, scoped, tag = 'internal scratch']
  %s0 = inlined_call_operand.vmem [shape: f32[16,16], index: 0, kind: input, shape index: {}]
  %s1 = inlined_call_operand.vmem [shape: f32[8,8], index: 1, kind: input, shape index: {}]
  %s2 = inlined_call_operand.vmem [shape: f32[48,4], index: 2, kind: input, shape index: {}]
  %s3 = inlined_call_operand.vmem [shape: f32[16,32], index: 3, kind: input, shape index: {}]
  %s4 = inlined_call_operand.vmem [shape: f32[1,32], index: 4, kind: input, shape index: {}]
  %s5 = inlined_call_operand.vmem [shape: f32[8,32], index: 5, kind: input, shape index: {}]
  %s6 = inlined_call_operand.vmem [shape: f32[1,32], index: 6, kind: input, shape index: {}]
  %s7 = inlined_call_operand.vmem [shape: f32[4,32], index: 7, kind: input, shape index: {}]
  %s8 = inlined_call_operand.vmem [shape: f32[1,32], index: 8, kind: input, shape index: {}]
  %s9 = inlined_call_operand.vmem [shape: f32[16,32], index: 9, kind: output, shape index: {0}]
  %s10 = inlined_call_operand.vmem [shape: f32[8,32], index: 10, kind: output, shape index: {1}]
  %s11 = inlined_call_operand.vmem [shape: f32[48,32], index: 11, kind: output, shape index: {2}]
  %12 = xla_tuple %s9, %s10, %s11
  %s13 = sld [smem:[#allocation0]]
  $region62: #{protein_ligand_gnn_forward.4} parent=0
    _
  %s15 = ssub.s32 1, %s13
  %s16 = scalar_select 0, %s15, %s13
  // Predicated region
  $region2: #{protein_ligand_gnn_forward.4} parent=0 // pred_check
    _
  $region3: #{protein_ligand_gnn_forward.4} parent=0 // pred_check_branch
    %18 = sbr.rel (0) target = $region5
  $region4: #{protein_ligand_gnn_forward.4} parent=0 // pred_region
    _
  $region5: #{protein_ligand_gnn_forward.4} parent=0 // pred_fallthru
    _
  // Predicated region
  $region6: #{protein_ligand_gnn_forward.4} parent=0 // pred_check
    _
  $region7: #{protein_ligand_gnn_forward.4} parent=0 // pred_check_branch
    %20 = sbr.rel (0) target = $region9
  $region8: #{protein_ligand_gnn_forward.4} parent=0 // pred_region
    _
  $region9: #{protein_ligand_gnn_forward.4} parent=0 // pred_fallthru
    _
  // Predicated region
  $region10: #{protein_ligand_gnn_forward.4} parent=0 // pred_check
    _
  $region11: #{protein_ligand_gnn_forward.4} parent=0 // pred_check_branch
    %22 = sbr.rel (0) target = $region13
  $region12: #{protein_ligand_gnn_forward.4} parent=0 // pred_region
    _
  $region13: #{protein_ligand_gnn_forward.4} parent=0 // pred_fallthru
    _
  // Predicated region
  $region14: #{protein_ligand_gnn_forward.4} parent=0 // pred_check
    _
  $region15: #{protein_ligand_gnn_forward.4} parent=0 // pred_check_branch
    %24 = sbr.rel (0) target = $region17
  $region16: #{protein_ligand_gnn_forward.4} parent=0 // pred_region
    _
  $region17: #{protein_ligand_gnn_forward.4} parent=0 // pred_fallthru
    _
  // Predicated region
  $region18: #{protein_ligand_gnn_forward.4} parent=0 // pred_check
    _
  $region19: #{protein_ligand_gnn_forward.4} parent=0 // pred_check_branch
    %26 = sbr.rel (0) target = $region21
  $region20: #{protein_ligand_gnn_forward.4} parent=0 // pred_region
    _
  $region21: #{protein_ligand_gnn_forward.4} parent=0 // pred_fallthru
    _
  // Predicated region
  $region22: #{protein_ligand_gnn_forward.4} parent=0 // pred_check
    _
  $region23: #{protein_ligand_gnn_forward.4} parent=0 // pred_check_branch
    %28 = sbr.rel (0) target = $region25
  $region24: #{protein_ligand_gnn_forward.4} parent=0 // pred_region
    _
  $region25: #{protein_ligand_gnn_forward.4} parent=0 // pred_fallthru
    _
  // Predicated region
  $region26: #{protein_ligand_gnn_forward.4} parent=0 // pred_check
    _
  $region27: #{protein_ligand_gnn_forward.4} parent=0 // pred_check_branch
    %30 = sbr.rel (0) target = $region29
  $region28: #{protein_ligand_gnn_forward.4} parent=0 // pred_region
    _
  $region29: #{protein_ligand_gnn_forward.4} parent=0 // pred_fallthru
    _
  // Predicated region
  $region30: #{protein_ligand_gnn_forward.4} parent=0 // pred_check
    _
  $region31: #{protein_ligand_gnn_forward.4} parent=0 // pred_check_branch
    %32 = sbr.rel (0) target = $region33
  $region32: #{protein_ligand_gnn_forward.4} parent=0 // pred_region
    _
  $region33: #{protein_ligand_gnn_forward.4} parent=0 // pred_fallthru
    _
  // Predicated region
  $region34: #{protein_ligand_gnn_forward.4} parent=0 // pred_check
    _
  $region35: #{protein_ligand_gnn_forward.4} parent=0 // pred_check_branch
    %34 = sbr.rel (0) target = $region37
  $region36: #{protein_ligand_gnn_forward.4} parent=0 // pred_region
    _
  $region37: #{protein_ligand_gnn_forward.4} parent=0 // pred_fallthru
    _
  %v35 = vld [vmem:[%s0] sm:$0xff]
  %v36 = vld [vmem:[%s0 + $0x8] sm:$0xff]
  %v37 = vld [vmem:[%s3] sm:$0xff]
  %v38 = vld [vmem:[%s3 + $0x8] sm:$0xff]
  %v39 = vld [vmem:[%s4] sm:$0x1]
  %v41 = vlaneseq
  %v42 = vshrl.u32 %v41, 7
  %v43 = vsub.s32 0, %v42
  %v44 = vrot.slane %v39, %v43
  %vm46 = vcmask 130048
  %v48 = vsel %vm46, %v35, 0
  %v51 = vsel %vm46, %v36, 0
  %53 = vmatprep.subr.mxu0 0.0
  %54 = vmatpush1.msra.mxu0 0.0
  %55 = vmatprep.subr.mxu0 0.0
  %56 = vmatpush1.msra.mxu0 0.0
  %57 = vmatprep.subr.mxu0 0.0
  %58 = vmatpush1.msra.mxu0 0.0
  %59 = vmatprep.subr.mxu0 0.0
  %60 = vmatpush1.msra.mxu0 0.0
  %61 = vmatprep.subr.mxu0 0.0
  %62 = vmatpush1.msra.mxu0 0.0
  %63 = vmatprep.subr.mxu0 0.0
  %64 = vmatpush1.msra.mxu0 0.0
  %65 = vmatprep.subr.mxu0 0.0
  %66 = vmatpush1.msra.mxu0 0.0
  %67 = vmatprep.subr.mxu0 0.0
  %68 = vmatpush1.msra.mxu0 0.0
  %69 = vmatprep.subr.mxu0 0.0
  %70 = vmatpush1.msra.mxu0 0.0
  %71 = vmatprep.subr.mxu0 0.0
  %72 = vmatpush1.msra.mxu0 0.0
  %73 = vmatprep.subr.mxu0 0.0
  %74 = vmatpush1.msra.mxu0 0.0
  %75 = vmatprep.subr.mxu0 0.0
  %76 = vmatpush1.msra.mxu0 0.0
  %77 = vmatprep.subr.mxu0 0.0
  %78 = vmatpush1.msra.mxu0 0.0
  %79 = vmatprep.subr.mxu0 0.0
  %80 = vmatpush1.msra.mxu0 0.0
  %81 = vmatprep.subr.mxu0 0.0
  %82 = vmatpush1.msra.mxu0 %v38
  %83 = vmatprep.subr.mxu0 0.0
  %84 = vmatpush1.msra.mxu0 %v37
  %85 = vmatprep.subr.mxu0 0.0
  %86 = vmatpush2.msra.mxu0 0.0
  %87 = vmatprep.subr.mxu0 0.0
  %88 = vmatpush2.msra.mxu0 0.0
  %89 = vmatprep.subr.mxu0 0.0
  %90 = vmatpush2.msra.mxu0 0.0
  %91 = vmatprep.subr.mxu0 0.0
  %92 = vmatpush2.msra.mxu0 0.0
  %93 = vmatprep.subr.mxu0 0.0
  %94 = vmatpush2.msra.mxu0 0.0
  %95 = vmatprep.subr.mxu0 0.0
  %96 = vmatpush2.msra.mxu0 0.0
  %97 = vmatprep.subr.mxu0 0.0
  %98 = vmatpush2.msra.mxu0 0.0
  %99 = vmatprep.subr.mxu0 0.0
  %100 = vmatpush2.msra.mxu0 0.0
  %101 = vmatprep.subr.mxu0 0.0
  %102 = vmatpush2.msra.mxu0 0.0
  %103 = vmatprep.subr.mxu0 0.0
  %104 = vmatpush2.msra.mxu0 0.0
  %105 = vmatprep.subr.mxu0 0.0
  %106 = vmatpush2.msra.mxu0 0.0
  %107 = vmatprep.subr.mxu0 0.0
  %108 = vmatpush2.msra.mxu0 0.0
  %109 = vmatprep.subr.mxu0 0.0
  %110 = vmatpush2.msra.mxu0 0.0
  %111 = vmatprep.subr.mxu0 0.0
  %112 = vmatpush2.msra.mxu0 0.0
  %113 = vmatprep.subr.mxu0 0.0
  %114 = vmatpush2.msra.mxu0 0.0
  %115 = vmatprep.subr.mxu0 0.0
  %116 = vmatpush2.msra.mxu0 0.0
  %117 = vmatprep.mubr.f32.mxu0 0.0
  %118 = vmatmul.mubr.f32.gmra.mxu0 %v48
  %v119 = vpop.f32.mrf.mxu0
  %v120 = vadd.f32 %v44, %v119
  %v121 = vpop.f32.mrf.mxu0
  %122 = vmatprep.mubr.f32.mxu0 0.0
  %123 = vmatmul.mubr.f32.gmra.mxu0 %v51
  %v124 = vpop.f32.mrf.mxu0
  %v125 = vadd.f32 %v44, %v124
  %v126 = vpop.f32.mrf.mxu0
  %127 = vdwg.mxu0
  %vm128 = vcmask 261120
  %129 = vst.msk [vmem:[%s9] sm:$0xff] %vm128, %v120
  %130 = vst.msk [vmem:[%s9 + $0x8] sm:$0xff] %vm128, %v125
  %v131 = vld [vmem:[%s1] sm:$0xff]
  %v132 = vld [vmem:[%s5] sm:$0xff]
  %v133 = vld [vmem:[%s6] sm:$0x1]
  %v135 = vlaneseq
  %v136 = vshrl.u32 %v135, 7
  %v137 = vsub.s32 0, %v136
  %v138 = vrot.slane %v133, %v137
  %vm140 = vcmask 64512
  %v142 = vsel %vm140, %v131, 0
  %144 = vmatprep.subr.mxu0 0.0
  %145 = vmatpush1.msra.mxu0 0.0
  %146 = vmatprep.subr.mxu0 0.0
  %147 = vmatpush1.msra.mxu0 0.0
  %148 = vmatprep.subr.mxu0 0.0
  %149 = vmatpush1.msra.mxu0 0.0
  %150 = vmatprep.subr.mxu0 0.0
  %151 = vmatpush1.msra.mxu0 0.0
  %152 = vmatprep.subr.mxu0 0.0
  %153 = vmatpush1.msra.mxu0 0.0
  %154 = vmatprep.subr.mxu0 0.0
  %155 = vmatpush1.msra.mxu0 0.0
  %156 = vmatprep.subr.mxu0 0.0
  %157 = vmatpush1.msra.mxu0 0.0
  %158 = vmatprep.subr.mxu0 0.0
  %159 = vmatpush1.msra.mxu0 0.0
  %160 = vmatprep.subr.mxu0 0.0
  %161 = vmatpush1.msra.mxu0 0.0
  %162 = vmatprep.subr.mxu0 0.0
  %163 = vmatpush1.msra.mxu0 0.0
  %164 = vmatprep.subr.mxu0 0.0
  %165 = vmatpush1.msra.mxu0 0.0
  %166 = vmatprep.subr.mxu0 0.0
  %167 = vmatpush1.msra.mxu0 0.0
  %168 = vmatprep.subr.mxu0 0.0
  %169 = vmatpush1.msra.mxu0 0.0
  %170 = vmatprep.subr.mxu0 0.0
  %171 = vmatpush1.msra.mxu0 0.0
  %172 = vmatprep.subr.mxu0 0.0
  %173 = vmatpush1.msra.mxu0 0.0
  %174 = vmatprep.subr.mxu0 0.0
  %175 = vmatpush1.msra.mxu0 %v132
  %176 = vmatprep.subr.mxu0 0.0
  %177 = vmatpush2.msra.mxu0 0.0
  %178 = vmatprep.subr.mxu0 0.0
  %179 = vmatpush2.msra.mxu0 0.0
  %180 = vmatprep.subr.mxu0 0.0
  %181 = vmatpush2.msra.mxu0 0.0
  %182 = vmatprep.subr.mxu0 0.0
  %183 = vmatpush2.msra.mxu0 0.0
  %184 = vmatprep.subr.mxu0 0.0
  %185 = vmatpush2.msra.mxu0 0.0
  %186 = vmatprep.subr.mxu0 0.0
  %187 = vmatpush2.msra.mxu0 0.0
  %188 = vmatprep.subr.mxu0 0.0
  %189 = vmatpush2.msra.mxu0 0.0
  %190 = vmatprep.subr.mxu0 0.0
  %191 = vmatpush2.msra.mxu0 0.0
  %192 = vmatprep.subr.mxu0 0.0
  %193 = vmatpush2.msra.mxu0 0.0
  %194 = vmatprep.subr.mxu0 0.0
  %195 = vmatpush2.msra.mxu0 0.0
  %196 = vmatprep.subr.mxu0 0.0
  %197 = vmatpush2.msra.mxu0 0.0
  %198 = vmatprep.subr.mxu0 0.0
  %199 = vmatpush2.msra.mxu0 0.0
  %200 = vmatprep.subr.mxu0 0.0
  %201 = vmatpush2.msra.mxu0 0.0
  %202 = vmatprep.subr.mxu0 0.0
  %203 = vmatpush2.msra.mxu0 0.0
  %204 = vmatprep.subr.mxu0 0.0
  %205 = vmatpush2.msra.mxu0 0.0
  %206 = vmatprep.subr.mxu0 0.0
  %207 = vmatpush2.msra.mxu0 0.0
  %208 = vmatprep.mubr.f32.mxu0 0.0
  %209 = vmatmul.mubr.f32.gmra.mxu0 %v142
  %v210 = vpop.f32.mrf.mxu0
  %v211 = vadd.f32 %v138, %v210
  %v212 = vpop.f32.mrf.mxu0
  %213 = vdwg.mxu0
  %214 = vst.msk [vmem:[%s10] sm:$0xff] %vm128, %v211
  %v215 = vld [vmem:[%s2] sm:$0xff]
  %v216 = vld [vmem:[%s2 + $0x8] sm:$0xff]
  %v217 = vld [vmem:[%s2 + $0x10] sm:$0xff]
  %v218 = vld [vmem:[%s2 + $0x18] sm:$0xff]
  %v219 = vld [vmem:[%s2 + $0x20] sm:$0xff]
  %v220 = vld [vmem:[%s2 + $0x28] sm:$0xff]
  %v221 = vld [vmem:[%s7] sm:$0xf]
  %v222 = vld [vmem:[%s8] sm:$0x1]
  %v224 = vlaneseq
  %v225 = vshrl.u32 %v224, 7
  %v226 = vsub.s32 0, %v225
  %v227 = vrot.slane %v222, %v226
  %vm229 = vcmask 31744
  %v231 = vsel %vm229, %v215, 0
  %v234 = vsel %vm229, %v216, 0
  %v237 = vsel %vm229, %v217, 0
  %v240 = vsel %vm229, %v218, 0
  %v243 = vsel %vm229, %v219, 0
  %v246 = vsel %vm229, %v220, 0
  %vm248 = vcmask 1043456
  %v250 = vsel %vm248, %v221, 0
  %252 = vmatprep.subr.mxu0 0.0
  %253 = vmatpush1.msra.mxu0 0.0
  %254 = vmatprep.subr.mxu0 0.0
  %255 = vmatpush1.msra.mxu0 0.0
  %256 = vmatprep.subr.mxu0 0.0
  %257 = vmatpush1.msra.mxu0 0.0
  %258 = vmatprep.subr.mxu0 0.0
  %259 = vmatpush1.msra.mxu0 0.0
  %260 = vmatprep.subr.mxu0 0.0
  %261 = vmatpush1.msra.mxu0 0.0
  %262 = vmatprep.subr.mxu0 0.0
  %263 = vmatpush1.msra.mxu0 0.0
  %264 = vmatprep.subr.mxu0 0.0
  %265 = vmatpush1.msra.mxu0 0.0
  %266 = vmatprep.subr.mxu0 0.0
  %267 = vmatpush1.msra.mxu0 0.0
  %268 = vmatprep.subr.mxu0 0.0
  %269 = vmatpush1.msra.mxu0 0.0
  %270 = vmatprep.subr.mxu0 0.0
  %271 = vmatpush1.msra.mxu0 0.0
  %272 = vmatprep.subr.mxu0 0.0
  %273 = vmatpush1.msra.mxu0 0.0
  %274 = vmatprep.subr.mxu0 0.0
  %275 = vmatpush1.msra.mxu0 0.0
  %276 = vmatprep.subr.mxu0 0.0
  %277 = vmatpush1.msra.mxu0 0.0
  %278 = vmatprep.subr.mxu0 0.0
  %279 = vmatpush1.msra.mxu0 0.0
  %280 = vmatprep.subr.mxu0 0.0
  %281 = vmatpush1.msra.mxu0 0.0
  %282 = vmatprep.subr.mxu0 0.0
  %283 = vmatpush1.msra.mxu0 %v250
  %284 = vmatprep.subr.mxu0 0.0
  %285 = vmatpush2.msra.mxu0 0.0
  %286 = vmatprep.subr.mxu0 0.0
  %287 = vmatpush2.msra.mxu0 0.0
  %288 = vmatprep.subr.mxu0 0.0
  %289 = vmatpush2.msra.mxu0 0.0
  %290 = vmatprep.subr.mxu0 0.0
  %291 = vmatpush2.msra.mxu0 0.0
  %292 = vmatprep.subr.mxu0 0.0
  %293 = vmatpush2.msra.mxu0 0.0
  %294 = vmatprep.subr.mxu0 0.0
  %295 = vmatpush2.msra.mxu0 0.0
  %296 = vmatprep.subr.mxu0 0.0
  %297 = vmatpush2.msra.mxu0 0.0
  %298 = vmatprep.subr.mxu0 0.0
  %299 = vmatpush2.msra.mxu0 0.0
  %300 = vmatprep.subr.mxu0 0.0
  %301 = vmatpush2.msra.mxu0 0.0
  %302 = vmatprep.subr.mxu0 0.0
  %303 = vmatpush2.msra.mxu0 0.0
  %304 = vmatprep.subr.mxu0 0.0
  %305 = vmatpush2.msra.mxu0 0.0
  %306 = vmatprep.subr.mxu0 0.0
  %307 = vmatpush2.msra.mxu0 0.0
  %308 = vmatprep.subr.mxu0 0.0
  %309 = vmatpush2.msra.mxu0 0.0
  %310 = vmatprep.subr.mxu0 0.0
  %311 = vmatpush2.msra.mxu0 0.0
  %312 = vmatprep.subr.mxu0 0.0
  %313 = vmatpush2.msra.mxu0 0.0
  %314 = vmatprep.subr.mxu0 0.0
  %315 = vmatpush2.msra.mxu0 0.0
  %316 = vmatprep.mubr.f32.mxu0 0.0
  %317 = vmatmul.mubr.f32.gmra.mxu0 %v231
  %v318 = vpop.f32.mrf.mxu0
  %v319 = vadd.f32 %v227, %v318
  %v320 = vpop.f32.mrf.mxu0
  %321 = vmatprep.mubr.f32.mxu0 0.0
  %322 = vmatmul.mubr.f32.gmra.mxu0 %v234
  %v323 = vpop.f32.mrf.mxu0
  %v324 = vadd.f32 %v227, %v323
  %v325 = vpop.f32.mrf.mxu0
  %326 = vmatprep.mubr.f32.mxu0 0.0
  %327 = vmatmul.mubr.f32.gmra.mxu0 %v237
  %v328 = vpop.f32.mrf.mxu0
  %v329 = vadd.f32 %v227, %v328
  %v330 = vpop.f32.mrf.mxu0
  %331 = vmatprep.mubr.f32.mxu0 0.0
  %332 = vmatmul.mubr.f32.gmra.mxu0 %v240
  %v333 = vpop.f32.mrf.mxu0
  %v334 = vadd.f32 %v227, %v333
  %v335 = vpop.f32.mrf.mxu0
  %336 = vmatprep.mubr.f32.mxu0 0.0
  %337 = vmatmul.mubr.f32.gmra.mxu0 %v243
  %v338 = vpop.f32.mrf.mxu0
  %v339 = vadd.f32 %v227, %v338
  %v340 = vpop.f32.mrf.mxu0
  %341 = vmatprep.mubr.f32.mxu0 0.0
  %342 = vmatmul.mubr.f32.gmra.mxu0 %v246
  %v343 = vpop.f32.mrf.mxu0
  %v344 = vadd.f32 %v227, %v343
  %v345 = vpop.f32.mrf.mxu0
  %346 = vdwg.mxu0
  %347 = vst.msk [vmem:[%s11] sm:$0xff] %vm128, %v319
  %348 = vst.msk [vmem:[%s11 + $0x8] sm:$0xff] %vm128, %v324
  %349 = vst.msk [vmem:[%s11 + $0x10] sm:$0xff] %vm128, %v329
  %350 = vst.msk [vmem:[%s11 + $0x18] sm:$0xff] %vm128, %v334
  %351 = vst.msk [vmem:[%s11 + $0x20] sm:$0xff] %vm128, %v339
  %352 = vst.msk [vmem:[%s11 + $0x28] sm:$0xff] %vm128, %v344
  // Predicated region
  $region38: #{protein_ligand_gnn_forward.4} parent=0 // pred_check
    _
  $region39: #{protein_ligand_gnn_forward.4} parent=0 // pred_check_branch
    %354 = sbr.rel (0) target = $region41
  $region40: #{protein_ligand_gnn_forward.4} parent=0 // pred_region
    _
  $region41: #{protein_ligand_gnn_forward.4} parent=0 // pred_fallthru
    _
  // Predicated region
  $region42: #{protein_ligand_gnn_forward.4} parent=0 // pred_check
    _
  $region43: #{protein_ligand_gnn_forward.4} parent=0 // pred_check_branch
    %356 = sbr.rel (0) target = $region45
  $region44: #{protein_ligand_gnn_forward.4} parent=0 // pred_region
    _
  $region45: #{protein_ligand_gnn_forward.4} parent=0 // pred_fallthru
    _
  // Predicated region
  $region46: #{protein_ligand_gnn_forward.4} parent=0 // pred_check
    _
  $region47: #{protein_ligand_gnn_forward.4} parent=0 // pred_check_branch
    %358 = sbr.rel (0) target = $region49
  $region48: #{protein_ligand_gnn_forward.4} parent=0 // pred_region
    _
  $region49: #{protein_ligand_gnn_forward.4} parent=0 // pred_fallthru
    _
  // Predicated region
  $region50: #{protein_ligand_gnn_forward.4} parent=0 // pred_check
    _
  $region51: #{protein_ligand_gnn_forward.4} parent=0 // pred_check_branch
    %360 = sbr.rel (0) target = $region53
  $region52: #{protein_ligand_gnn_forward.4} parent=0 // pred_region
    _
  $region53: #{protein_ligand_gnn_forward.4} parent=0 // pred_fallthru
    _
  // Predicated region
  $region54: #{protein_ligand_gnn_forward.4} parent=0 // pred_check
    _
  $region55: #{protein_ligand_gnn_forward.4} parent=0 // pred_check_branch
    %362 = sbr.rel (0) target = $region57
  $region56: #{protein_ligand_gnn_forward.4} parent=0 // pred_region
    _
  $region57: #{protein_ligand_gnn_forward.4} parent=0 // pred_fallthru
    _
  // Predicated region
  $region58: #{protein_ligand_gnn_forward.4} parent=0 // pred_check
    _
  $region59: #{protein_ligand_gnn_forward.4} parent=0 // pred_check_branch
    %364 = sbr.rel (0) target = $region61
  $region60: #{protein_ligand_gnn_forward.4} parent=0 // pred_region
    _
  $region61: #{protein_ligand_gnn_forward.4} parent=0 // pred_fallthru
    _

// kernel: protein_ligand_gnn_forward.7
$region0: #{protein_ligand_gnn_forward.7}
  #allocation0 [shape = 'u32[]', space=smem, size = 0x4, offset = 0x4, fixed_abs, tag = 'smem constant byte address 0x4 - core index']
  #allocation1 [shape = 'u32[144,128]{1,0:T(1,128)}', space=vmem, size = 0x12000, scoped, tag = 'internal scratch']
  %s0 = inlined_call_operand.vmem [shape: f32[16,64], index: 0, kind: input, shape index: {}]
  %s1 = inlined_call_operand.vmem [shape: f32[64,128], index: 1, kind: input, shape index: {}]
  %s2 = inlined_call_operand.vmem [shape: f32[1,128], index: 2, kind: input, shape index: {}]
  %s3 = inlined_call_operand.hbm [shape: f32[16,128], index: 3, kind: output, shape index: {}]
  %s4 = sld [smem:[#allocation0]]
  $region22: #{protein_ligand_gnn_forward.7} parent=0
    _
  %s6 = ssub.s32 1, %s4
  %s7 = scalar_select 0, %s6, %s4
  $region1: #{protein_ligand_gnn_forward.7} parent=0
    #allocation2 [shape = 'u8[8192]{0}', space=vmem, size = 0x2000, scoped, tag = 'output window, operand 0, single buffered']
    #allocation3 [shape = 's32[1]{0}', space=sflag, size = 0x4, scoped, tag = 'scoped memory for protein_ligand_gnn_forward.7']
    %8 = vsyncpa [#allocation3], 0
    // Predicated region
    $region2: #{protein_ligand_gnn_forward.7} parent=1 // pred_check
      _
    $region3: #{protein_ligand_gnn_forward.7} parent=1 // pred_check_branch
      %10 = sbr.rel (0) target = $region5
    $region4: #{protein_ligand_gnn_forward.7} parent=1 // pred_region
      _
    $region5: #{protein_ligand_gnn_forward.7} parent=1 // pred_fallthru
      _
    // Predicated region
    $region6: #{protein_ligand_gnn_forward.7} parent=1 // pred_check
      _
    $region7: #{protein_ligand_gnn_forward.7} parent=1 // pred_check_branch
      %12 = sbr.rel (0) target = $region9
    $region8: #{protein_ligand_gnn_forward.7} parent=1 // pred_region
      _
    $region9: #{protein_ligand_gnn_forward.7} parent=1 // pred_fallthru
      _
    // Predicated region
    $region10: #{protein_ligand_gnn_forward.7} parent=1 // pred_check
      _
    $region11: #{protein_ligand_gnn_forward.7} parent=1 // pred_check_branch
      %14 = sbr.rel (0) target = $region13
    $region12: #{protein_ligand_gnn_forward.7} parent=1 // pred_region
      _
    $region13: #{protein_ligand_gnn_forward.7} parent=1 // pred_fallthru
      _
    %v15 = vld [vmem:[%s0] sm:$0xff]
    %v16 = vld [vmem:[%s0 + $0x8] sm:$0xff]
    %v17 = vld [vmem:[%s1] sm:$0xff]
    %v18 = vld [vmem:[%s1 + $0x8] sm:$0xff]
    %v19 = vld [vmem:[%s1 + $0x10] sm:$0xff]
    %v20 = vld [vmem:[%s1 + $0x18] sm:$0xff]
    %v21 = vld [vmem:[%s1 + $0x20] sm:$0xff]
    %v22 = vld [vmem:[%s1 + $0x28] sm:$0xff]
    %v23 = vld [vmem:[%s1 + $0x30] sm:$0xff]
    %v24 = vld [vmem:[%s1 + $0x38] sm:$0xff]
    %v25 = vld [vmem:[%s2] sm:$0x1]
    %v27 = vlaneseq
    %v28 = vshrl.u32 %v27, 7
    %v29 = vsub.s32 0, %v28
    %v30 = vrot.slane %v25, %v29
    %vm32 = vcmask 523264
    %v34 = vsel %vm32, %v15, 0
    %v37 = vsel %vm32, %v16, 0
    %39 = vmatprep.subr.mxu0 0.0
    %40 = vmatpush1.msra.mxu0 0.0
    %41 = vmatprep.subr.mxu0 0.0
    %42 = vmatpush1.msra.mxu0 0.0
    %43 = vmatprep.subr.mxu0 0.0
    %44 = vmatpush1.msra.mxu0 0.0
    %45 = vmatprep.subr.mxu0 0.0
    %46 = vmatpush1.msra.mxu0 0.0
    %47 = vmatprep.subr.mxu0 0.0
    %48 = vmatpush1.msra.mxu0 0.0
    %49 = vmatprep.subr.mxu0 0.0
    %50 = vmatpush1.msra.mxu0 0.0
    %51 = vmatprep.subr.mxu0 0.0
    %52 = vmatpush1.msra.mxu0 0.0
    %53 = vmatprep.subr.mxu0 0.0
    %54 = vmatpush1.msra.mxu0 0.0
    %55 = vmatprep.subr.mxu0 0.0
    %56 = vmatpush1.msra.mxu0 %v24
    %57 = vmatprep.subr.mxu0 0.0
    %58 = vmatpush1.msra.mxu0 %v23
    %59 = vmatprep.subr.mxu0 0.0
    %60 = vmatpush1.msra.mxu0 %v22
    %61 = vmatprep.subr.mxu0 0.0
    %62 = vmatpush1.msra.mxu0 %v21
    %63 = vmatprep.subr.mxu0 0.0
    %64 = vmatpush1.msra.mxu0 %v20
    %65 = vmatprep.subr.mxu0 0.0
    %66 = vmatpush1.msra.mxu0 %v19
    %67 = vmatprep.subr.mxu0 0.0
    %68 = vmatpush1.msra.mxu0 %v18
    %69 = vmatprep.subr.mxu0 0.0
    %70 = vmatpush1.msra.mxu0 %v17
    %71 = vmatprep.subr.mxu0 0.0
    %72 = vmatpush2.msra.mxu0 0.0
    %73 = vmatprep.subr.mxu0 0.0
    %74 = vmatpush2.msra.mxu0 0.0
    %75 = vmatprep.subr.mxu0 0.0
    %76 = vmatpush2.msra.mxu0 0.0
    %77 = vmatprep.subr.mxu0 0.0
    %78 = vmatpush2.msra.mxu0 0.0
    %79 = vmatprep.subr.mxu0 0.0
    %80 = vmatpush2.msra.mxu0 0.0
    %81 = vmatprep.subr.mxu0 0.0
    %82 = vmatpush2.msra.mxu0 0.0
    %83 = vmatprep.subr.mxu0 0.0
    %84 = vmatpush2.msra.mxu0 0.0
    %85 = vmatprep.subr.mxu0 0.0
    %86 = vmatpush2.msra.mxu0 0.0
    %87 = vmatprep.subr.mxu0 0.0
    %88 = vmatpush2.msra.mxu0 0.0
    %89 = vmatprep.subr.mxu0 0.0
    %90 = vmatpush2.msra.mxu0 0.0
    %91 = vmatprep.subr.mxu0 0.0
    %92 = vmatpush2.msra.mxu0 0.0
    %93 = vmatprep.subr.mxu0 0.0
    %94 = vmatpush2.msra.mxu0 0.0
    %95 = vmatprep.subr.mxu0 0.0
    %96 = vmatpush2.msra.mxu0 0.0
    %97 = vmatprep.subr.mxu0 0.0
    %98 = vmatpush2.msra.mxu0 0.0
    %99 = vmatprep.subr.mxu0 0.0
    %100 = vmatpush2.msra.mxu0 0.0
    %101 = vmatprep.subr.mxu0 0.0
    %102 = vmatpush2.msra.mxu0 0.0
    %103 = vmatprep.mubr.f32.mxu0 0.0
    %104 = vmatmul.mubr.f32.gmra.mxu0 %v34
    %v105 = vpop.f32.mrf.mxu0
    %v106 = vadd.f32 %v30, %v105
    %v107 = vpop.f32.mrf.mxu0
    %108 = vmatprep.mubr.f32.mxu0 0.0
    %109 = vmatmul.mubr.f32.gmra.mxu0 %v37
    %v110 = vpop.f32.mrf.mxu0
    %v111 = vadd.f32 %v30, %v110
    %v112 = vpop.f32.mrf.mxu0
    %113 = vdwg.mxu0
    %114 = vst [vmem:[#allocation2] sm:$0xff] %v106
    %115 = vst [vmem:[#allocation2 + $0x8] sm:$0xff] %v111
    // Predicated region
    $region14: #{protein_ligand_gnn_forward.7} parent=1 // pred_check
      _
    $region15: #{protein_ligand_gnn_forward.7} parent=1 // pred_check_branch
      %117 = sbr.rel (0) target = $region17
    $region16: #{protein_ligand_gnn_forward.7} parent=1 // pred_region
      %s119 = ssub.s32 256, 256
      %120 = vsyncadd [#allocation3], %s119
      %s121 = sshll.u32 [#allocation2], 4
      %s122 = int_to_ptr.vmem [resolvable:$true] %s121
      %127 = dma.vmem_to_hbm [thread:$0]  %s122, 256, %s3, [#allocation3], 128, 128, 8
    $region17: #{protein_ligand_gnn_forward.7} parent=1 // pred_fallthru
      _
    // Predicated region
    $region18: #{protein_ligand_gnn_forward.7} parent=1 // pred_check
      _
    $region19: #{protein_ligand_gnn_forward.7} parent=1 // pred_check_branch
      %129 = sbr.rel (0) target = $region21
    $region20: #{protein_ligand_gnn_forward.7} parent=1 // pred_region
      %130 = dma.done [#allocation3], 256
    $region21: #{protein_ligand_gnn_forward.7} parent=1 // pred_fallthru
      _
    %131 = vsyncpa [#allocation3], 1

// kernel: protein_ligand_gnn_forward.5
$region0: #{protein_ligand_gnn_forward.5}
  #allocation0 [shape = 'u32[]', space=smem, size = 0x4, offset = 0x4, fixed_abs, tag = 'smem constant byte address 0x4 - core index']
  #allocation1 [shape = 'u32[144,128]{1,0:T(1,128)}', space=vmem, size = 0x12000, scoped, tag = 'internal scratch']
  #allocation2 [shape = 'f32[24,256]{1,0:T(8,128)}', space=vmem, size = 0x6000, scoped, tag = 'scratch operand']
  %s0 = inlined_call_operand.vmem [shape: f32[24,32], index: 0, kind: input, shape index: {}]
  %s1 = inlined_call_operand.vmem [shape: bf16[24,32], index: 1, kind: input, shape index: {}]
  %s2 = inlined_call_operand.vmem [shape: f32[24,24], index: 2, kind: input, shape index: {}]
  %s3 = inlined_call_operand.vmem [shape: bf16[576,32], index: 3, kind: input, shape index: {}]
  %s4 = inlined_call_operand.vmem [shape: bf16[32,256], index: 4, kind: input, shape index: {}]
  %s5 = inlined_call_operand.vmem [shape: f32[1,256], index: 5, kind: input, shape index: {}]
  %s6 = inlined_call_operand.vmem [shape: bf16[32,128], index: 6, kind: input, shape index: {}]
  %s7 = inlined_call_operand.vmem [shape: f32[4,32], index: 7, kind: input, shape index: {}]
  %s8 = inlined_call_operand.vmem [shape: f32[1,32], index: 8, kind: input, shape index: {}]
  %s9 = inlined_call_operand.vmem [shape: f32[1,32], index: 9, kind: input, shape index: {}]
  %s10 = inlined_call_operand.vmem [shape: f32[1,32], index: 10, kind: input, shape index: {}]
  %s11 = inlined_call_operand.vmem [shape: f32[24,32], index: 11, kind: output, shape index: {}]
  %s12 = sld [smem:[#allocation0]]
  $region77: #{protein_ligand_gnn_forward.5} parent=0
    _
  %s14 = ssub.s32 1, %s12
  %s15 = scalar_select 0, %s14, %s12
  loop: start=0, step=1, limit=5
  $region2: #{protein_ligand_gnn_forward.5} parent=0 // loop_pre_header
    _
  $region3: #{protein_ligand_gnn_forward.5} parent=0 // loop_header
    %s17 = sphi 0, %s21
    %p18 = scmp.ge.s32.totalorder %s17, 5
    %s27 = sphi 0, %s29
    %s30 = sphi 0, %s27
    %s31 = sphi 0, %s30
    %s47 = sphi 0, %s31
    %s51 = sphi 0, %s51
    %s53 = sphi 0, %s51
    %s54 = sphi 0, %s53
    %s68 = sphi 0, %s54
    %s74 = sphi 0, %s76
    %s77 = sphi 0, %s74
    %s78 = sphi 0, %s77
    %s94 = sphi 0, %s78
    %s100 = sphi 0, %s102
    %s103 = sphi 0, %s100
    %s104 = sphi 0, %s103
    %s120 = sphi 0, %s104
    %s124 = sphi 0, %s124
    %s126 = sphi 0, %s124
    %s127 = sphi 0, %s126
    %s141 = sphi 0, %s127
    %s145 = sphi 0, %s145
    %s147 = sphi 0, %s145
    %s148 = sphi 0, %s147
    %s162 = sphi 0, %s148
    %s166 = sphi 0, %s166
    %s168 = sphi 0, %s166
    %s169 = sphi 0, %s168
    %s183 = sphi 0, %s169
    %s187 = sphi 0, %s187
    %s189 = sphi 0, %s187
    %s190 = sphi 0, %s189
    %s204 = sphi 0, %s190
    %s208 = sphi 0, %s208
    %s210 = sphi 0, %s208
    %s211 = sphi 0, %s210
    %s225 = sphi 0, %s211
    %s229 = sphi 0, %s229
    %s231 = sphi 0, %s229
    %s232 = sphi 0, %s231
    %s246 = sphi 0, %s232
    %s250 = sphi 0, %s250
    %s252 = sphi 0, %s250
    %s253 = sphi 0, %s252
    %s267 = sphi 0, %s253
    %s273 = sphi 0, %s275
    %s276 = sphi 0, %s273
    %s277 = sphi 0, %s276
    %s293 = sphi 0, %s277
  $region4: #{protein_ligand_gnn_forward.5} parent=0 // loop_header_branch
    %20 = sbr.rel (%p18) target = $region8
  $region5: #{protein_ligand_gnn_forward.5} parent=0 // loop_body
    %s22 = ssub.s32 %s17, 1
    %s23 = ssub.s32 %s17, 2
    %s24 = sadd.s32 %s17, 1
    %s25 = ssub.s32 %s17, %s24
    %p26 = scmp.eq.s32.totalorder %s25, 0
    %s28 = sadd.s32 %s27, 1
    %s29 = scalar_select %p26, %s27, %s28
    %p32 = pneg %p26
    %p33 = scmp.eq.s32.totalorder %s17, 2
    %p34 = por %p32, %p33
    %p35 = scmp.ne.s32.totalorder %s27, %s30
    %p36 = scmp.eq.s32.totalorder %s17, 0
    %p37 = por %p35, %p36
    %p38 = scmp.ne.s32.totalorder %s27, %s30
    %p39 = scmp.eq.s32.totalorder %s22, 2
    %p40 = por %p38, %p39
    %p41 = scmp.ne.s32.totalorder %s30, %s31
    %p42 = scmp.eq.s32.totalorder %s22, 0
    %p43 = por %p41, %p42
    %p44 = scmp.ne.s32.totalorder %s30, %s31
    %p45 = scmp.eq.s32.totalorder %s23, 2
    %p46 = por %p44, %p45
    %p48 = scmp.ne.s32.totalorder %s31, %s47
    %p49 = scmp.eq.s32.totalorder %s23, 0
    %p50 = por %p48, %p49
    %s52 = sadd.s32 %s51, 1
    %p55 = scmp.eq.s32.totalorder %s17, 2
    %p56 = scmp.ne.s32.totalorder %s51, %s53
    %p57 = scmp.eq.s32.totalorder %s17, 0
    %p58 = por %p56, %p57
    %p59 = scmp.ne.s32.totalorder %s51, %s53
    %p60 = scmp.eq.s32.totalorder %s22, 2
    %p61 = por %p59, %p60
    %p62 = scmp.ne.s32.totalorder %s53, %s54
    %p63 = scmp.eq.s32.totalorder %s22, 0
    %p64 = por %p62, %p63
    %p65 = scmp.ne.s32.totalorder %s53, %s54
    %p66 = scmp.eq.s32.totalorder %s23, 2
    %p67 = por %p65, %p66
    %p69 = scmp.ne.s32.totalorder %s54, %s68
    %p70 = scmp.eq.s32.totalorder %s23, 0
    %p71 = por %p69, %p70
    %s72 = ssub.s32 %s17, %s24
    %p73 = scmp.eq.s32.totalorder %s72, 0
    %s75 = sadd.s32 %s74, 1
    %s76 = scalar_select %p73, %s74, %s75
    %p79 = pneg %p73
    %p80 = scmp.eq.s32.totalorder %s17, 2
    %p81 = por %p79, %p80
    %p82 = scmp.ne.s32.totalorder %s74, %s77
    %p83 = scmp.eq.s32.totalorder %s17, 0
    %p84 = por %p82, %p83
    %p85 = scmp.ne.s32.totalorder %s74, %s77
    %p86 = scmp.eq.s32.totalorder %s22, 2
    %p87 = por %p85, %p86
    %p88 = scmp.ne.s32.totalorder %s77, %s78
    %p89 = scmp.eq.s32.totalorder %s22, 0
    %p90 = por %p88, %p89
    %p91 = scmp.ne.s32.totalorder %s77, %s78
    %p92 = scmp.eq.s32.totalorder %s23, 2
    %p93 = por %p91, %p92
    %p95 = scmp.ne.s32.totalorder %s78, %s94
    %p96 = scmp.eq.s32.totalorder %s23, 0
    %p97 = por %p95, %p96
    %s98 = ssub.s32 %s17, %s24
    %p99 = scmp.eq.s32.totalorder %s98, 0
    %s101 = sadd.s32 %s100, 1
    %s102 = scalar_select %p99, %s100, %s101
    %p105 = pneg %p99
    %p106 = scmp.eq.s32.totalorder %s17, 2
    %p107 = por %p105, %p106
    %p108 = scmp.ne.s32.totalorder %s100, %s103
    %p109 = scmp.eq.s32.totalorder %s17, 0
    %p110 = por %p108, %p109
    %p111 = scmp.ne.s32.totalorder %s100, %s103
    %p112 = scmp.eq.s32.totalorder %s22, 2
    %p113 = por %p111, %p112
    %p114 = scmp.ne.s32.totalorder %s103, %s104
    %p115 = scmp.eq.s32.totalorder %s22, 0
    %p116 = por %p114, %p115
    %p117 = scmp.ne.s32.totalorder %s103, %s104
    %p118 = scmp.eq.s32.totalorder %s23, 2
    %p119 = por %p117, %p118
    %p121 = scmp.ne.s32.totalorder %s104, %s120
    %p122 = scmp.eq.s32.totalorder %s23, 0
    %p123 = por %p121, %p122
    %s125 = sadd.s32 %s124, 1
    %p128 = scmp.eq.s32.totalorder %s17, 2
    %p129 = scmp.ne.s32.totalorder %s124, %s126
    %p130 = scmp.eq.s32.totalorder %s17, 0
    %p131 = por %p129, %p130
    %p132 = scmp.ne.s32.totalorder %s124, %s126
    %p133 = scmp.eq.s32.totalorder %s22, 2
    %p134 = por %p132, %p133
    %p135 = scmp.ne.s32.totalorder %s126, %s127
    %p136 = scmp.eq.s32.totalorder %s22, 0
    %p137 = por %p135, %p136
    %p138 = scmp.ne.s32.totalorder %s126, %s127
    %p139 = scmp.eq.s32.totalorder %s23, 2
    %p140 = por %p138, %p139
    %p142 = scmp.ne.s32.totalorder %s127, %s141
    %p143 = scmp.eq.s32.totalorder %s23, 0
    %p144 = por %p142, %p143
    %s146 = sadd.s32 %s145, 1
    %p149 = scmp.eq.s32.totalorder %s17, 2
    %p150 = scmp.ne.s32.totalorder %s145, %s147
    %p151 = scmp.eq.s32.totalorder %s17, 0
    %p152 = por %p150, %p151
    %p153 = scmp.ne.s32.totalorder %s145, %s147
    %p154 = scmp.eq.s32.totalorder %s22, 2
    %p155 = por %p153, %p154
    %p156 = scmp.ne.s32.totalorder %s147, %s148
    %p157 = scmp.eq.s32.totalorder %s22, 0
    %p158 = por %p156, %p157
    %p159 = scmp.ne.s32.totalorder %s147, %s148
    %p160 = scmp.eq.s32.totalorder %s23, 2
    %p161 = por %p159, %p160
    %p163 = scmp.ne.s32.totalorder %s148, %s162
    %p164 = scmp.eq.s32.totalorder %s23, 0
    %p165 = por %p163, %p164
    %s167 = sadd.s32 %s166, 1
    %p170 = scmp.eq.s32.totalorder %s17, 2
    %p171 = scmp.ne.s32.totalorder %s166, %s168
    %p172 = scmp.eq.s32.totalorder %s17, 0
    %p173 = por %p171, %p172
    %p174 = scmp.ne.s32.totalorder %s166, %s168
    %p175 = scmp.eq.s32.totalorder %s22, 2
    %p176 = por %p174, %p175
    %p177 = scmp.ne.s32.totalorder %s168, %s169
    %p178 = scmp.eq.s32.totalorder %s22, 0
    %p179 = por %p177, %p178
    %p180 = scmp.ne.s32.totalorder %s168, %s169
    %p181 = scmp.eq.s32.totalorder %s23, 2
    %p182 = por %p180, %p181
    %p184 = scmp.ne.s32.totalorder %s169, %s183
    %p185 = scmp.eq.s32.totalorder %s23, 0
    %p186 = por %p184, %p185
    %s188 = sadd.s32 %s187, 1
    %p191 = scmp.eq.s32.totalorder %s17, 2
    %p192 = scmp.ne.s32.totalorder %s187, %s189
    %p193 = scmp.eq.s32.totalorder %s17, 0
    %p194 = por %p192, %p193
    %p195 = scmp.ne.s32.totalorder %s187, %s189
    %p196 = scmp.eq.s32.totalorder %s22, 2
    %p197 = por %p195, %p196
    %p198 = scmp.ne.s32.totalorder %s189, %s190
    %p199 = scmp.eq.s32.totalorder %s22, 0
    %p200 = por %p198, %p199
    %p201 = scmp.ne.s32.totalorder %s189, %s190
    %p202 = scmp.eq.s32.totalorder %s23, 2
    %p203 = por %p201, %p202
    %p205 = scmp.ne.s32.totalorder %s190, %s204
    %p206 = scmp.eq.s32.totalorder %s23, 0
    %p207 = por %p205, %p206
    %s209 = sadd.s32 %s208, 1
    %p212 = scmp.eq.s32.totalorder %s17, 2
    %p213 = scmp.ne.s32.totalorder %s208, %s210
    %p214 = scmp.eq.s32.totalorder %s17, 0
    %p215 = por %p213, %p214
    %p216 = scmp.ne.s32.totalorder %s208, %s210
    %p217 = scmp.eq.s32.totalorder %s22, 2
    %p218 = por %p216, %p217
    %p219 = scmp.ne.s32.totalorder %s210, %s211
    %p220 = scmp.eq.s32.totalorder %s22, 0
    %p221 = por %p219, %p220
    %p222 = scmp.ne.s32.totalorder %s210, %s211
    %p223 = scmp.eq.s32.totalorder %s23, 2
    %p224 = por %p222, %p223
    %p226 = scmp.ne.s32.totalorder %s211, %s225
    %p227 = scmp.eq.s32.totalorder %s23, 0
    %p228 = por %p226, %p227
    %s230 = sadd.s32 %s229, 1
    %p233 = scmp.eq.s32.totalorder %s17, 2
    %p234 = scmp.ne.s32.totalorder %s229, %s231
    %p235 = scmp.eq.s32.totalorder %s17, 0
    %p236 = por %p234, %p235
    %p237 = scmp.ne.s32.totalorder %s229, %s231
    %p238 = scmp.eq.s32.totalorder %s22, 2
    %p239 = por %p237, %p238
    %p240 = scmp.ne.s32.totalorder %s231, %s232
    %p241 = scmp.eq.s32.totalorder %s22, 0
    %p242 = por %p240, %p241
    %p243 = scmp.ne.s32.totalorder %s231, %s232
    %p244 = scmp.eq.s32.totalorder %s23, 2
    %p245 = por %p243, %p244
    %p247 = scmp.ne.s32.totalorder %s232, %s246
    %p248 = scmp.eq.s32.totalorder %s23, 0
    %p249 = por %p247, %p248
    %s251 = sadd.s32 %s250, 1
    %p254 = scmp.eq.s32.totalorder %s17, 2
    %p255 = scmp.ne.s32.totalorder %s250, %s252
    %p256 = scmp.eq.s32.totalorder %s17, 0
    %p257 = por %p255, %p256
    %p258 = scmp.ne.s32.totalorder %s250, %s252
    %p259 = scmp.eq.s32.totalorder %s22, 2
    %p260 = por %p258, %p259
    %p261 = scmp.ne.s32.totalorder %s252, %s253
    %p262 = scmp.eq.s32.totalorder %s22, 0
    %p263 = por %p261, %p262
    %p264 = scmp.ne.s32.totalorder %s252, %s253
    %p265 = scmp.eq.s32.totalorder %s23, 2
    %p266 = por %p264, %p265
    %p268 = scmp.ne.s32.totalorder %s253, %s267
    %p269 = scmp.eq.s32.totalorder %s23, 0
    %p270 = por %p268, %p269
    %s271 = ssub.s32 %s17, %s24
    %p272 = scmp.eq.s32.totalorder %s271, 0
    %s274 = sadd.s32 %s273, 1
    %s275 = scalar_select %p272, %s273, %s274
    %p278 = pneg %p272
    %p279 = scmp.eq.s32.totalorder %s17, 2
    %p280 = por %p278, %p279
    %p281 = scmp.ne.s32.totalorder %s273, %s276
    %p282 = scmp.eq.s32.totalorder %s17, 0
    %p283 = por %p281, %p282
    %p284 = scmp.ne.s32.totalorder %s273, %s276
    %p285 = scmp.eq.s32.totalorder %s22, 2
    %p286 = por %p284, %p285
    %p287 = scmp.ne.s32.totalorder %s276, %s277
    %p288 = scmp.eq.s32.totalorder %s22, 0
    %p289 = por %p287, %p288
    %p290 = scmp.ne.s32.totalorder %s276, %s277
    %p291 = scmp.eq.s32.totalorder %s23, 2
    %p292 = por %p290, %p291
    %p294 = scmp.ne.s32.totalorder %s277, %s293
    %p295 = scmp.eq.s32.totalorder %s23, 0
    %p296 = por %p294, %p295
    %p297 = scmp.le.s32.totalorder 1, %s17
    %p298 = scmp.lt.s32.totalorder %s17, 4
    %p299 = pnand %p297, %p298
    %p300 = pneg %p299
    // Predicated region
    $region9: #{protein_ligand_gnn_forward.5} parent=5 // pred_check
      _
    $region10: #{protein_ligand_gnn_forward.5} parent=5 // pred_check_branch
      %302 = sbr.rel (%p299) target = $region12
    $region11: #{protein_ligand_gnn_forward.5} parent=5 // pred_region
      %s303 = ssub.s32 %s17, 1
      // Predicated region
      $region13: #{protein_ligand_gnn_forward.5} parent=11 // pred_check
        %p304 = pneg %p64
      $region14: #{protein_ligand_gnn_forward.5} parent=11 // pred_check_branch
        %306 = sbr.rel (%p304) target = $region16
      $region15: #{protein_ligand_gnn_forward.5} parent=11 // pred_region
        _
      $region16: #{protein_ligand_gnn_forward.5} parent=11 // pred_fallthru
        _
      // Predicated region
      $region17: #{protein_ligand_gnn_forward.5} parent=11 // pred_check
        %p307 = pneg %p137
      $region18: #{protein_ligand_gnn_forward.5} parent=11 // pred_check_branch
        %309 = sbr.rel (%p307) target = $region20
      $region19: #{protein_ligand_gnn_forward.5} parent=11 // pred_region
        _
      $region20: #{protein_ligand_gnn_forward.5} parent=11 // pred_fallthru
        _
      // Predicated region
      $region21: #{protein_ligand_gnn_forward.5} parent=11 // pred_check
        %p310 = pneg %p158
      $region22: #{protein_ligand_gnn_forward.5} parent=11 // pred_check_branch
        %312 = sbr.rel (%p310) target = $region24
      $region23: #{protein_ligand_gnn_forward.5} parent=11 // pred_region
        _
      $region24: #{protein_ligand_gnn_forward.5} parent=11 // pred_fallthru
        _
      // Predicated region
      $region25: #{protein_ligand_gnn_forward.5} parent=11 // pred_check
        %p313 = pneg %p179
      $region26: #{protein_ligand_gnn_forward.5} parent=11 // pred_check_branch
        %315 = sbr.rel (%p313) target = $region28
      $region27: #{protein_ligand_gnn_forward.5} parent=11 // pred_region
        _
      $region28: #{protein_ligand_gnn_forward.5} parent=11 // pred_fallthru
        _
      // Predicated region
      $region29: #{protein_ligand_gnn_forward.5} parent=11 // pred_check
        %p316 = pneg %p200
      $region30: #{protein_ligand_gnn_forward.5} parent=11 // pred_check_branch
        %318 = sbr.rel (%p316) target = $region32
      $region31: #{protein_ligand_gnn_forward.5} parent=11 // pred_region
        _
      $region32: #{protein_ligand_gnn_forward.5} parent=11 // pred_fallthru
        _
      // Predicated region
      $region33: #{protein_ligand_gnn_forward.5} parent=11 // pred_check
        %p319 = pneg %p221
      $region34: #{protein_ligand_gnn_forward.5} parent=11 // pred_check_branch
        %321 = sbr.rel (%p319) target = $region36
      $region35: #{protein_ligand_gnn_forward.5} parent=11 // pred_region
        _
      $region36: #{protein_ligand_gnn_forward.5} parent=11 // pred_fallthru
        _
      // Predicated region
      $region37: #{protein_ligand_gnn_forward.5} parent=11 // pred_check
        %p322 = pneg %p242
      $region38: #{protein_ligand_gnn_forward.5} parent=11 // pred_check_branch
        %324 = sbr.rel (%p322) target = $region40
      $region39: #{protein_ligand_gnn_forward.5} parent=11 // pred_region
        _
      $region40: #{protein_ligand_gnn_forward.5} parent=11 // pred_fallthru
        _
      // Predicated region
      $region41: #{protein_ligand_gnn_forward.5} parent=11 // pred_check
        %p325 = pneg %p263
      $region42: #{protein_ligand_gnn_forward.5} parent=11 // pred_check_branch
        %327 = sbr.rel (%p325) target = $region44
      $region43: #{protein_ligand_gnn_forward.5} parent=11 // pred_region
        _
      $region44: #{protein_ligand_gnn_forward.5} parent=11 // pred_fallthru
        _
    $region12: #{protein_ligand_gnn_forward.5} parent=5 // pred_fallthru
      _
    %p328 = scmp.lt.s32.totalorder %s17, 3
    // Predicated region
    $region45: #{protein_ligand_gnn_forward.5} parent=5 // pred_check
      %p329 = pneg %p328
    $region46: #{protein_ligand_gnn_forward.5} parent=5 // pred_check_branch
      %331 = sbr.rel (%p329) target = $region48
    $region47: #{protein_ligand_gnn_forward.5} parent=5 // pred_region
      // Predicated region
      $region49: #{protein_ligand_gnn_forward.5} parent=47 // pred_check
        %p332 = pneg %p37
      $region50: #{protein_ligand_gnn_forward.5} parent=47 // pred_check_branch
        %334 = sbr.rel (%p332) target = $region52
      $region51: #{protein_ligand_gnn_forward.5} parent=47 // pred_region
        %p335 = scmp.lt.s32.totalorder %s17, 2
        %s336 = scalar_select %p335, %s17, 2
        %s337 = smul.addr %s336, 8
        %s338 = scalar_lea.vmem %s0, %s337
      $region52: #{protein_ligand_gnn_forward.5} parent=47 // pred_fallthru
        _
      // Predicated region
      $region53: #{protein_ligand_gnn_forward.5} parent=47 // pred_check
        %p339 = pneg %p84
      $region54: #{protein_ligand_gnn_forward.5} parent=47 // pred_check_branch
        %341 = sbr.rel (%p339) target = $region56
      $region55: #{protein_ligand_gnn_forward.5} parent=47 // pred_region
        %p342 = scmp.lt.s32.totalorder %s17, 2
        %s343 = scalar_select %p342, %s17, 2
        %s344 = smul.addr %s343, 8
        %s345 = scalar_lea.vmem %s2, %s344
      $region56: #{protein_ligand_gnn_forward.5} parent=47 // pred_fallthru
        _
      // Predicated region
      $region57: #{protein_ligand_gnn_forward.5} parent=47 // pred_check
        %p346 = pneg %p110
      $region58: #{protein_ligand_gnn_forward.5} parent=47 // pred_check_branch
        %348 = sbr.rel (%p346) target = $region60
      $region59: #{protein_ligand_gnn_forward.5} parent=47 // pred_region
        %s349 = smul.u32 24, %s17
        %p350 = scmp.lt.s32.totalorder %s349, 71
        %s351 = scalar_select %p350, %s349, 71
        %s352 = smul.addr %s351, 4
        %s353 = scalar_lea.vmem %s3, %s352
        %s354 = smul.u32 24, %s17
      $region60: #{protein_ligand_gnn_forward.5} parent=47 // pred_fallthru
        _
    $region48: #{protein_ligand_gnn_forward.5} parent=5 // pred_fallthru
      _
    %p355 = scmp.le.s32.totalorder 1, %s17
    %p356 = scmp.lt.s32.totalorder %s17, 4
    %p357 = pnand %p355, %p356
    %p358 = pneg %p357
    // Predicated region
    $region61: #{protein_ligand_gnn_forward.5} parent=5 // pred_check
      _
    $region62: #{protein_ligand_gnn_forward.5} parent=5 // pred_check_branch
      %360 = sbr.rel (%p357) target = $region64
    $region63: #{protein_ligand_gnn_forward.5} parent=5 // pred_region
      %s361 = ssub.s32 %s17, 1
      %p362 = scmp.lt.s32.totalorder %s22, 2
      %s363 = scalar_select %p362, %s22, 2
      %s364 = smul.addr %s363, 8
      %s365 = scalar_lea.vmem %s0, %s364
      %p366 = pneg %p43
      %p367 = pneg %p40
      %p368 = pneg %p64
      %p369 = pneg %p61
      %p370 = scmp.lt.s32.totalorder %s22, 2
      %s371 = scalar_select %p370, %s22, 2
      %s372 = smul.addr %s371, 8
      %s373 = scalar_lea.vmem %s2, %s372
      %p374 = pneg %p90
      %p375 = pneg %p87
      %s376 = smul.u32 24, %s22
      %p377 = scmp.lt.s32.totalorder %s376, 71
      %s378 = scalar_select %p377, %s376, 71
      %s379 = smul.addr %s378, 4
      %s380 = scalar_lea.vmem %s3, %s379
      %p381 = pneg %p116
      %p382 = pneg %p113
      %p383 = pneg %p137
      %p384 = pneg %p134
      %p385 = pneg %p158
      %p386 = pneg %p155
      %p387 = pneg %p179
      %p388 = pneg %p176
      %p389 = pneg %p200
      %p390 = pneg %p197
      %p391 = pneg %p221
      %p392 = pneg %p218
      %p393 = pneg %p242
      %p394 = pneg %p239
      %p395 = pneg %p263
      %p396 = pneg %p260
      %p397 = pneg %p289
      %p398 = pneg %p286
      %p399 = scmp.lt.s32.totalorder %s22, 2
      %s400 = scalar_select %p399, %s22, 2
      %s401 = smul.addr %s400, 8
      %s402 = scalar_lea.vmem %s11, %s401
      %p403 = scmp.lt.s32.totalorder %s22, 2
      %s404 = scalar_select %p403, %s22, 2
      %s405 = smul.addr %s404, 8
      %s406 = scalar_lea.vmem %s0, %s405
      %p407 = scmp.lt.s32.totalorder %s22, 2
      %s408 = scalar_select %p407, %s22, 2
      %s409 = smul.addr %s408, 8
      %s410 = scalar_lea.vmem %s2, %s409
      %s411 = smul.u32 24, %s22
      %p412 = scmp.lt.s32.totalorder %s411, 71
      %s413 = scalar_select %p412, %s411, 71
      %s414 = smul.addr %s413, 4
      %s415 = scalar_lea.vmem %s3, %s414
      %s416 = smul.u32 24, %s22
      %p417 = scmp.lt.s32.totalorder %s22, 2
      %s418 = scalar_select %p417, %s22, 2
      %s419 = smul.addr %s418, 8
      %s420 = scalar_lea.vmem %s11, %s419
      %v422 = vld [vmem:[%s1] sm:$0xf]
      %v423 = vld [vmem:[%s1 + $0x4] sm:$0xf]
      %v424 = vld [vmem:[%s1 + $0x8] sm:$0xf]
      %v425 = vld [vmem:[%s4] sm:$0xff]
      %v426 = vld [vmem:[%s4 + $0x8] sm:$0xff]
      %v427 = vld [vmem:[%s4 + $0x10] sm:$0xff]
      %v428 = vld [vmem:[%s4 + $0x18] sm:$0xff]
      %v429 = vld [vmem:[%s5] sm:$0x3]
      %v431 = vlaneseq
      %v432 = vshrl.u32 %v431, 7
      %v433 = vsub.s32 0, %v432
      %v434 = vrot.slane %v429, %v433
      %v435 = vlaneseq
      %v436 = vshrl.u32 %v435, 7
      %v437 = vsub.s32 1, %v436
      %v438 = vrot.slane %v429, %v437
      %v444 = vunpack.c.l.b16 %v422
      %v445 = vunpack.c.l.b16 %v423
      %v446 = vunpack.c.l.b16 %v424
      %v447 = vpack.c.b16 %v445, %v444
      %v448 = vpack.c.b16 %v446, %v446
      %v453 = vunpack.c.l.b16 %v425
      %v454 = vunpack.c.h.b16 %v425
      %v455 = vunpack.c.l.b16 %v426
      %v456 = vunpack.c.h.b16 %v426
      %v457 = vunpack.c.l.b16 %v427
      %v458 = vunpack.c.h.b16 %v427
      %v459 = vunpack.c.l.b16 %v428
      %v460 = vunpack.c.h.b16 %v428
      %v461 = vpack.c.b16 %v455, %v453
      %v462 = vpack.c.b16 %v456, %v454
      %v463 = vpack.c.b16 %v459, %v457
      %v464 = vpack.c.b16 %v460, %v458
      %vm469 = vcmask 261120
      %v471 = vsel %vm469, %v447, 0
      %v474 = vsel %vm469, %v448, 0
      %476 = vmatprep.subr.bf16.mxu0 0
      %477 = vmatpush1.bf16.msra.mxu0 0
      %478 = vmatprep.subr.bf16.mxu0 0
      %479 = vmatpush1.bf16.msra.mxu0 0
      %480 = vmatprep.subr.bf16.mxu0 0
      %481 = vmatpush1.bf16.msra.mxu0 0
      %482 = vmatprep.subr.bf16.mxu0 0
      %483 = vmatpush1.bf16.msra.mxu0 0
      %484 = vmatprep.subr.bf16.mxu0 0
      %485 = vmatpush1.bf16.msra.mxu0 0
      %486 = vmatprep.subr.bf16.mxu0 0
      %487 = vmatpush1.bf16.msra.mxu0 0
      %488 = vmatprep.subr.bf16.mxu0 %v464
      %489 = vmatpush1.bf16.msra.mxu0 %v463
      %490 = vmatprep.subr.bf16.mxu0 %v462
      %491 = vmatpush1.bf16.msra.mxu0 %v461
      %492 = vmatprep.subr.bf16.mxu0 0
      %493 = vmatpush2.bf16.msra.mxu0 0
      %494 = vmatprep.subr.bf16.mxu0 0
      %495 = vmatpush2.bf16.msra.mxu0 0
      %496 = vmatprep.subr.bf16.mxu0 0
      %497 = vmatpush2.bf16.msra.mxu0 0
      %498 = vmatprep.subr.bf16.mxu0 0
      %499 = vmatpush2.bf16.msra.mxu0 0
      %500 = vmatprep.subr.bf16.mxu0 0
      %501 = vmatpush2.bf16.msra.mxu0 0
      %502 = vmatprep.subr.bf16.mxu0 0
      %503 = vmatpush2.bf16.msra.mxu0 0
      %504 = vmatprep.subr.bf16.mxu0 0
      %505 = vmatpush2.bf16.msra.mxu0 0
      %506 = vmatprep.subr.bf16.mxu0 0
      %507 = vmatpush2.bf16.msra.mxu0 0
      %508 = vmatprep.mubr.bf16.mxu0 0
      %509 = vmatmul.mubr.bf16.gmra.mxu0 %v471
      %v510 = vpop.f32.mrf.mxu0
      %v511 = vadd.f32 %v434, %v510
      %v512 = vpop.f32.mrf.mxu0
      %v513 = vadd.f32 %v438, %v512
      %v514 = vpop.f32.mrf.mxu0
      %v515 = vadd.f32 %v434, %v514
      %v516 = vpop.f32.mrf.mxu0
      %v517 = vadd.f32 %v438, %v516
      %518 = vmatprep.mubr.bf16.mxu0 0
      %519 = vmatmul.mubr.bf16.gmra.mxu0 %v474
      %v520 = vpop.f32.mrf.mxu0
      %v521 = vadd.f32 %v434, %v520
      %v522 = vpop.f32.mrf.mxu0
      %v523 = vadd.f32 %v438, %v522
      %v524 = vpop.f32.mrf.mxu0
      %v525 = vpop.f32.mrf.mxu0
      %526 = vdwg.mxu0
      %527 = vst [vmem:[#allocation2] sm:$0xff] %v511
      %528 = vst [vmem:[#allocation2 + $0x8] sm:$0xff] %v513
      %529 = vst [vmem:[#allocation2 + $0x10] sm:$0xff] %v515
      %530 = vst [vmem:[#allocation2 + $0x18] sm:$0xff] %v517
      %531 = vst [vmem:[#allocation2 + $0x20] sm:$0xff] %v521
      %532 = vst [vmem:[#allocation2 + $0x28] sm:$0xff] %v523
      %v533 = vld [vmem:[#allocation2] sm:$0xff]
      %v534 = vld [vmem:[#allocation2 + $0x10] sm:$0xff]
      %v535 = vld [vmem:[#allocation2 + $0x20] sm:$0xff]
      %s536 = smul.u32 %s22, 8
      %s537 = sshra.s32 %s536, 3
      %s538 = sand.u32 %s536, 7
      %s539 = smul.u32 %s537, 2
      %s540 = smul.addr %s539, 8
      %s541 = scalar_lea.vmem [#allocation2], %s540
      %v542 = vld [vmem:[%s541 + $0x8] sm:$0xff]
      %v543 = vld [vmem:[%s415] sm:$0xf]
      %v544 = vld [vmem:[%s415 + $0x4] sm:$0xf]
      %v545 = vld [vmem:[%s415 + $0x8] sm:$0xf]
      %v546 = vld [vmem:[%s415 + $0xc] sm:$0xf]
      %v547 = vld [vmem:[%s415 + $0x10] sm:$0xf]
      %v548 = vld [vmem:[%s415 + $0x14] sm:$0xf]
      %v549 = vld [vmem:[%s415 + $0x18] sm:$0xf]
      %v550 = vld [vmem:[%s415 + $0x1c] sm:$0xf]
      %v551 = vld [vmem:[%s415 + $0x20] sm:$0xf]
      %v552 = vld [vmem:[%s415 + $0x24] sm:$0xf]
      %v553 = vld [vmem:[%s415 + $0x28] sm:$0xf]
      %v554 = vld [vmem:[%s415 + $0x2c] sm:$0xf]
      %v555 = vld [vmem:[%s415 + $0x30] sm:$0xf]
      %v556 = vld [vmem:[%s415 + $0x34] sm:$0xf]
      %v557 = vld [vmem:[%s415 + $0x38] sm:$0xf]
      %v558 = vld [vmem:[%s415 + $0x3c] sm:$0xf]
      %v559 = vld [vmem:[%s415 + $0x40] sm:$0xf]
      %v560 = vld [vmem:[%s415 + $0x44] sm:$0xf]
      %v561 = vld [vmem:[%s415 + $0x48] sm:$0xf]
      %v562 = vld [vmem:[%s415 + $0x4c] sm:$0xf]
      %v563 = vld [vmem:[%s415 + $0x50] sm:$0xf]
      %v564 = vld [vmem:[%s415 + $0x54] sm:$0xf]
      %v565 = vld [vmem:[%s415 + $0x58] sm:$0xf]
      %v566 = vld [vmem:[%s415 + $0x5c] sm:$0xf]
      %v567 = vld [vmem:[%s6] sm:$0xf]
      %v568 = vld [vmem:[%s6 + $0x4] sm:$0xf]
      %v569 = vld [vmem:[%s6 + $0x8] sm:$0xf]
      %v570 = vld [vmem:[%s6 + $0xc] sm:$0xf]
      %v595 = vunpack.c.l.b16 %v543
      %v596 = vunpack.c.l.b16 %v544
      %v597 = vunpack.c.l.b16 %v545
      %v598 = vunpack.c.l.b16 %v546
      %v599 = vunpack.c.l.b16 %v547
      %v600 = vunpack.c.l.b16 %v548
      %v601 = vunpack.c.l.b16 %v549
      %v602 = vunpack.c.l.b16 %v550
      %v603 = vunpack.c.l.b16 %v551
      %v604 = vunpack.c.l.b16 %v552
      %v605 = vunpack.c.l.b16 %v553
      %v606 = vunpack.c.l.b16 %v554
      %v607 = vunpack.c.l.b16 %v555
      %v608 = vunpack.c.l.b16 %v556
      %v609 = vunpack.c.l.b16 %v557
      %v610 = vunpack.c.l.b16 %v558
      %v611 = vunpack.c.l.b16 %v559
      %v612 = vunpack.c.l.b16 %v560
      %v613 = vunpack.c.l.b16 %v561
      %v614 = vunpack.c.l.b16 %v562
      %v615 = vunpack.c.l.b16 %v563
      %v616 = vunpack.c.l.b16 %v564
      %v617 = vunpack.c.l.b16 %v565
      %v618 = vunpack.c.l.b16 %v566
      %v619 = vpack.c.b16 %v596, %v595
      %v620 = vpack.c.b16 %v598, %v597
      %v621 = vpack.c.b16 %v600, %v599
      %v622 = vpack.c.b16 %v602, %v601
      %v623 = vpack.c.b16 %v604, %v603
      %v624 = vpack.c.b16 %v606, %v605
      %v625 = vpack.c.b16 %v608, %v607
      %v626 = vpack.c.b16 %v610, %v609
      %v627 = vpack.c.b16 %v612, %v611
      %v628 = vpack.c.b16 %v614, %v613
      %v629 = vpack.c.b16 %v616, %v615
      %v630 = vpack.c.b16 %v618, %v617
      %v635 = vunpack.c.l.b16 %v567
      %v636 = vunpack.c.l.b16 %v568
      %v637 = vunpack.c.l.b16 %v569
      %v638 = vunpack.c.l.b16 %v570
      %v639 = vpack.c.b16 %v636, %v635
      %v640 = vpack.c.b16 %v638, %v637
      %v644 = vsel %vm469, %v619, 0
      %v647 = vsel %vm469, %v620, 0
      %v650 = vsel %vm469, %v621, 0
      %v653 = vsel %vm469, %v622, 0
      %v656 = vsel %vm469, %v623, 0
      %v659 = vsel %vm469, %v624, 0
      %v662 = vsel %vm469, %v625, 0
      %v665 = vsel %vm469, %v626, 0
      %v668 = vsel %vm469, %v627, 0
      %v671 = vsel %vm469, %v628, 0
      %v674 = vsel %vm469, %v629, 0
      %v677 = vsel %vm469, %v630, 0
      %679 = vmatprep.subr.bf16.mxu0 0
      %680 = vmatpush1.bf16.msra.mxu0 0
      %681 = vmatprep.subr.bf16.mxu0 0
      %682 = vmatpush1.bf16.msra.mxu0 0
      %683 = vmatprep.subr.bf16.mxu0 0
      %684 = vmatpush1.bf16.msra.mxu0 0
      %685 = vmatprep.subr.bf16.mxu0 0
      %686 = vmatpush1.bf16.msra.mxu0 0
      %687 = vmatprep.subr.bf16.mxu0 0
      %688 = vmatpush1.bf16.msra.mxu0 0
      %689 = vmatprep.subr.bf16.mxu0 0
      %690 = vmatpush1.bf16.msra.mxu0 0
      %691 = vmatprep.subr.bf16.mxu0 0
      %692 = vmatpush1.bf16.msra.mxu0 %v640
      %693 = vmatprep.subr.bf16.mxu0 0
      %694 = vmatpush1.bf16.msra.mxu0 %v639
      %695 = vmatprep.subr.bf16.mxu0 0
      %696 = vmatpush2.bf16.msra.mxu0 0
      %697 = vmatprep.subr.bf16.mxu0 0
      %698 = vmatpush2.bf16.msra.mxu0 0
      %699 = vmatprep.subr.bf16.mxu0 0
      %700 = vmatpush2.bf16.msra.mxu0 0
      %701 = vmatprep.subr.bf16.mxu0 0
      %702 = vmatpush2.bf16.msra.mxu0 0
      %703 = vmatprep.subr.bf16.mxu0 0
      %704 = vmatpush2.bf16.msra.mxu0 0
      %705 = vmatprep.subr.bf16.mxu0 0
      %706 = vmatpush2.bf16.msra.mxu0 0
      %707 = vmatprep.subr.bf16.mxu0 0
      %708 = vmatpush2.bf16.msra.mxu0 0
      %709 = vmatprep.subr.bf16.mxu0 0
      %710 = vmatpush2.bf16.msra.mxu0 0
      %711 = vmatprep.mubr.bf16.mxu0 0
      %712 = vmatmul.mubr.bf16.gmra.mxu0 %v644
      %v713 = vpop.f32.mrf.mxu0
      %v714 = vadd.f32 0.0, %v713
      %v715 = vpop.f32.mrf.mxu0
      %v716 = vpop.f32.mrf.mxu0
      %v717 = vadd.f32 0.0, %v716
      %v718 = vpop.f32.mrf.mxu0
      %719 = vmatprep.mubr.bf16.mxu0 0
      %720 = vmatmul.mubr.bf16.gmra.mxu0 %v647
      %v721 = vpop.f32.mrf.mxu0
      %v722 = vadd.f32 0.0, %v721
      %v723 = vpop.f32.mrf.mxu0
      %v724 = vpop.f32.mrf.mxu0
      %v725 = vadd.f32 0.0, %v724
      %v726 = vpop.f32.mrf.mxu0
      %727 = vmatprep.mubr.bf16.mxu0 0
      %728 = vmatmul.mubr.bf16.gmra.mxu0 %v650
      %v729 = vpop.f32.mrf.mxu0
      %v730 = vadd.f32 0.0, %v729
      %v731 = vpop.f32.mrf.mxu0
      %v732 = vpop.f32.mrf.mxu0
      %v733 = vadd.f32 0.0, %v732
      %v734 = vpop.f32.mrf.mxu0
      %735 = vmatprep.mubr.bf16.mxu0 0
      %736 = vmatmul.mubr.bf16.gmra.mxu0 %v653
      %v737 = vpop.f32.mrf.mxu0
      %v738 = vadd.f32 0.0, %v737
      %v739 = vpop.f32.mrf.mxu0
      %v740 = vpop.f32.mrf.mxu0
      %v741 = vadd.f32 0.0, %v740
      %v742 = vpop.f32.mrf.mxu0
      %743 = vmatprep.mubr.bf16.mxu0 0
      %744 = vmatmul.mubr.bf16.gmra.mxu0 %v656
      %v745 = vpop.f32.mrf.mxu0
      %v746 = vadd.f32 0.0, %v745
      %v747 = vpop.f32.mrf.mxu0
      %v748 = vpop.f32.mrf.mxu0
      %v749 = vadd.f32 0.0, %v748
      %v750 = vpop.f32.mrf.mxu0
      %751 = vmatprep.mubr.bf16.mxu0 0
      %752 = vmatmul.mubr.bf16.gmra.mxu0 %v659
      %v753 = vpop.f32.mrf.mxu0
      %v754 = vadd.f32 0.0, %v753
      %v755 = vpop.f32.mrf.mxu0
      %v756 = vpop.f32.mrf.mxu0
      %v757 = vadd.f32 0.0, %v756
      %v758 = vpop.f32.mrf.mxu0
      %759 = vmatprep.mubr.bf16.mxu0 0
      %760 = vmatmul.mubr.bf16.gmra.mxu0 %v662
      %v761 = vpop.f32.mrf.mxu0
      %v762 = vadd.f32 0.0, %v761
      %v763 = vpop.f32.mrf.mxu0
      %v764 = vpop.f32.mrf.mxu0
      %v765 = vadd.f32 0.0, %v764
      %v766 = vpop.f32.mrf.mxu0
      %767 = vmatprep.mubr.bf16.mxu0 0
      %768 = vmatmul.mubr.bf16.gmra.mxu0 %v665
      %v769 = vpop.f32.mrf.mxu0
      %v770 = vadd.f32 0.0, %v769
      %v771 = vpop.f32.mrf.mxu0
      %v772 = vpop.f32.mrf.mxu0
      %v773 = vadd.f32 0.0, %v772
      %v774 = vpop.f32.mrf.mxu0
      %775 = vmatprep.mubr.bf16.mxu0 0
      %776 = vmatmul.mubr.bf16.gmra.mxu0 %v668
      %v777 = vpop.f32.mrf.mxu0
      %v778 = vadd.f32 0.0, %v777
      %v779 = vpop.f32.mrf.mxu0
      %v780 = vpop.f32.mrf.mxu0
      %v781 = vadd.f32 0.0, %v780
      %v782 = vpop.f32.mrf.mxu0
      %783 = vmatprep.mubr.bf16.mxu0 0
      %784 = vmatmul.mubr.bf16.gmra.mxu0 %v671
      %v785 = vpop.f32.mrf.mxu0
      %v786 = vadd.f32 0.0, %v785
      %v787 = vpop.f32.mrf.mxu0
      %v788 = vpop.f32.mrf.mxu0
      %v789 = vadd.f32 0.0, %v788
      %v790 = vpop.f32.mrf.mxu0
      %791 = vmatprep.mubr.bf16.mxu0 0
      %792 = vmatmul.mubr.bf16.gmra.mxu0 %v674
      %v793 = vpop.f32.mrf.mxu0
      %v794 = vadd.f32 0.0, %v793
      %v795 = vpop.f32.mrf.mxu0
      %v796 = vpop.f32.mrf.mxu0
      %v797 = vadd.f32 0.0, %v796
      %v798 = vpop.f32.mrf.mxu0
      %799 = vmatprep.mubr.bf16.mxu0 0
      %800 = vmatmul.mubr.bf16.gmra.mxu0 %v677
      %v801 = vpop.f32.mrf.mxu0
      %v802 = vadd.f32 0.0, %v801
      %v803 = vpop.f32.mrf.mxu0
      %v804 = vpop.f32.mrf.mxu0
      %v805 = vadd.f32 0.0, %v804
      %v806 = vpop.f32.mrf.mxu0
      %807 = vdwg.mxu0
      %v809 = vcombine.high %v542, %v542
      %v811 = vunpack.c.l.s4 1966171168
      %v812 = vunpack.c.0.s8 %v811
      %v813 = vlaneseq
      %v814 = vshrl.u32 %v813, 7
      %v815 = vsub.s32 %v812, %v814
      %v816 = vrot.slane %v542, %v815
      %v818 = vunpack.c.l.s4 1966171168
      %v819 = vunpack.c.0.s8 %v818
      %v820 = vlaneseq
      %v821 = vshrl.u32 %v820, 7
      %v822 = vsub.s32 %v819, %v821
      %v823 = vrot.slane %v809, %v822
      %v824 = vcombine.high %v816, %v816
      %v825 = vcombine.high %v823, %v823
      %v827 = vunpack.c.l.s4 1966171168
      %v828 = vunpack.c.0.s8 %v827
      %v829 = vlaneseq
      %v830 = vshrl.u32 %v829, 7
      %v831 = vsub.s32 %v828, %v830
      %v832 = vrot.slane %v816, %v831
      %v834 = vunpack.c.l.s4 1966171168
      %v835 = vunpack.c.0.s8 %v834
      %v836 = vlaneseq
      %v837 = vshrl.u32 %v836, 7
      %v838 = vsub.s32 %v835, %v837
      %v839 = vrot.slane %v823, %v838
      %v841 = vunpack.c.l.s4 1966171168
      %v842 = vunpack.c.0.s8 %v841
      %v843 = vlaneseq
      %v844 = vshrl.u32 %v843, 7
      %v845 = vsub.s32 %v842, %v844
      %v846 = vrot.slane %v824, %v845
      %v848 = vunpack.c.l.s4 1966171168
      %v849 = vunpack.c.0.s8 %v848
      %v850 = vlaneseq
      %v851 = vshrl.u32 %v850, 7
      %v852 = vsub.s32 %v849, %v851
      %v853 = vrot.slane %v825, %v852
      %v854 = vcombine.high %v832, %v832
      %v855 = vcombine.high %v839, %v839
      %v856 = vcombine.high %v846, %v846
      %v857 = vcombine.high %v853, %v853
      %v858 = vlaneseq
      %v859 = vshrl.u32 %v858, 7
      %v860 = vsub.s32 0, %v859
      %v861 = vrot.slane %v832, %v860
      %v862 = vlaneseq
      %v863 = vshrl.u32 %v862, 7
      %v864 = vsub.s32 0, %v863
      %v865 = vrot.slane %v846, %v864
      %v866 = vlaneseq
      %v867 = vshrl.u32 %v866, 7
      %v868 = vsub.s32 0, %v867
      %v869 = vrot.slane %v854, %v868
      %v870 = vlaneseq
      %v871 = vshrl.u32 %v870, 7
      %v872 = vsub.s32 0, %v871
      %v873 = vrot.slane %v856, %v872
      %v874 = vlaneseq
      %v875 = vshrl.u32 %v874, 7
      %v876 = vsub.s32 0, %v875
      %v877 = vrot.slane %v839, %v876
      %v878 = vlaneseq
      %v879 = vshrl.u32 %v878, 7
      %v880 = vsub.s32 0, %v879
      %v881 = vrot.slane %v853, %v880
      %v882 = vlaneseq
      %v883 = vshrl.u32 %v882, 7
      %v884 = vsub.s32 0, %v883
      %v885 = vrot.slane %v855, %v884
      %v886 = vlaneseq
      %v887 = vshrl.u32 %v886, 7
      %v888 = vsub.s32 0, %v887
      %v889 = vrot.slane %v857, %v888
      %v898 = vadd.f32 %v533, %v861
      %v899 = vadd.f32 %v534, %v861
      %v900 = vadd.f32 %v535, %v861
      %v901 = vadd.f32 %v533, %v865
      %v902 = vadd.f32 %v534, %v865
      %v903 = vadd.f32 %v535, %v865
      %v904 = vadd.f32 %v533, %v869
      %v905 = vadd.f32 %v534, %v869
      %v906 = vadd.f32 %v535, %v869
      %v907 = vadd.f32 %v533, %v873
      %v908 = vadd.f32 %v534, %v873
      %v909 = vadd.f32 %v535, %v873
      %v910 = vadd.f32 %v533, %v877
      %v911 = vadd.f32 %v534, %v877
      %v912 = vadd.f32 %v535, %v877
      %v913 = vadd.f32 %v533, %v881
      %v914 = vadd.f32 %v534, %v881
      %v915 = vadd.f32 %v535, %v881
      %v916 = vadd.f32 %v533, %v885
      %v917 = vadd.f32 %v534, %v885
      %v918 = vadd.f32 %v535, %v885
      %v919 = vadd.f32 %v533, %v889
      %v920 = vadd.f32 %v534, %v889
      %v921 = vadd.f32 %v535, %v889
      %v922 = vadd.f32 %v898, %v714
      %v923 = vadd.f32 %v899, %v717
      %v924 = vadd.f32 %v900, %v722
      %v925 = vadd.f32 %v901, %v725
      %v926 = vadd.f32 %v902, %v730
      %v927 = vadd.f32 %v903, %v733
      %v928 = vadd.f32 %v904, %v738
      %v929 = vadd.f32 %v905, %v741
      %v930 = vadd.f32 %v906, %v746
      %v931 = vadd.f32 %v907, %v749
      %v932 = vadd.f32 %v908, %v754
      %v933 = vadd.f32 %v909, %v757
      %v934 = vadd.f32 %v910, %v762
      %v935 = vadd.f32 %v911, %v765
      %v936 = vadd.f32 %v912, %v770
      %v937 = vadd.f32 %v913, %v773
      %v938 = vadd.f32 %v914, %v778
      %v939 = vadd.f32 %v915, %v781
      %v940 = vadd.f32 %v916, %v786
      %v941 = vadd.f32 %v917, %v789
      %v942 = vadd.f32 %v918, %v794
      %v943 = vadd.f32 %v919, %v797
      %v944 = vadd.f32 %v920, %v802
      %v945 = vadd.f32 %v921, %v805
      %vm946 = vcmp.ge.f32.partialorder %v922, 0.0
      %vm947 = vcmp.ge.f32.partialorder %v923, 0.0
      %vm948 = vcmp.ge.f32.partialorder %v924, 0.0
      %vm949 = vcmp.ge.f32.partialorder %v925, 0.0
      %vm950 = vcmp.ge.f32.partialorder %v926, 0.0
      %vm951 = vcmp.ge.f32.partialorder %v927, 0.0
      %vm952 = vcmp.ge.f32.partialorder %v928, 0.0
      %vm953 = vcmp.ge.f32.partialorder %v929, 0.0
      %vm954 = vcmp.ge.f32.partialorder %v930, 0.0
      %vm955 = vcmp.ge.f32.partialorder %v931, 0.0
      %vm956 = vcmp.ge.f32.partialorder %v932, 0.0
      %vm957 = vcmp.ge.f32.partialorder %v933, 0.0
      %vm958 = vcmp.ge.f32.partialorder %v934, 0.0
      %vm959 = vcmp.ge.f32.partialorder %v935, 0.0
      %vm960 = vcmp.ge.f32.partialorder %v936, 0.0
      %vm961 = vcmp.ge.f32.partialorder %v937, 0.0
      %vm962 = vcmp.ge.f32.partialorder %v938, 0.0
      %vm963 = vcmp.ge.f32.partialorder %v939, 0.0
      %vm964 = vcmp.ge.f32.partialorder %v940, 0.0
      %vm965 = vcmp.ge.f32.partialorder %v941, 0.0
      %vm966 = vcmp.ge.f32.partialorder %v942, 0.0
      %vm967 = vcmp.ge.f32.partialorder %v943, 0.0
      %vm968 = vcmp.ge.f32.partialorder %v944, 0.0
      %vm969 = vcmp.ge.f32.partialorder %v945, 0.0
      %v970 = vmul.f32 %v922, 0.2
      %v971 = vmul.f32 %v923, 0.2
      %v972 = vmul.f32 %v924, 0.2
      %v973 = vmul.f32 %v925, 0.2
      %v974 = vmul.f32 %v926, 0.2
      %v975 = vmul.f32 %v927, 0.2
      %v976 = vmul.f32 %v928, 0.2
      %v977 = vmul.f32 %v929, 0.2
      %v978 = vmul.f32 %v930, 0.2
      %v979 = vmul.f32 %v931, 0.2
      %v980 = vmul.f32 %v932, 0.2
      %v981 = vmul.f32 %v933, 0.2
      %v982 = vmul.f32 %v934, 0.2
      %v983 = vmul.f32 %v935, 0.2
      %v984 = vmul.f32 %v936, 0.2
      %v985 = vmul.f32 %v937, 0.2
      %v986 = vmul.f32 %v938, 0.2
      %v987 = vmul.f32 %v939, 0.2
      %v988 = vmul.f32 %v940, 0.2
      %v989 = vmul.f32 %v941, 0.2
      %v990 = vmul.f32 %v942, 0.2
      %v991 = vmul.f32 %v943, 0.2
      %v992 = vmul.f32 %v944, 0.2
      %v993 = vmul.f32 %v945, 0.2
      %v994 = vsel %vm946, %v922, %v970
      %v995 = vsel %vm947, %v923, %v971
      %v996 = vsel %vm948, %v924, %v972
      %v997 = vsel %vm949, %v925, %v973
      %v998 = vsel %vm950, %v926, %v974
      %v999 = vsel %vm951, %v927, %v975
      %v1000 = vsel %vm952, %v928, %v976
      %v1001 = vsel %vm953, %v929, %v977
      %v1002 = vsel %vm954, %v930, %v978
      %v1003 = vsel %vm955, %v931, %v979
      %v1004 = vsel %vm956, %v932, %v980
      %v1005 = vsel %vm957, %v933, %v981
      %v1006 = vsel %vm958, %v934, %v982
      %v1007 = vsel %vm959, %v935, %v983
      %v1008 = vsel %vm960, %v936, %v984
      %v1009 = vsel %vm961, %v937, %v985
      %v1010 = vsel %vm962, %v938, %v986
      %v1011 = vsel %vm963, %v939, %v987
      %v1012 = vsel %vm964, %v940, %v988
      %v1013 = vsel %vm965, %v941, %v989
      %v1014 = vsel %vm966, %v942, %v990
      %v1015 = vsel %vm967, %v943, %v991
      %v1016 = vsel %vm968, %v944, %v992
      %v1017 = vsel %vm969, %v945, %v993
      %v1018 = vld [vmem:[%s410] sm:$0xff]
      %vm1019 = vcmp.gt.f32.partialorder %v1018, 0.0
      %v1020 = vld [vmem:[%s7] sm:$0xf]
      %v1021 = vlaneseq
      %v1022 = vshrl.u32 %v1021, 7
      %v1023 = vsub.s32 0, %v1022
      %v1024 = vrot.slane %v1020, %v1023
      %v1025 = vmul.f32 %v994, %v1024
      %v1026 = vmul.f32 %v995, %v1024
      %v1027 = vmul.f32 %v996, %v1024
      %v1028 = vmul.f32 %v997, %v1024
      %v1029 = vmul.f32 %v998, %v1024
      %v1030 = vmul.f32 %v999, %v1024
      %v1031 = vmul.f32 %v1000, %v1024
      %v1032 = vmul.f32 %v1001, %v1024
      %v1033 = vmul.f32 %v1002, %v1024
      %v1034 = vmul.f32 %v1003, %v1024
      %v1035 = vmul.f32 %v1004, %v1024
      %v1036 = vmul.f32 %v1005, %v1024
      %v1037 = vmul.f32 %v1006, %v1024
      %v1038 = vmul.f32 %v1007, %v1024
      %v1039 = vmul.f32 %v1008, %v1024
      %v1040 = vmul.f32 %v1009, %v1024
      %v1041 = vmul.f32 %v1010, %v1024
      %v1042 = vmul.f32 %v1011, %v1024
      %v1043 = vmul.f32 %v1012, %v1024
      %v1044 = vmul.f32 %v1013, %v1024
      %v1045 = vmul.f32 %v1014, %v1024
      %v1046 = vmul.f32 %v1015, %v1024
      %v1047 = vmul.f32 %v1016, %v1024
      %v1048 = vmul.f32 %v1017, %v1024
      %v1049 = vsel %vm469, %v1025, 0.0
      %1050 = vadd.xlane.f32.xlu0 %v1049
      %v1051 = vpop.xlane.xlu0 %1050
      %v1052 = vsel %vm469, %v1026, 0.0
      %1053 = vadd.xlane.f32.xlu0 %v1052
      %v1054 = vpop.xlane.xlu0 %1053
      %v1055 = vsel %vm469, %v1027, 0.0
      %1056 = vadd.xlane.f32.xlu0 %v1055
      %v1057 = vpop.xlane.xlu0 %1056
      %v1058 = vsel %vm469, %v1028, 0.0
      %1059 = vadd.xlane.f32.xlu0 %v1058
      %v1060 = vpop.xlane.xlu0 %1059
      %v1061 = vsel %vm469, %v1029, 0.0
      %1062 = vadd.xlane.f32.xlu0 %v1061
      %v1063 = vpop.xlane.xlu0 %1062
      %v1064 = vsel %vm469, %v1030, 0.0
      %1065 = vadd.xlane.f32.xlu0 %v1064
      %v1066 = vpop.xlane.xlu0 %1065
      %v1067 = vsel %vm469, %v1031, 0.0
      %1068 = vadd.xlane.f32.xlu0 %v1067
      %v1069 = vpop.xlane.xlu0 %1068
      %v1070 = vsel %vm469, %v1032, 0.0
      %1071 = vadd.xlane.f32.xlu0 %v1070
      %v1072 = vpop.xlane.xlu0 %1071
      %v1073 = vsel %vm469, %v1033, 0.0
      %1074 = vadd.xlane.f32.xlu0 %v1073
      %v1075 = vpop.xlane.xlu0 %1074
      %v1076 = vsel %vm469, %v1034, 0.0
      %1077 = vadd.xlane.f32.xlu0 %v1076
      %v1078 = vpop.xlane.xlu0 %1077
      %v1079 = vsel %vm469, %v1035, 0.0
      %1080 = vadd.xlane.f32.xlu0 %v1079
      %v1081 = vpop.xlane.xlu0 %1080
      %v1082 = vsel %vm469, %v1036, 0.0
      %1083 = vadd.xlane.f32.xlu0 %v1082
      %v1084 = vpop.xlane.xlu0 %1083
      %v1085 = vsel %vm469, %v1037, 0.0
      %1086 = vadd.xlane.f32.xlu0 %v1085
      %v1087 = vpop.xlane.xlu0 %1086
      %v1088 = vsel %vm469, %v1038, 0.0
      %1089 = vadd.xlane.f32.xlu0 %v1088
      %v1090 = vpop.xlane.xlu0 %1089
      %v1091 = vsel %vm469, %v1039, 0.0
      %1092 = vadd.xlane.f32.xlu0 %v1091
      %v1093 = vpop.xlane.xlu0 %1092
      %v1094 = vsel %vm469, %v1040, 0.0
      %1095 = vadd.xlane.f32.xlu0 %v1094
      %v1096 = vpop.xlane.xlu0 %1095
      %v1097 = vsel %vm469, %v1041, 0.0
      %1098 = vadd.xlane.f32.xlu0 %v1097
      %v1099 = vpop.xlane.xlu0 %1098
      %v1100 = vsel %vm469, %v1042, 0.0
      %1101 = vadd.xlane.f32.xlu0 %v1100
      %v1102 = vpop.xlane.xlu0 %1101
      %v1103 = vsel %vm469, %v1043, 0.0
      %1104 = vadd.xlane.f32.xlu0 %v1103
      %v1105 = vpop.xlane.xlu0 %1104
      %v1106 = vsel %vm469, %v1044, 0.0
      %1107 = vadd.xlane.f32.xlu0 %v1106
      %v1108 = vpop.xlane.xlu0 %1107
      %v1109 = vsel %vm469, %v1045, 0.0
      %1110 = vadd.xlane.f32.xlu0 %v1109
      %v1111 = vpop.xlane.xlu0 %1110
      %v1112 = vsel %vm469, %v1046, 0.0
      %1113 = vadd.xlane.f32.xlu0 %v1112
      %v1114 = vpop.xlane.xlu0 %1113
      %v1115 = vsel %vm469, %v1047, 0.0
      %1116 = vadd.xlane.f32.xlu0 %v1115
      %v1117 = vpop.xlane.xlu0 %1116
      %v1118 = vsel %vm469, %v1048, 0.0
      %1119 = vadd.xlane.f32.xlu0 %v1118
      %v1120 = vpop.xlane.xlu0 %1119
      %v1145 = vlaneseq
      %v1146 = vand.u32 %v1145, 127
      %v1147 = vlaneseq
      %v1148 = vshrl.u32 %v1147, 7
      %v1149 = vsub.s32 %v1146, %v1148
      %v1150 = vrot.slane %v1051, %v1149
      %v1151 = vadd.s32 %v1146, 4294967288
      %v1152 = vlaneseq
      %v1153 = vshrl.u32 %v1152, 7
      %v1154 = vsub.s32 %v1151, %v1153
      %v1155 = vrot.slane %v1054, %v1154
      %vm1156 = vcmask 130112
      %v1157 = vsel %vm1156, %v1155, %v1150
      %v1158 = vadd.s32 %v1146, 4294967280
      %v1159 = vlaneseq
      %v1160 = vshrl.u32 %v1159, 7
      %v1161 = vsub.s32 %v1158, %v1160
      %v1162 = vrot.slane %v1057, %v1161
      %vm1163 = vcmask 195712
      %v1164 = vsel %vm1163, %v1162, %v1157
      %v1165 = vlaneseq
      %v1166 = vshrl.u32 %v1165, 7
      %v1167 = vsub.s32 %v1146, %v1166
      %v1168 = vrot.slane %v1060, %v1167
      %v1169 = vlaneseq
      %v1170 = vshrl.u32 %v1169, 7
      %v1171 = vsub.s32 %v1151, %v1170
      %v1172 = vrot.slane %v1063, %v1171
      %v1173 = vsel %vm1156, %v1172, %v1168
      %v1174 = vlaneseq
      %v1175 = vshrl.u32 %v1174, 7
      %v1176 = vsub.s32 %v1158, %v1175
      %v1177 = vrot.slane %v1066, %v1176
      %v1178 = vsel %vm1163, %v1177, %v1173
      %v1179 = vlaneseq
      %v1180 = vshrl.u32 %v1179, 7
      %v1181 = vsub.s32 %v1146, %v1180
      %v1182 = vrot.slane %v1069, %v1181
      %v1183 = vlaneseq
      %v1184 = vshrl.u32 %v1183, 7
      %v1185 = vsub.s32 %v1151, %v1184
      %v1186 = vrot.slane %v1072, %v1185
      %v1187 = vsel %vm1156, %v1186, %v1182
      %v1188 = vlaneseq
      %v1189 = vshrl.u32 %v1188, 7
      %v1190 = vsub.s32 %v1158, %v1189
      %v1191 = vrot.slane %v1075, %v1190
      %v1192 = vsel %vm1163, %v1191, %v1187
      %v1193 = vlaneseq
      %v1194 = vshrl.u32 %v1193, 7
      %v1195 = vsub.s32 %v1146, %v1194
      %v1196 = vrot.slane %v1078, %v1195
      %v1197 = vlaneseq
      %v1198 = vshrl.u32 %v1197, 7
      %v1199 = vsub.s32 %v1151, %v1198
      %v1200 = vrot.slane %v1081, %v1199
      %v1201 = vsel %vm1156, %v1200, %v1196
      %v1202 = vlaneseq
      %v1203 = vshrl.u32 %v1202, 7
      %v1204 = vsub.s32 %v1158, %v1203
      %v1205 = vrot.slane %v1084, %v1204
      %v1206 = vsel %vm1163, %v1205, %v1201
      %v1207 = vlaneseq
      %v1208 = vshrl.u32 %v1207, 7
      %v1209 = vsub.s32 %v1146, %v1208
      %v1210 = vrot.slane %v1087, %v1209
      %v1211 = vlaneseq
      %v1212 = vshrl.u32 %v1211, 7
      %v1213 = vsub.s32 %v1151, %v1212
      %v1214 = vrot.slane %v1090, %v1213
      %v1215 = vsel %vm1156, %v1214, %v1210
      %v1216 = vlaneseq
      %v1217 = vshrl.u32 %v1216, 7
      %v1218 = vsub.s32 %v1158, %v1217
      %v1219 = vrot.slane %v1093, %v1218
      %v1220 = vsel %vm1163, %v1219, %v1215
      %v1221 = vlaneseq
      %v1222 = vshrl.u32 %v1221, 7
      %v1223 = vsub.s32 %v1146, %v1222
      %v1224 = vrot.slane %v1096, %v1223
      %v1225 = vlaneseq
      %v1226 = vshrl.u32 %v1225, 7
      %v1227 = vsub.s32 %v1151, %v1226
      %v1228 = vrot.slane %v1099, %v1227
      %v1229 = vsel %vm1156, %v1228, %v1224
      %v1230 = vlaneseq
      %v1231 = vshrl.u32 %v1230, 7
      %v1232 = vsub.s32 %v1158, %v1231
      %v1233 = vrot.slane %v1102, %v1232
      %v1234 = vsel %vm1163, %v1233, %v1229
      %v1235 = vlaneseq
      %v1236 = vshrl.u32 %v1235, 7
      %v1237 = vsub.s32 %v1146, %v1236
      %v1238 = vrot.slane %v1105, %v1237
      %v1239 = vlaneseq
      %v1240 = vshrl.u32 %v1239, 7
      %v1241 = vsub.s32 %v1151, %v1240
      %v1242 = vrot.slane %v1108, %v1241
      %v1243 = vsel %vm1156, %v1242, %v1238
      %v1244 = vlaneseq
      %v1245 = vshrl.u32 %v1244, 7
      %v1246 = vsub.s32 %v1158, %v1245
      %v1247 = vrot.slane %v1111, %v1246
      %v1248 = vsel %vm1163, %v1247, %v1243
      %v1249 = vlaneseq
      %v1250 = vshrl.u32 %v1249, 7
      %v1251 = vsub.s32 %v1146, %v1250
      %v1252 = vrot.slane %v1114, %v1251
      %v1253 = vlaneseq
      %v1254 = vshrl.u32 %v1253, 7
      %v1255 = vsub.s32 %v1151, %v1254
      %v1256 = vrot.slane %v1117, %v1255
      %v1257 = vsel %vm1156, %v1256, %v1252
      %v1258 = vlaneseq
      %v1259 = vshrl.u32 %v1258, 7
      %v1260 = vsub.s32 %v1158, %v1259
      %v1261 = vrot.slane %v1120, %v1260
      %v1262 = vsel %vm1163, %v1261, %v1257
      %vm1263 = vcmask 1041409
      %v1264 = vsel %vm1263, %v1178, %v1164
      %vm1265 = vcmask 1042434
      %v1266 = vsel %vm1265, %v1192, %v1264
      %vm1267 = vcmask 1043459
      %v1268 = vsel %vm1267, %v1206, %v1266
      %vm1269 = vcmask 1044484
      %v1270 = vsel %vm1269, %v1220, %v1268
      %vm1271 = vcmask 1045509
      %v1272 = vsel %vm1271, %v1234, %v1270
      %vm1273 = vcmask 1046534
      %v1274 = vsel %vm1273, %v1248, %v1272
      %vm1275 = vcmask 1047559
      %v1276 = vsel %vm1275, %v1262, %v1274
      %v1278 = vsel %vm1019, %v1276, -1e+30
      %vm1279 = vcmask 195584
      %v1280 = vsel %vm1279, %v1278, -inf
      %1281 = vmax.xlane.f32.xlu0 %v1280
      %v1282 = vpop.xlane.xlu0 %1281
      %v1283 = vsub.f32 %v1278, %v1282
      %v1284 = vmul.f32 %v1283, 1.442695
      %v1285 = vpow.pop %v1284
      %v1286 = vsel %vm1279, %v1285, 0.0
      %1287 = vadd.xlane.f32.xlu0 %v1286
      %v1288 = vpop.xlane.xlu0 %1287
      %v1289 = vrcp.pop %v1288
      %v1290 = vmul.f32 %v1285, %v1289
      %v1291 = vlaneseq
      %v1292 = vshrl.u32 %v1291, 7
      %v1293 = vsub.s32 1, %v1292
      %v1294 = vrot.slane %v1020, %v1293
      %1296 = vrot.lane.b32.xlu0 %v1294, 32
      %v1297 = vpop.permute.xlu0 %1296
      %v1299 = vmul.f32 %v994, %v1297
      %v1300 = vmul.f32 %v995, %v1297
      %v1301 = vmul.f32 %v996, %v1297
      %v1302 = vmul.f32 %v997, %v1297
      %v1303 = vmul.f32 %v998, %v1297
      %v1304 = vmul.f32 %v999, %v1297
      %v1305 = vmul.f32 %v1000, %v1297
      %v1306 = vmul.f32 %v1001, %v1297
      %v1307 = vmul.f32 %v1002, %v1297
      %v1308 = vmul.f32 %v1003, %v1297
      %v1309 = vmul.f32 %v1004, %v1297
      %v1310 = vmul.f32 %v1005, %v1297
      %v1311 = vmul.f32 %v1006, %v1297
      %v1312 = vmul.f32 %v1007, %v1297
      %v1313 = vmul.f32 %v1008, %v1297
      %v1314 = vmul.f32 %v1009, %v1297
      %v1315 = vmul.f32 %v1010, %v1297
      %v1316 = vmul.f32 %v1011, %v1297
      %v1317 = vmul.f32 %v1012, %v1297
      %v1318 = vmul.f32 %v1013, %v1297
      %v1319 = vmul.f32 %v1014, %v1297
      %v1320 = vmul.f32 %v1015, %v1297
      %v1321 = vmul.f32 %v1016, %v1297
      %v1322 = vmul.f32 %v1017, %v1297
      %1347 = vrot.lane.b32.xlu0 %v1299, 96
      %v1348 = vpop.permute.xlu0 %1347
      %1349 = vrot.lane.b32.xlu0 %v1300, 96
      %v1350 = vpop.permute.xlu0 %1349
      %1351 = vrot.lane.b32.xlu0 %v1301, 96
      %v1352 = vpop.permute.xlu0 %1351
      %1353 = vrot.lane.b32.xlu0 %v1302, 96
      %v1354 = vpop.permute.xlu0 %1353
      %1355 = vrot.lane.b32.xlu0 %v1303, 96
      %v1356 = vpop.permute.xlu0 %1355
      %1357 = vrot.lane.b32.xlu0 %v1304, 96
      %v1358 = vpop.permute.xlu0 %1357
      %1359 = vrot.lane.b32.xlu0 %v1305, 96
      %v1360 = vpop.permute.xlu0 %1359
      %1361 = vrot.lane.b32.xlu0 %v1306, 96
      %v1362 = vpop.permute.xlu0 %1361
      %1363 = vrot.lane.b32.xlu0 %v1307, 96
      %v1364 = vpop.permute.xlu0 %1363
      %1365 = vrot.lane.b32.xlu0 %v1308, 96
      %v1366 = vpop.permute.xlu0 %1365
      %1367 = vrot.lane.b32.xlu0 %v1309, 96
      %v1368 = vpop.permute.xlu0 %1367
      %1369 = vrot.lane.b32.xlu0 %v1310, 96
      %v1370 = vpop.permute.xlu0 %1369
      %1371 = vrot.lane.b32.xlu0 %v1311, 96
      %v1372 = vpop.permute.xlu0 %1371
      %1373 = vrot.lane.b32.xlu0 %v1312, 96
      %v1374 = vpop.permute.xlu0 %1373
      %1375 = vrot.lane.b32.xlu0 %v1313, 96
      %v1376 = vpop.permute.xlu0 %1375
      %1377 = vrot.lane.b32.xlu0 %v1314, 96
      %v1378 = vpop.permute.xlu0 %1377
      %1379 = vrot.lane.b32.xlu0 %v1315, 96
      %v1380 = vpop.permute.xlu0 %1379
      %1381 = vrot.lane.b32.xlu0 %v1316, 96
      %v1382 = vpop.permute.xlu0 %1381
      %1383 = vrot.lane.b32.xlu0 %v1317, 96
      %v1384 = vpop.permute.xlu0 %1383
      %1385 = vrot.lane.b32.xlu0 %v1318, 96
      %v1386 = vpop.permute.xlu0 %1385
      %1387 = vrot.lane.b32.xlu0 %v1319, 96
      %v1388 = vpop.permute.xlu0 %1387
      %1389 = vrot.lane.b32.xlu0 %v1320, 96
      %v1390 = vpop.permute.xlu0 %1389
      %1391 = vrot.lane.b32.xlu0 %v1321, 96
      %v1392 = vpop.permute.xlu0 %1391
      %1393 = vrot.lane.b32.xlu0 %v1322, 96
      %v1394 = vpop.permute.xlu0 %1393
      %v1419 = vsel %vm469, %v1348, 0.0
      %1420 = vadd.xlane.f32.xlu0 %v1419
      %v1421 = vpop.xlane.xlu0 %1420
      %v1422 = vsel %vm469, %v1350, 0.0
      %1423 = vadd.xlane.f32.xlu0 %v1422
      %v1424 = vpop.xlane.xlu0 %1423
      %v1425 = vsel %vm469, %v1352, 0.0
      %1426 = vadd.xlane.f32.xlu0 %v1425
      %v1427 = vpop.xlane.xlu0 %1426
      %v1428 = vsel %vm469, %v1354, 0.0
      %1429 = vadd.xlane.f32.xlu0 %v1428
      %v1430 = vpop.xlane.xlu0 %1429
      %v1431 = vsel %vm469, %v1356, 0.0
      %1432 = vadd.xlane.f32.xlu0 %v1431
      %v1433 = vpop.xlane.xlu0 %1432
      %v1434 = vsel %vm469, %v1358, 0.0
      %1435 = vadd.xlane.f32.xlu0 %v1434
      %v1436 = vpop.xlane.xlu0 %1435
      %v1437 = vsel %vm469, %v1360, 0.0
      %1438 = vadd.xlane.f32.xlu0 %v1437
      %v1439 = vpop.xlane.xlu0 %1438
      %v1440 = vsel %vm469, %v1362, 0.0
      %1441 = vadd.xlane.f32.xlu0 %v1440
      %v1442 = vpop.xlane.xlu0 %1441
      %v1443 = vsel %vm469, %v1364, 0.0
      %1444 = vadd.xlane.f32.xlu0 %v1443
      %v1445 = vpop.xlane.xlu0 %1444
      %v1446 = vsel %vm469, %v1366, 0.0
      %1447 = vadd.xlane.f32.xlu0 %v1446
      %v1448 = vpop.xlane.xlu0 %1447
      %v1449 = vsel %vm469, %v1368, 0.0
      %1450 = vadd.xlane.f32.xlu0 %v1449
      %v1451 = vpop.xlane.xlu0 %1450
      %v1452 = vsel %vm469, %v1370, 0.0
      %1453 = vadd.xlane.f32.xlu0 %v1452
      %v1454 = vpop.xlane.xlu0 %1453
      %v1455 = vsel %vm469, %v1372, 0.0
      %1456 = vadd.xlane.f32.xlu0 %v1455
      %v1457 = vpop.xlane.xlu0 %1456
      %v1458 = vsel %vm469, %v1374, 0.0
      %1459 = vadd.xlane.f32.xlu0 %v1458
      %v1460 = vpop.xlane.xlu0 %1459
      %v1461 = vsel %vm469, %v1376, 0.0
      %1462 = vadd.xlane.f32.xlu0 %v1461
      %v1463 = vpop.xlane.xlu0 %1462
      %v1464 = vsel %vm469, %v1378, 0.0
      %1465 = vadd.xlane.f32.xlu0 %v1464
      %v1466 = vpop.xlane.xlu0 %1465
      %v1467 = vsel %vm469, %v1380, 0.0
      %1468 = vadd.xlane.f32.xlu0 %v1467
      %v1469 = vpop.xlane.xlu0 %1468
      %v1470 = vsel %vm469, %v1382, 0.0
      %1471 = vadd.xlane.f32.xlu0 %v1470
      %v1472 = vpop.xlane.xlu0 %1471
      %v1473 = vsel %vm469, %v1384, 0.0
      %1474 = vadd.xlane.f32.xlu0 %v1473
      %v1475 = vpop.xlane.xlu0 %1474
      %v1476 = vsel %vm469, %v1386, 0.0
      %1477 = vadd.xlane.f32.xlu0 %v1476
      %v1478 = vpop.xlane.xlu0 %1477
      %v1479 = vsel %vm469, %v1388, 0.0
      %1480 = vadd.xlane.f32.xlu0 %v1479
      %v1481 = vpop.xlane.xlu0 %1480
      %v1482 = vsel %vm469, %v1390, 0.0
      %1483 = vadd.xlane.f32.xlu0 %v1482
      %v1484 = vpop.xlane.xlu0 %1483
      %v1485 = vsel %vm469, %v1392, 0.0
      %1486 = vadd.xlane.f32.xlu0 %v1485
      %v1487 = vpop.xlane.xlu0 %1486
      %v1488 = vsel %vm469, %v1394, 0.0
      %1489 = vadd.xlane.f32.xlu0 %v1488
      %v1490 = vpop.xlane.xlu0 %1489
      %v1515 = vlaneseq
      %v1516 = vshrl.u32 %v1515, 7
      %v1517 = vsub.s32 %v1146, %v1516
      %v1518 = vrot.slane %v1421, %v1517
      %v1519 = vlaneseq
      %v1520 = vshrl.u32 %v1519, 7
      %v1521 = vsub.s32 %v1151, %v1520
      %v1522 = vrot.slane %v1424, %v1521
      %v1523 = vsel %vm1156, %v1522, %v1518
      %v1524 = vlaneseq
      %v1525 = vshrl.u32 %v1524, 7
      %v1526 = vsub.s32 %v1158, %v1525
      %v1527 = vrot.slane %v1427, %v1526
      %v1528 = vsel %vm1163, %v1527, %v1523
      %v1529 = vlaneseq
      %v1530 = vshrl.u32 %v1529, 7
      %v1531 = vsub.s32 %v1146, %v1530
      %v1532 = vrot.slane %v1430, %v1531
      %v1533 = vlaneseq
      %v1534 = vshrl.u32 %v1533, 7
      %v1535 = vsub.s32 %v1151, %v1534
      %v1536 = vrot.slane %v1433, %v1535
      %v1537 = vsel %vm1156, %v1536, %v1532
      %v1538 = vlaneseq
      %v1539 = vshrl.u32 %v1538, 7
      %v1540 = vsub.s32 %v1158, %v1539
      %v1541 = vrot.slane %v1436, %v1540
      %v1542 = vsel %vm1163, %v1541, %v1537
      %v1543 = vlaneseq
      %v1544 = vshrl.u32 %v1543, 7
      %v1545 = vsub.s32 %v1146, %v1544
      %v1546 = vrot.slane %v1439, %v1545
      %v1547 = vlaneseq
      %v1548 = vshrl.u32 %v1547, 7
      %v1549 = vsub.s32 %v1151, %v1548
      %v1550 = vrot.slane %v1442, %v1549
      %v1551 = vsel %vm1156, %v1550, %v1546
      %v1552 = vlaneseq
      %v1553 = vshrl.u32 %v1552, 7
      %v1554 = vsub.s32 %v1158, %v1553
      %v1555 = vrot.slane %v1445, %v1554
      %v1556 = vsel %vm1163, %v1555, %v1551
      %v1557 = vlaneseq
      %v1558 = vshrl.u32 %v1557, 7
      %v1559 = vsub.s32 %v1146, %v1558
      %v1560 = vrot.slane %v1448, %v1559
      %v1561 = vlaneseq
      %v1562 = vshrl.u32 %v1561, 7
      %v1563 = vsub.s32 %v1151, %v1562
      %v1564 = vrot.slane %v1451, %v1563
      %v1565 = vsel %vm1156, %v1564, %v1560
      %v1566 = vlaneseq
      %v1567 = vshrl.u32 %v1566, 7
      %v1568 = vsub.s32 %v1158, %v1567
      %v1569 = vrot.slane %v1454, %v1568
      %v1570 = vsel %vm1163, %v1569, %v1565
      %v1571 = vlaneseq
      %v1572 = vshrl.u32 %v1571, 7
      %v1573 = vsub.s32 %v1146, %v1572
      %v1574 = vrot.slane %v1457, %v1573
      %v1575 = vlaneseq
      %v1576 = vshrl.u32 %v1575, 7
      %v1577 = vsub.s32 %v1151, %v1576
      %v1578 = vrot.slane %v1460, %v1577
      %v1579 = vsel %vm1156, %v1578, %v1574
      %v1580 = vlaneseq
      %v1581 = vshrl.u32 %v1580, 7
      %v1582 = vsub.s32 %v1158, %v1581
      %v1583 = vrot.slane %v1463, %v1582
      %v1584 = vsel %vm1163, %v1583, %v1579
      %v1585 = vlaneseq
      %v1586 = vshrl.u32 %v1585, 7
      %v1587 = vsub.s32 %v1146, %v1586
      %v1588 = vrot.slane %v1466, %v1587
      %v1589 = vlaneseq
      %v1590 = vshrl.u32 %v1589, 7
      %v1591 = vsub.s32 %v1151, %v1590
      %v1592 = vrot.slane %v1469, %v1591
      %v1593 = vsel %vm1156, %v1592, %v1588
      %v1594 = vlaneseq
      %v1595 = vshrl.u32 %v1594, 7
      %v1596 = vsub.s32 %v1158, %v1595
      %v1597 = vrot.slane %v1472, %v1596
      %v1598 = vsel %vm1163, %v1597, %v1593
      %v1599 = vlaneseq
      %v1600 = vshrl.u32 %v1599, 7
      %v1601 = vsub.s32 %v1146, %v1600
      %v1602 = vrot.slane %v1475, %v1601
      %v1603 = vlaneseq
      %v1604 = vshrl.u32 %v1603, 7
      %v1605 = vsub.s32 %v1151, %v1604
      %v1606 = vrot.slane %v1478, %v1605
      %v1607 = vsel %vm1156, %v1606, %v1602
      %v1608 = vlaneseq
      %v1609 = vshrl.u32 %v1608, 7
      %v1610 = vsub.s32 %v1158, %v1609
      %v1611 = vrot.slane %v1481, %v1610
      %v1612 = vsel %vm1163, %v1611, %v1607
      %v1613 = vlaneseq
      %v1614 = vshrl.u32 %v1613, 7
      %v1615 = vsub.s32 %v1146, %v1614
      %v1616 = vrot.slane %v1484, %v1615
      %v1617 = vlaneseq
      %v1618 = vshrl.u32 %v1617, 7
      %v1619 = vsub.s32 %v1151, %v1618
      %v1620 = vrot.slane %v1487, %v1619
      %v1621 = vsel %vm1156, %v1620, %v1616
      %v1622 = vlaneseq
      %v1623 = vshrl.u32 %v1622, 7
      %v1624 = vsub.s32 %v1158, %v1623
      %v1625 = vrot.slane %v1490, %v1624
      %v1626 = vsel %vm1163, %v1625, %v1621
      %v1627 = vsel %vm1263, %v1542, %v1528
      %v1628 = vsel %vm1265, %v1556, %v1627
      %v1629 = vsel %vm1267, %v1570, %v1628
      %v1630 = vsel %vm1269, %v1584, %v1629
      %v1631 = vsel %vm1271, %v1598, %v1630
      %v1632 = vsel %vm1273, %v1612, %v1631
      %v1633 = vsel %vm1275, %v1626, %v1632
      %v1635 = vsel %vm1019, %v1633, -1e+30
      %v1636 = vsel %vm1279, %v1635, -inf
      %1637 = vmax.xlane.f32.xlu0 %v1636
      %v1638 = vpop.xlane.xlu0 %1637
      %v1639 = vsub.f32 %v1635, %v1638
      %v1640 = vmul.f32 %v1639, 1.442695
      %v1641 = vpow.pop %v1640
      %v1642 = vsel %vm1279, %v1641, 0.0
      %1643 = vadd.xlane.f32.xlu0 %v1642
      %v1644 = vpop.xlane.xlu0 %1643
      %v1645 = vrcp.pop %v1644
      %v1646 = vmul.f32 %v1641, %v1645
      %v1647 = vlaneseq
      %v1648 = vshrl.u32 %v1647, 7
      %v1649 = vsub.s32 2, %v1648
      %v1650 = vrot.slane %v1020, %v1649
      %1652 = vrot.lane.b32.xlu0 %v1650, 64
      %v1653 = vpop.permute.xlu0 %1652
      %v1655 = vmul.f32 %v994, %v1653
      %v1656 = vmul.f32 %v995, %v1653
      %v1657 = vmul.f32 %v996, %v1653
      %v1658 = vmul.f32 %v997, %v1653
      %v1659 = vmul.f32 %v998, %v1653
      %v1660 = vmul.f32 %v999, %v1653
      %v1661 = vmul.f32 %v1000, %v1653
      %v1662 = vmul.f32 %v1001, %v1653
      %v1663 = vmul.f32 %v1002, %v1653
      %v1664 = vmul.f32 %v1003, %v1653
      %v1665 = vmul.f32 %v1004, %v1653
      %v1666 = vmul.f32 %v1005, %v1653
      %v1667 = vmul.f32 %v1006, %v1653
      %v1668 = vmul.f32 %v1007, %v1653
      %v1669 = vmul.f32 %v1008, %v1653
      %v1670 = vmul.f32 %v1009, %v1653
      %v1671 = vmul.f32 %v1010, %v1653
      %v1672 = vmul.f32 %v1011, %v1653
      %v1673 = vmul.f32 %v1012, %v1653
      %v1674 = vmul.f32 %v1013, %v1653
      %v1675 = vmul.f32 %v1014, %v1653
      %v1676 = vmul.f32 %v1015, %v1653
      %v1677 = vmul.f32 %v1016, %v1653
      %v1678 = vmul.f32 %v1017, %v1653
      %1703 = vrot.lane.b32.xlu0 %v1655, 64
      %v1704 = vpop.permute.xlu0 %1703
      %1705 = vrot.lane.b32.xlu0 %v1656, 64
      %v1706 = vpop.permute.xlu0 %1705
      %1707 = vrot.lane.b32.xlu0 %v1657, 64
      %v1708 = vpop.permute.xlu0 %1707
      %1709 = vrot.lane.b32.xlu0 %v1658, 64
      %v1710 = vpop.permute.xlu0 %1709
      %1711 = vrot.lane.b32.xlu0 %v1659, 64
      %v1712 = vpop.permute.xlu0 %1711
      %1713 = vrot.lane.b32.xlu0 %v1660, 64
      %v1714 = vpop.permute.xlu0 %1713
      %1715 = vrot.lane.b32.xlu0 %v1661, 64
      %v1716 = vpop.permute.xlu0 %1715
      %1717 = vrot.lane.b32.xlu0 %v1662, 64
      %v1718 = vpop.permute.xlu0 %1717
      %1719 = vrot.lane.b32.xlu0 %v1663, 64
      %v1720 = vpop.permute.xlu0 %1719
      %1721 = vrot.lane.b32.xlu0 %v1664, 64
      %v1722 = vpop.permute.xlu0 %1721
      %1723 = vrot.lane.b32.xlu0 %v1665, 64
      %v1724 = vpop.permute.xlu0 %1723
      %1725 = vrot.lane.b32.xlu0 %v1666, 64
      %v1726 = vpop.permute.xlu0 %1725
      %1727 = vrot.lane.b32.xlu0 %v1667, 64
      %v1728 = vpop.permute.xlu0 %1727
      %1729 = vrot.lane.b32.xlu0 %v1668, 64
      %v1730 = vpop.permute.xlu0 %1729
      %1731 = vrot.lane.b32.xlu0 %v1669, 64
      %v1732 = vpop.permute.xlu0 %1731
      %1733 = vrot.lane.b32.xlu0 %v1670, 64
      %v1734 = vpop.permute.xlu0 %1733
      %1735 = vrot.lane.b32.xlu0 %v1671, 64
      %v1736 = vpop.permute.xlu0 %1735
      %1737 = vrot.lane.b32.xlu0 %v1672, 64
      %v1738 = vpop.permute.xlu0 %1737
      %1739 = vrot.lane.b32.xlu0 %v1673, 64
      %v1740 = vpop.permute.xlu0 %1739
      %1741 = vrot.lane.b32.xlu0 %v1674, 64
      %v1742 = vpop.permute.xlu0 %1741
      %1743 = vrot.lane.b32.xlu0 %v1675, 64
      %v1744 = vpop.permute.xlu0 %1743
      %1745 = vrot.lane.b32.xlu0 %v1676, 64
      %v1746 = vpop.permute.xlu0 %1745
      %1747 = vrot.lane.b32.xlu0 %v1677, 64
      %v1748 = vpop.permute.xlu0 %1747
      %1749 = vrot.lane.b32.xlu0 %v1678, 64
      %v1750 = vpop.permute.xlu0 %1749
      %v1775 = vsel %vm469, %v1704, 0.0
      %1776 = vadd.xlane.f32.xlu0 %v1775
      %v1777 = vpop.xlane.xlu0 %1776
      %v1778 = vsel %vm469, %v1706, 0.0
      %1779 = vadd.xlane.f32.xlu0 %v1778
      %v1780 = vpop.xlane.xlu0 %1779
      %v1781 = vsel %vm469, %v1708, 0.0
      %1782 = vadd.xlane.f32.xlu0 %v1781
      %v1783 = vpop.xlane.xlu0 %1782
      %v1784 = vsel %vm469, %v1710, 0.0
      %1785 = vadd.xlane.f32.xlu0 %v1784
      %v1786 = vpop.xlane.xlu0 %1785
      %v1787 = vsel %vm469, %v1712, 0.0
      %1788 = vadd.xlane.f32.xlu0 %v1787
      %v1789 = vpop.xlane.xlu0 %1788
      %v1790 = vsel %vm469, %v1714, 0.0
      %1791 = vadd.xlane.f32.xlu0 %v1790
      %v1792 = vpop.xlane.xlu0 %1791
      %v1793 = vsel %vm469, %v1716, 0.0
      %1794 = vadd.xlane.f32.xlu0 %v1793
      %v1795 = vpop.xlane.xlu0 %1794
      %v1796 = vsel %vm469, %v1718, 0.0
      %1797 = vadd.xlane.f32.xlu0 %v1796
      %v1798 = vpop.xlane.xlu0 %1797
      %v1799 = vsel %vm469, %v1720, 0.0
      %1800 = vadd.xlane.f32.xlu0 %v1799
      %v1801 = vpop.xlane.xlu0 %1800
      %v1802 = vsel %vm469, %v1722, 0.0
      %1803 = vadd.xlane.f32.xlu0 %v1802
      %v1804 = vpop.xlane.xlu0 %1803
      %v1805 = vsel %vm469, %v1724, 0.0
      %1806 = vadd.xlane.f32.xlu0 %v1805
      %v1807 = vpop.xlane.xlu0 %1806
      %v1808 = vsel %vm469, %v1726, 0.0
      %1809 = vadd.xlane.f32.xlu0 %v1808
      %v1810 = vpop.xlane.xlu0 %1809
      %v1811 = vsel %vm469, %v1728, 0.0
      %1812 = vadd.xlane.f32.xlu0 %v1811
      %v1813 = vpop.xlane.xlu0 %1812
      %v1814 = vsel %vm469, %v1730, 0.0
      %1815 = vadd.xlane.f32.xlu0 %v1814
      %v1816 = vpop.xlane.xlu0 %1815
      %v1817 = vsel %vm469, %v1732, 0.0
      %1818 = vadd.xlane.f32.xlu0 %v1817
      %v1819 = vpop.xlane.xlu0 %1818
      %v1820 = vsel %vm469, %v1734, 0.0
      %1821 = vadd.xlane.f32.xlu0 %v1820
      %v1822 = vpop.xlane.xlu0 %1821
      %v1823 = vsel %vm469, %v1736, 0.0
      %1824 = vadd.xlane.f32.xlu0 %v1823
      %v1825 = vpop.xlane.xlu0 %1824
      %v1826 = vsel %vm469, %v1738, 0.0
      %1827 = vadd.xlane.f32.xlu0 %v1826
      %v1828 = vpop.xlane.xlu0 %1827
      %v1829 = vsel %vm469, %v1740, 0.0
      %1830 = vadd.xlane.f32.xlu0 %v1829
      %v1831 = vpop.xlane.xlu0 %1830
      %v1832 = vsel %vm469, %v1742, 0.0
      %1833 = vadd.xlane.f32.xlu0 %v1832
      %v1834 = vpop.xlane.xlu0 %1833
      %v1835 = vsel %vm469, %v1744, 0.0
      %1836 = vadd.xlane.f32.xlu0 %v1835
      %v1837 = vpop.xlane.xlu0 %1836
      %v1838 = vsel %vm469, %v1746, 0.0
      %1839 = vadd.xlane.f32.xlu0 %v1838
      %v1840 = vpop.xlane.xlu0 %1839
      %v1841 = vsel %vm469, %v1748, 0.0
      %1842 = vadd.xlane.f32.xlu0 %v1841
      %v1843 = vpop.xlane.xlu0 %1842
      %v1844 = vsel %vm469, %v1750, 0.0
      %1845 = vadd.xlane.f32.xlu0 %v1844
      %v1846 = vpop.xlane.xlu0 %1845
      %v1871 = vlaneseq
      %v1872 = vshrl.u32 %v1871, 7
      %v1873 = vsub.s32 %v1146, %v1872
      %v1874 = vrot.slane %v1777, %v1873
      %v1875 = vlaneseq
      %v1876 = vshrl.u32 %v1875, 7
      %v1877 = vsub.s32 %v1151, %v1876
      %v1878 = vrot.slane %v1780, %v1877
      %v1879 = vsel %vm1156, %v1878, %v1874
      %v1880 = vlaneseq
      %v1881 = vshrl.u32 %v1880, 7
      %v1882 = vsub.s32 %v1158, %v1881
      %v1883 = vrot.slane %v1783, %v1882
      %v1884 = vsel %vm1163, %v1883, %v1879
      %v1885 = vlaneseq
      %v1886 = vshrl.u32 %v1885, 7
      %v1887 = vsub.s32 %v1146, %v1886
      %v1888 = vrot.slane %v1786, %v1887
      %v1889 = vlaneseq
      %v1890 = vshrl.u32 %v1889, 7
      %v1891 = vsub.s32 %v1151, %v1890
      %v1892 = vrot.slane %v1789, %v1891
      %v1893 = vsel %vm1156, %v1892, %v1888
      %v1894 = vlaneseq
      %v1895 = vshrl.u32 %v1894, 7
      %v1896 = vsub.s32 %v1158, %v1895
      %v1897 = vrot.slane %v1792, %v1896
      %v1898 = vsel %vm1163, %v1897, %v1893
      %v1899 = vlaneseq
      %v1900 = vshrl.u32 %v1899, 7
      %v1901 = vsub.s32 %v1146, %v1900
      %v1902 = vrot.slane %v1795, %v1901
      %v1903 = vlaneseq
      %v1904 = vshrl.u32 %v1903, 7
      %v1905 = vsub.s32 %v1151, %v1904
      %v1906 = vrot.slane %v1798, %v1905
      %v1907 = vsel %vm1156, %v1906, %v1902
      %v1908 = vlaneseq
      %v1909 = vshrl.u32 %v1908, 7
      %v1910 = vsub.s32 %v1158, %v1909
      %v1911 = vrot.slane %v1801, %v1910
      %v1912 = vsel %vm1163, %v1911, %v1907
      %v1913 = vlaneseq
      %v1914 = vshrl.u32 %v1913, 7
      %v1915 = vsub.s32 %v1146, %v1914
      %v1916 = vrot.slane %v1804, %v1915
      %v1917 = vlaneseq
      %v1918 = vshrl.u32 %v1917, 7
      %v1919 = vsub.s32 %v1151, %v1918
      %v1920 = vrot.slane %v1807, %v1919
      %v1921 = vsel %vm1156, %v1920, %v1916
      %v1922 = vlaneseq
      %v1923 = vshrl.u32 %v1922, 7
      %v1924 = vsub.s32 %v1158, %v1923
      %v1925 = vrot.slane %v1810, %v1924
      %v1926 = vsel %vm1163, %v1925, %v1921
      %v1927 = vlaneseq
      %v1928 = vshrl.u32 %v1927, 7
      %v1929 = vsub.s32 %v1146, %v1928
      %v1930 = vrot.slane %v1813, %v1929
      %v1931 = vlaneseq
      %v1932 = vshrl.u32 %v1931, 7
      %v1933 = vsub.s32 %v1151, %v1932
      %v1934 = vrot.slane %v1816, %v1933
      %v1935 = vsel %vm1156, %v1934, %v1930
      %v1936 = vlaneseq
      %v1937 = vshrl.u32 %v1936, 7
      %v1938 = vsub.s32 %v1158, %v1937
      %v1939 = vrot.slane %v1819, %v1938
      %v1940 = vsel %vm1163, %v1939, %v1935
      %v1941 = vlaneseq
      %v1942 = vshrl.u32 %v1941, 7
      %v1943 = vsub.s32 %v1146, %v1942
      %v1944 = vrot.slane %v1822, %v1943
      %v1945 = vlaneseq
      %v1946 = vshrl.u32 %v1945, 7
      %v1947 = vsub.s32 %v1151, %v1946
      %v1948 = vrot.slane %v1825, %v1947
      %v1949 = vsel %vm1156, %v1948, %v1944
      %v1950 = vlaneseq
      %v1951 = vshrl.u32 %v1950, 7
      %v1952 = vsub.s32 %v1158, %v1951
      %v1953 = vrot.slane %v1828, %v1952
      %v1954 = vsel %vm1163, %v1953, %v1949
      %v1955 = vlaneseq
      %v1956 = vshrl.u32 %v1955, 7
      %v1957 = vsub.s32 %v1146, %v1956
      %v1958 = vrot.slane %v1831, %v1957
      %v1959 = vlaneseq
      %v1960 = vshrl.u32 %v1959, 7
      %v1961 = vsub.s32 %v1151, %v1960
      %v1962 = vrot.slane %v1834, %v1961
      %v1963 = vsel %vm1156, %v1962, %v1958
      %v1964 = vlaneseq
      %v1965 = vshrl.u32 %v1964, 7
      %v1966 = vsub.s32 %v1158, %v1965
      %v1967 = vrot.slane %v1837, %v1966
      %v1968 = vsel %vm1163, %v1967, %v1963
      %v1969 = vlaneseq
      %v1970 = vshrl.u32 %v1969, 7
      %v1971 = vsub.s32 %v1146, %v1970
      %v1972 = vrot.slane %v1840, %v1971
      %v1973 = vlaneseq
      %v1974 = vshrl.u32 %v1973, 7
      %v1975 = vsub.s32 %v1151, %v1974
      %v1976 = vrot.slane %v1843, %v1975
      %v1977 = vsel %vm1156, %v1976, %v1972
      %v1978 = vlaneseq
      %v1979 = vshrl.u32 %v1978, 7
      %v1980 = vsub.s32 %v1158, %v1979
      %v1981 = vrot.slane %v1846, %v1980
      %v1982 = vsel %vm1163, %v1981, %v1977
      %v1983 = vsel %vm1263, %v1898, %v1884
      %v1984 = vsel %vm1265, %v1912, %v1983
      %v1985 = vsel %vm1267, %v1926, %v1984
      %v1986 = vsel %vm1269, %v1940, %v1985
      %v1987 = vsel %vm1271, %v1954, %v1986
      %v1988 = vsel %vm1273, %v1968, %v1987
      %v1989 = vsel %vm1275, %v1982, %v1988
      %v1991 = vsel %vm1019, %v1989, -1e+30
      %v1992 = vsel %vm1279, %v1991, -inf
      %1993 = vmax.xlane.f32.xlu0 %v1992
      %v1994 = vpop.xlane.xlu0 %1993
      %v1995 = vsub.f32 %v1991, %v1994
      %v1996 = vmul.f32 %v1995, 1.442695
      %v1997 = vpow.pop %v1996
      %v1998 = vsel %vm1279, %v1997, 0.0
      %1999 = vadd.xlane.f32.xlu0 %v1998
      %v2000 = vpop.xlane.xlu0 %1999
      %v2001 = vrcp.pop %v2000
      %v2002 = vmul.f32 %v1997, %v2001
      %v2003 = vlaneseq
      %v2004 = vshrl.u32 %v2003, 7
      %v2005 = vsub.s32 3, %v2004
      %v2006 = vrot.slane %v1020, %v2005
      %2008 = vrot.lane.b32.xlu0 %v2006, 96
      %v2009 = vpop.permute.xlu0 %2008
      %v2011 = vmul.f32 %v994, %v2009
      %v2012 = vmul.f32 %v995, %v2009
      %v2013 = vmul.f32 %v996, %v2009
      %v2014 = vmul.f32 %v997, %v2009
      %v2015 = vmul.f32 %v998, %v2009
      %v2016 = vmul.f32 %v999, %v2009
      %v2017 = vmul.f32 %v1000, %v2009
      %v2018 = vmul.f32 %v1001, %v2009
      %v2019 = vmul.f32 %v1002, %v2009
      %v2020 = vmul.f32 %v1003, %v2009
      %v2021 = vmul.f32 %v1004, %v2009
      %v2022 = vmul.f32 %v1005, %v2009
      %v2023 = vmul.f32 %v1006, %v2009
      %v2024 = vmul.f32 %v1007, %v2009
      %v2025 = vmul.f32 %v1008, %v2009
      %v2026 = vmul.f32 %v1009, %v2009
      %v2027 = vmul.f32 %v1010, %v2009
      %v2028 = vmul.f32 %v1011, %v2009
      %v2029 = vmul.f32 %v1012, %v2009
      %v2030 = vmul.f32 %v1013, %v2009
      %v2031 = vmul.f32 %v1014, %v2009
      %v2032 = vmul.f32 %v1015, %v2009
      %v2033 = vmul.f32 %v1016, %v2009
      %v2034 = vmul.f32 %v1017, %v2009
      %2059 = vrot.lane.b32.xlu0 %v2011, 32
      %v2060 = vpop.permute.xlu0 %2059
      %2061 = vrot.lane.b32.xlu0 %v2012, 32
      %v2062 = vpop.permute.xlu0 %2061
      %2063 = vrot.lane.b32.xlu0 %v2013, 32
      %v2064 = vpop.permute.xlu0 %2063
      %2065 = vrot.lane.b32.xlu0 %v2014, 32
      %v2066 = vpop.permute.xlu0 %2065
      %2067 = vrot.lane.b32.xlu0 %v2015, 32
      %v2068 = vpop.permute.xlu0 %2067
      %2069 = vrot.lane.b32.xlu0 %v2016, 32
      %v2070 = vpop.permute.xlu0 %2069
      %2071 = vrot.lane.b32.xlu0 %v2017, 32
      %v2072 = vpop.permute.xlu0 %2071
      %2073 = vrot.lane.b32.xlu0 %v2018, 32
      %v2074 = vpop.permute.xlu0 %2073
      %2075 = vrot.lane.b32.xlu0 %v2019, 32
      %v2076 = vpop.permute.xlu0 %2075
      %2077 = vrot.lane.b32.xlu0 %v2020, 32
      %v2078 = vpop.permute.xlu0 %2077
      %2079 = vrot.lane.b32.xlu0 %v2021, 32
      %v2080 = vpop.permute.xlu0 %2079
      %2081 = vrot.lane.b32.xlu0 %v2022, 32
      %v2082 = vpop.permute.xlu0 %2081
      %2083 = vrot.lane.b32.xlu0 %v2023, 32
      %v2084 = vpop.permute.xlu0 %2083
      %2085 = vrot.lane.b32.xlu0 %v2024, 32
      %v2086 = vpop.permute.xlu0 %2085
      %2087 = vrot.lane.b32.xlu0 %v2025, 32
      %v2088 = vpop.permute.xlu0 %2087
      %2089 = vrot.lane.b32.xlu0 %v2026, 32
      %v2090 = vpop.permute.xlu0 %2089
      %2091 = vrot.lane.b32.xlu0 %v2027, 32
      %v2092 = vpop.permute.xlu0 %2091
      %2093 = vrot.lane.b32.xlu0 %v2028, 32
      %v2094 = vpop.permute.xlu0 %2093
      %2095 = vrot.lane.b32.xlu0 %v2029, 32
      %v2096 = vpop.permute.xlu0 %2095
      %2097 = vrot.lane.b32.xlu0 %v2030, 32
      %v2098 = vpop.permute.xlu0 %2097
      %2099 = vrot.lane.b32.xlu0 %v2031, 32
      %v2100 = vpop.permute.xlu0 %2099
      %2101 = vrot.lane.b32.xlu0 %v2032, 32
      %v2102 = vpop.permute.xlu0 %2101
      %2103 = vrot.lane.b32.xlu0 %v2033, 32
      %v2104 = vpop.permute.xlu0 %2103
      %2105 = vrot.lane.b32.xlu0 %v2034, 32
      %v2106 = vpop.permute.xlu0 %2105
      %v2131 = vsel %vm469, %v2060, 0.0
      %2132 = vadd.xlane.f32.xlu0 %v2131
      %v2133 = vpop.xlane.xlu0 %2132
      %v2134 = vsel %vm469, %v2062, 0.0
      %2135 = vadd.xlane.f32.xlu0 %v2134
      %v2136 = vpop.xlane.xlu0 %2135
      %v2137 = vsel %vm469, %v2064, 0.0
      %2138 = vadd.xlane.f32.xlu0 %v2137
      %v2139 = vpop.xlane.xlu0 %2138
      %v2140 = vsel %vm469, %v2066, 0.0
      %2141 = vadd.xlane.f32.xlu0 %v2140
      %v2142 = vpop.xlane.xlu0 %2141
      %v2143 = vsel %vm469, %v2068, 0.0
      %2144 = vadd.xlane.f32.xlu0 %v2143
      %v2145 = vpop.xlane.xlu0 %2144
      %v2146 = vsel %vm469, %v2070, 0.0
      %2147 = vadd.xlane.f32.xlu0 %v2146
      %v2148 = vpop.xlane.xlu0 %2147
      %v2149 = vsel %vm469, %v2072, 0.0
      %2150 = vadd.xlane.f32.xlu0 %v2149
      %v2151 = vpop.xlane.xlu0 %2150
      %v2152 = vsel %vm469, %v2074, 0.0
      %2153 = vadd.xlane.f32.xlu0 %v2152
      %v2154 = vpop.xlane.xlu0 %2153
      %v2155 = vsel %vm469, %v2076, 0.0
      %2156 = vadd.xlane.f32.xlu0 %v2155
      %v2157 = vpop.xlane.xlu0 %2156
      %v2158 = vsel %vm469, %v2078, 0.0
      %2159 = vadd.xlane.f32.xlu0 %v2158
      %v2160 = vpop.xlane.xlu0 %2159
      %v2161 = vsel %vm469, %v2080, 0.0
      %2162 = vadd.xlane.f32.xlu0 %v2161
      %v2163 = vpop.xlane.xlu0 %2162
      %v2164 = vsel %vm469, %v2082, 0.0
      %2165 = vadd.xlane.f32.xlu0 %v2164
      %v2166 = vpop.xlane.xlu0 %2165
      %v2167 = vsel %vm469, %v2084, 0.0
      %2168 = vadd.xlane.f32.xlu0 %v2167
      %v2169 = vpop.xlane.xlu0 %2168
      %v2170 = vsel %vm469, %v2086, 0.0
      %2171 = vadd.xlane.f32.xlu0 %v2170
      %v2172 = vpop.xlane.xlu0 %2171
      %v2173 = vsel %vm469, %v2088, 0.0
      %2174 = vadd.xlane.f32.xlu0 %v2173
      %v2175 = vpop.xlane.xlu0 %2174
      %v2176 = vsel %vm469, %v2090, 0.0
      %2177 = vadd.xlane.f32.xlu0 %v2176
      %v2178 = vpop.xlane.xlu0 %2177
      %v2179 = vsel %vm469, %v2092, 0.0
      %2180 = vadd.xlane.f32.xlu0 %v2179
      %v2181 = vpop.xlane.xlu0 %2180
      %v2182 = vsel %vm469, %v2094, 0.0
      %2183 = vadd.xlane.f32.xlu0 %v2182
      %v2184 = vpop.xlane.xlu0 %2183
      %v2185 = vsel %vm469, %v2096, 0.0
      %2186 = vadd.xlane.f32.xlu0 %v2185
      %v2187 = vpop.xlane.xlu0 %2186
      %v2188 = vsel %vm469, %v2098, 0.0
      %2189 = vadd.xlane.f32.xlu0 %v2188
      %v2190 = vpop.xlane.xlu0 %2189
      %v2191 = vsel %vm469, %v2100, 0.0
      %2192 = vadd.xlane.f32.xlu0 %v2191
      %v2193 = vpop.xlane.xlu0 %2192
      %v2194 = vsel %vm469, %v2102, 0.0
      %2195 = vadd.xlane.f32.xlu0 %v2194
      %v2196 = vpop.xlane.xlu0 %2195
      %v2197 = vsel %vm469, %v2104, 0.0
      %2198 = vadd.xlane.f32.xlu0 %v2197
      %v2199 = vpop.xlane.xlu0 %2198
      %v2200 = vsel %vm469, %v2106, 0.0
      %2201 = vadd.xlane.f32.xlu0 %v2200
      %v2202 = vpop.xlane.xlu0 %2201
      %v2227 = vlaneseq
      %v2228 = vshrl.u32 %v2227, 7
      %v2229 = vsub.s32 %v1146, %v2228
      %v2230 = vrot.slane %v2133, %v2229
      %v2231 = vlaneseq
      %v2232 = vshrl.u32 %v2231, 7
      %v2233 = vsub.s32 %v1151, %v2232
      %v2234 = vrot.slane %v2136, %v2233
      %v2235 = vsel %vm1156, %v2234, %v2230
      %v2236 = vlaneseq
      %v2237 = vshrl.u32 %v2236, 7
      %v2238 = vsub.s32 %v1158, %v2237
      %v2239 = vrot.slane %v2139, %v2238
      %v2240 = vsel %vm1163, %v2239, %v2235
      %v2241 = vlaneseq
      %v2242 = vshrl.u32 %v2241, 7
      %v2243 = vsub.s32 %v1146, %v2242
      %v2244 = vrot.slane %v2142, %v2243
      %v2245 = vlaneseq
      %v2246 = vshrl.u32 %v2245, 7
      %v2247 = vsub.s32 %v1151, %v2246
      %v2248 = vrot.slane %v2145, %v2247
      %v2249 = vsel %vm1156, %v2248, %v2244
      %v2250 = vlaneseq
      %v2251 = vshrl.u32 %v2250, 7
      %v2252 = vsub.s32 %v1158, %v2251
      %v2253 = vrot.slane %v2148, %v2252
      %v2254 = vsel %vm1163, %v2253, %v2249
      %v2255 = vlaneseq
      %v2256 = vshrl.u32 %v2255, 7
      %v2257 = vsub.s32 %v1146, %v2256
      %v2258 = vrot.slane %v2151, %v2257
      %v2259 = vlaneseq
      %v2260 = vshrl.u32 %v2259, 7
      %v2261 = vsub.s32 %v1151, %v2260
      %v2262 = vrot.slane %v2154, %v2261
      %v2263 = vsel %vm1156, %v2262, %v2258
      %v2264 = vlaneseq
      %v2265 = vshrl.u32 %v2264, 7
      %v2266 = vsub.s32 %v1158, %v2265
      %v2267 = vrot.slane %v2157, %v2266
      %v2268 = vsel %vm1163, %v2267, %v2263
      %v2269 = vlaneseq
      %v2270 = vshrl.u32 %v2269, 7
      %v2271 = vsub.s32 %v1146, %v2270
      %v2272 = vrot.slane %v2160, %v2271
      %v2273 = vlaneseq
      %v2274 = vshrl.u32 %v2273, 7
      %v2275 = vsub.s32 %v1151, %v2274
      %v2276 = vrot.slane %v2163, %v2275
      %v2277 = vsel %vm1156, %v2276, %v2272
      %v2278 = vlaneseq
      %v2279 = vshrl.u32 %v2278, 7
      %v2280 = vsub.s32 %v1158, %v2279
      %v2281 = vrot.slane %v2166, %v2280
      %v2282 = vsel %vm1163, %v2281, %v2277
      %v2283 = vlaneseq
      %v2284 = vshrl.u32 %v2283, 7
      %v2285 = vsub.s32 %v1146, %v2284
      %v2286 = vrot.slane %v2169, %v2285
      %v2287 = vlaneseq
      %v2288 = vshrl.u32 %v2287, 7
      %v2289 = vsub.s32 %v1151, %v2288
      %v2290 = vrot.slane %v2172, %v2289
      %v2291 = vsel %vm1156, %v2290, %v2286
      %v2292 = vlaneseq
      %v2293 = vshrl.u32 %v2292, 7
      %v2294 = vsub.s32 %v1158, %v2293
      %v2295 = vrot.slane %v2175, %v2294
      %v2296 = vsel %vm1163, %v2295, %v2291
      %v2297 = vlaneseq
      %v2298 = vshrl.u32 %v2297, 7
      %v2299 = vsub.s32 %v1146, %v2298
      %v2300 = vrot.slane %v2178, %v2299
      %v2301 = vlaneseq
      %v2302 = vshrl.u32 %v2301, 7
      %v2303 = vsub.s32 %v1151, %v2302
      %v2304 = vrot.slane %v2181, %v2303
      %v2305 = vsel %vm1156, %v2304, %v2300
      %v2306 = vlaneseq
      %v2307 = vshrl.u32 %v2306, 7
      %v2308 = vsub.s32 %v1158, %v2307
      %v2309 = vrot.slane %v2184, %v2308
      %v2310 = vsel %vm1163, %v2309, %v2305
      %v2311 = vlaneseq
      %v2312 = vshrl.u32 %v2311, 7
      %v2313 = vsub.s32 %v1146, %v2312
      %v2314 = vrot.slane %v2187, %v2313
      %v2315 = vlaneseq
      %v2316 = vshrl.u32 %v2315, 7
      %v2317 = vsub.s32 %v1151, %v2316
      %v2318 = vrot.slane %v2190, %v2317
      %v2319 = vsel %vm1156, %v2318, %v2314
      %v2320 = vlaneseq
      %v2321 = vshrl.u32 %v2320, 7
      %v2322 = vsub.s32 %v1158, %v2321
      %v2323 = vrot.slane %v2193, %v2322
      %v2324 = vsel %vm1163, %v2323, %v2319
      %v2325 = vlaneseq
      %v2326 = vshrl.u32 %v2325, 7
      %v2327 = vsub.s32 %v1146, %v2326
      %v2328 = vrot.slane %v2196, %v2327
      %v2329 = vlaneseq
      %v2330 = vshrl.u32 %v2329, 7
      %v2331 = vsub.s32 %v1151, %v2330
      %v2332 = vrot.slane %v2199, %v2331
      %v2333 = vsel %vm1156, %v2332, %v2328
      %v2334 = vlaneseq
      %v2335 = vshrl.u32 %v2334, 7
      %v2336 = vsub.s32 %v1158, %v2335
      %v2337 = vrot.slane %v2202, %v2336
      %v2338 = vsel %vm1163, %v2337, %v2333
      %v2339 = vsel %vm1263, %v2254, %v2240
      %v2340 = vsel %vm1265, %v2268, %v2339
      %v2341 = vsel %vm1267, %v2282, %v2340
      %v2342 = vsel %vm1269, %v2296, %v2341
      %v2343 = vsel %vm1271, %v2310, %v2342
      %v2344 = vsel %vm1273, %v2324, %v2343
      %v2345 = vsel %vm1275, %v2338, %v2344
      %v2347 = vsel %vm1019, %v2345, -1e+30
      %v2348 = vsel %vm1279, %v2347, -inf
      %2349 = vmax.xlane.f32.xlu0 %v2348
      %v2350 = vpop.xlane.xlu0 %2349
      %v2351 = vsub.f32 %v2347, %v2350
      %v2352 = vmul.f32 %v2351, 1.442695
      %v2353 = vpow.pop %v2352
      %v2354 = vsel %vm1279, %v2353, 0.0
      %2355 = vadd.xlane.f32.xlu0 %v2354
      %v2356 = vpop.xlane.xlu0 %2355
      %v2357 = vrcp.pop %v2356
      %v2358 = vmul.f32 %v2353, %v2357
      %2360 = vrot.lane.b32.xlu0 %v1646, 24
      %v2361 = vpop.permute.xlu0 %2360
      %2364 = vrot.lane.b32.xlu0 %v2002, 48
      %v2365 = vpop.permute.xlu0 %2364
      %2368 = vrot.lane.b32.xlu0 %v2358, 72
      %v2369 = vpop.permute.xlu0 %2368
      %v2371 = vsel %vm1279, %v1290, %v2361
      %vm2372 = vcmask 392192
      %v2373 = vsel %vm2372, %v2371, %v2365
      %vm2374 = vcmask 588800
      %v2375 = vsel %vm2374, %v2373, %v2369
      %v2376 = vpack.c.bf16 %v2375, %v2375
      %2380 = vrot.lane.b32.xlu0 %v533, 96
      %v2381 = vpop.permute.xlu0 %2380
      %2382 = vrot.lane.b32.xlu0 %v534, 96
      %v2383 = vpop.permute.xlu0 %2382
      %2384 = vrot.lane.b32.xlu0 %v535, 96
      %v2385 = vpop.permute.xlu0 %2384
      %2389 = vrot.lane.b32.xlu0 %v533, 64
      %v2390 = vpop.permute.xlu0 %2389
      %2391 = vrot.lane.b32.xlu0 %v534, 64
      %v2392 = vpop.permute.xlu0 %2391
      %2393 = vrot.lane.b32.xlu0 %v535, 64
      %v2394 = vpop.permute.xlu0 %2393
      %2398 = vrot.lane.b32.xlu0 %v533, 32
      %v2399 = vpop.permute.xlu0 %2398
      %2400 = vrot.lane.b32.xlu0 %v534, 32
      %v2401 = vpop.permute.xlu0 %2400
      %2402 = vrot.lane.b32.xlu0 %v535, 32
      %v2403 = vpop.permute.xlu0 %2402
      %v2407 = vpack.c.bf16 %v534, %v533
      %v2408 = vpack.c.bf16 %v2381, %v535
      %v2409 = vpack.c.bf16 %v2385, %v2383
      %v2410 = vpack.c.bf16 %v2392, %v2390
      %v2411 = vpack.c.bf16 %v2399, %v2394
      %v2412 = vpack.c.bf16 %v2403, %v2401
      %vm2413 = vcmask 785408
      %v2415 = vsel %vm2413, %v2376, 0
      %2417 = vmatprep.subr.bf16.mxu0 0
      %2418 = vmatpush1.bf16.msra.mxu0 0
      %2419 = vmatprep.subr.bf16.mxu0 0
      %2420 = vmatpush1.bf16.msra.mxu0 0
      %2421 = vmatprep.subr.bf16.mxu0 0
      %2422 = vmatpush1.bf16.msra.mxu0 %v2412
      %2423 = vmatprep.subr.bf16.mxu0 0
      %2424 = vmatpush1.bf16.msra.mxu0 %v2411
      %2425 = vmatprep.subr.bf16.mxu0 0
      %2426 = vmatpush1.bf16.msra.mxu0 %v2410
      %2427 = vmatprep.subr.bf16.mxu0 0
      %2428 = vmatpush1.bf16.msra.mxu0 %v2409
      %2429 = vmatprep.subr.bf16.mxu0 0
      %2430 = vmatpush1.bf16.msra.mxu0 %v2408
      %2431 = vmatprep.subr.bf16.mxu0 0
      %2432 = vmatpush1.bf16.msra.mxu0 %v2407
      %2433 = vmatprep.subr.bf16.mxu0 0
      %2434 = vmatpush2.bf16.msra.mxu0 0
      %2435 = vmatprep.subr.bf16.mxu0 0
      %2436 = vmatpush2.bf16.msra.mxu0 0
      %2437 = vmatprep.subr.bf16.mxu0 0
      %2438 = vmatpush2.bf16.msra.mxu0 0
      %2439 = vmatprep.subr.bf16.mxu0 0
      %2440 = vmatpush2.bf16.msra.mxu0 0
      %2441 = vmatprep.subr.bf16.mxu0 0
      %2442 = vmatpush2.bf16.msra.mxu0 0
      %2443 = vmatprep.subr.bf16.mxu0 0
      %2444 = vmatpush2.bf16.msra.mxu0 0
      %2445 = vmatprep.subr.bf16.mxu0 0
      %2446 = vmatpush2.bf16.msra.mxu0 0
      %2447 = vmatprep.subr.bf16.mxu0 0
      %2448 = vmatpush2.bf16.msra.mxu0 0
      %2449 = vmatprep.mubr.bf16.mxu0 0
      %2450 = vmatmul.mubr.bf16.gmra.mxu0 %v2415
      %v2451 = vpop.f32.mrf.mxu0
      %v2452 = vadd.f32 0.0, %v2451
      %v2453 = vpop.f32.mrf.mxu0
      %v2454 = vpop.f32.mrf.mxu0
      %v2455 = vpop.f32.mrf.mxu0
      %2456 = vdwg.mxu0
      %v2457 = vmul.f32 %v2452, 0.25
      %v2458 = vld [vmem:[%s8] sm:$0x1]
      %v2460 = vlaneseq
      %v2461 = vshrl.u32 %v2460, 7
      %v2462 = vsub.s32 0, %v2461
      %v2463 = vrot.slane %v2458, %v2462
      %v2465 = vadd.f32 %v2457, %v2463
      %v2466 = vld [vmem:[%s406] sm:$0xff]
      %v2467 = vadd.f32 %v2465, %v2466
      %v2468 = vsel %vm469, %v2467, 0.0
      %2469 = vadd.xlane.f32.xlu0 %v2468
      %v2470 = vpop.xlane.xlu0 %2469
      %v2471 = vrcp.pop 32.0
      %v2472 = vmul.f32 %v2470, %v2471
      %v2473 = vsub.f32 %v2467, %v2472
      %v2474 = vmul.f32 %v2473, %v2473
      %v2475 = vsel %vm469, %v2474, 0.0
      %2476 = vadd.xlane.f32.xlu0 %v2475
      %v2477 = vpop.xlane.xlu0 %2476
      %v2478 = vmul.f32 %v2477, %v2471
      %v2479 = vadd.f32 %v2478, 1e-05
      %v2480 = vrsqrt.pop %v2479
      %v2481 = vmul.f32 %v2473, %v2480
      %v2482 = vld [vmem:[%s9] sm:$0x1]
      %v2484 = vlaneseq
      %v2485 = vshrl.u32 %v2484, 7
      %v2486 = vsub.s32 0, %v2485
      %v2487 = vrot.slane %v2482, %v2486
      %v2489 = vmul.f32 %v2481, %v2487
      %v2490 = vld [vmem:[%s10] sm:$0x1]
      %v2492 = vlaneseq
      %v2493 = vshrl.u32 %v2492, 7
      %v2494 = vsub.s32 0, %v2493
      %v2495 = vrot.slane %v2490, %v2494
      %v2497 = vadd.f32 %v2489, %v2495
      %v2498 = vmax.f32 %v2497, 0.0
      %2499 = vst.msk [vmem:[%s420] sm:$0xff] %vm469, %v2498
      %p2500 = scmp.lt.s32.totalorder %s22, 2
      %s2501 = scalar_select %p2500, %s22, 2
      %s2502 = smul.addr %s2501, 8
      %s2503 = scalar_lea.vmem %s11, %s2502
      // Predicated region
      $region65: #{protein_ligand_gnn_forward.5} parent=63 // pred_check
        %p2504 = pneg %p286
      $region66: #{protein_ligand_gnn_forward.5} parent=63 // pred_check_branch
        %2506 = sbr.rel (%p2504) target = $region68
      $region67: #{protein_ligand_gnn_forward.5} parent=63 // pred_region
        _
      $region68: #{protein_ligand_gnn_forward.5} parent=63 // pred_fallthru
        _
    $region64: #{protein_ligand_gnn_forward.5} parent=5 // pred_fallthru
      _
    %p2507 = scmp.le.s32.totalorder 2, %s17
    // Predicated region
    $region69: #{protein_ligand_gnn_forward.5} parent=5 // pred_check
      %p2508 = pneg %p2507
    $region70: #{protein_ligand_gnn_forward.5} parent=5 // pred_check_branch
      %2510 = sbr.rel (%p2508) target = $region72
    $region71: #{protein_ligand_gnn_forward.5} parent=5 // pred_region
      %s2511 = ssub.s32 %s17, 2
      // Predicated region
      $region73: #{protein_ligand_gnn_forward.5} parent=71 // pred_check
        %p2512 = pneg %p292
      $region74: #{protein_ligand_gnn_forward.5} parent=71 // pred_check_branch
        %2514 = sbr.rel (%p2512) target = $region76
      $region75: #{protein_ligand_gnn_forward.5} parent=71 // pred_region
        %p2515 = scmp.lt.s32.totalorder %s23, 2
        %s2516 = scalar_select %p2515, %s23, 2
        %s2517 = smul.addr %s2516, 8
        %s2518 = scalar_lea.vmem %s11, %s2517
      $region76: #{protein_ligand_gnn_forward.5} parent=71 // pred_fallthru
        _
    $region72: #{protein_ligand_gnn_forward.5} parent=5 // pred_fallthru
      _
  $region6: #{protein_ligand_gnn_forward.5} parent=0 // loop_footer
    %s21 = sadd.s32 1, %s17
  $region7: #{protein_ligand_gnn_forward.5} parent=0 // loop_footer_branch
    %16 = sbr.rel target = $region3
  $region8: #{protein_ligand_gnn_forward.5} parent=0 // loop_exit
    _

</llo_original>
